<compile_context>
chip_gen: v7x
topology: tpu7x:2x2x1
jax: 0.10.0
libtpu: 0.0.40
codegen_flags: <defaults>
</compile_context>

<pallas_src>
import jax
import jax.numpy as jnp
from jax.experimental import pallas as pl
from jax.experimental.pallas import tpu as pltpu

BN_EPS = 1e-5


def _round_up(x, m):
    return ((x + m - 1) // m) * m


def _make_kernel(num_h):
    """Kernel over grid (row_tile, pass, vocab_tile); num_h hidden inputs."""

    def kernel(*refs):
        h_refs = refs[:num_h]
        w1_ref, b1_ref, w2_ref, b2_ref, out_ref, y_sc, m_sc, l_sc = refs[num_h:]
        p = pl.program_id(1)      # 0: statistics pass, 1: normalized-output pass
        j = pl.program_id(2)      # vocabulary tile

        # Once per row tile: sum hidden layers (pairwise, bf16), BN-folded
        # Linear(768,768) + SiLU, and reset the online-softmax statistics.
        @pl.when(jnp.logical_and(p == 0, j == 0))
        def _():
            if num_h == 4:
                x = (h_refs[0][...] + h_refs[1][...]) + (h_refs[2][...] + h_refs[3][...])
            else:
                x = h_refs[0][...]
                for r in h_refs[1:]:
                    x = x + r[...]
            y = jnp.dot(x.astype(jnp.bfloat16), w1_ref[...],
                        preferred_element_type=jnp.float32) + b1_ref[...]
            y = y * jax.nn.sigmoid(y)                              # SiLU
            y_sc[...] = y.astype(jnp.bfloat16)
            m_sc[...] = jnp.full(m_sc.shape, -jnp.inf, m_sc.dtype)
            l_sc[...] = jnp.zeros(l_sc.shape, l_sc.dtype)

        # Linear(768, V) for the current vocabulary tile (streamed w2).
        s = jnp.dot(y_sc[...], w2_ref[...],
                    preferred_element_type=jnp.float32) + b2_ref[...]

        @pl.when(p == 0)          # pass 0: online max / denominator update
        def _():
            m_new = jnp.maximum(m_sc[...], jnp.max(s, axis=-1, keepdims=True))
            l_sc[...] = (l_sc[...] * jnp.exp(m_sc[...] - m_new)
                         + jnp.sum(jnp.exp(s - m_new), axis=-1, keepdims=True))
            m_sc[...] = m_new

        @pl.when(p == 1)          # pass 1: write normalized softmax tile
        def _():
            out_ref[...] = (jnp.exp(s - m_sc[...]) * (1.0 / l_sc[...])
                            ).astype(out_ref.dtype)

    return kernel


def fold_batchnorm(params):
    """Fold inference-mode BatchNorm1d into the first Linear; cast weights to bf16."""
    scale = params["gamma"] * jax.lax.rsqrt(params["var"] + BN_EPS)    # (1, H)
    shift = params["beta"] - params["mean"] * scale                     # (1, H)
    w1f = (params["w1"] * scale.reshape(-1, 1)).astype(jnp.bfloat16)    # (H, H)
    b1f = (params["b1"] + shift @ params["w1"]).astype(jnp.float32)     # (1, H)
    w2f = params["w2"].astype(jnp.bfloat16)                             # (H, V)
    b2f = params["b2"].astype(jnp.float32)                              # (1, V)
    return w1f, b1f, w2f, b2f


def wsd_classification(hidden_states, params, *, tm=None, tv=1024,
                       out_dtype=jnp.bfloat16):
    """hidden_states: list of 4 (N,H) arrays, or one pre-summed (N,H) array.
    Returns (N, V) class probabilities in out_dtype."""
    hs = list(hidden_states) if isinstance(hidden_states, (list, tuple)) else [hidden_states]
    num_h = len(hs)
    N, H = hs[0].shape
    w1f, b1f, w2f, b2f = fold_batchnorm(params)
    V = w2f.shape[1]
    assert H % 128 == 0 and V % 128 == 0

    # --- adaptive row tile (bf16 sublane multiple = 16) ---------------------
    if tm is None:
        tm = min(512, _round_up(N, 16))
        # split into >= 2 row tiles (two v7x TensorCores) when it adds no padding
        if N >= 32 and N % 32 == 0 and N // 2 <= 512:
            tm = N // 2
    assert tm % 16 == 0 and tm >= 16

    # --- vocabulary tile: largest multiple of 128 <= tv that divides V ------
    tv = max(128, (min(tv, V) // 128) * 128)
    while V % tv:
        tv -= 128
    n_vtiles = V // tv

    # --- pad rows to a multiple of tm (padded rows dropped afterwards) ------
    n_pad = (-N) % tm
    if n_pad:
        hs = [jnp.pad(h, ((0, n_pad), (0, 0))) for h in hs]
    Np = N + n_pad

    row_spec = pl.BlockSpec((tm, H), lambda i, p, j: (i, 0))
    w1_spec = pl.BlockSpec((H, H), lambda i, p, j: (0, 0),
                           pipeline_mode=pl.Buffered(1))     # resident, single-buffered
    b1_spec = pl.BlockSpec((1, H), lambda i, p, j: (0, 0),
                           pipeline_mode=pl.Buffered(1))
    w2_spec = pl.BlockSpec((H, tv), lambda i, p, j: (0, j))   # streamed per vocab tile
    b2_spec = pl.BlockSpec((1, tv), lambda i, p, j: (0, j))
    out_spec = pl.BlockSpec((tm, tv), lambda i, p, j: (i, j))

    # rough VMEM budget -> explicit scoped limit (v5e default is only 16 MiB)
    h_bytes = jnp.dtype(hs[0].dtype).itemsize
    o_bytes = jnp.dtype(out_dtype).itemsize
    est = (num_h * 2 * tm * H * h_bytes      # double-buffered hidden-state tiles
           + H * H * 2 + H * 4               # resident (single-buffered) w1 + b1
           + 2 * H * tv * 2 + 2 * tv * 4     # double-buffered w2 / b2 tiles
           + 2 * tm * tv * o_bytes           # double-buffered output tiles
           + tm * H * 2 + 2 * tm * 128 * 4   # y / m / l scratch
           + 4 * tm * max(H, tv) * 4)        # f32 compute temporaries headroom
    vmem_limit = int(min(max(est, 32 * 1024 * 1024), 56 * 1024 * 1024))

    out = pl.pallas_call(
        _make_kernel(num_h),
        out_shape=jax.ShapeDtypeStruct((Np, V), out_dtype),
        grid_spec=pltpu.PrefetchScalarGridSpec(
            num_scalar_prefetch=0,
            grid=(Np // tm, 2, n_vtiles),    # rows x {stats, write} pass x vocab tiles
            in_specs=[row_spec] * num_h + [w1_spec, b1_spec, w2_spec, b2_spec],
            out_specs=out_spec,
            scratch_shapes=[pltpu.VMEM((tm, H), jnp.bfloat16),   # SiLU activations
                            pltpu.VMEM((tm, 1), jnp.float32),    # running max
                            pltpu.VMEM((tm, 1), jnp.float32)],   # running denominator
        ),
        compiler_params=pltpu.CompilerParams(
            dimension_semantics=("parallel", "arbitrary", "arbitrary"),
            vmem_limit_bytes=vmem_limit),
    )(*hs, w1f, b1f, w2f, b2f)

    return out[:N] if n_pad else out


def reference(hidden_states, params):
    """Pure-JAX reference replicating the kernel's bf16/f32 numerics (f32 output)."""
    w1f, b1f, w2f, b2f = fold_batchnorm(params)
    hs = list(hidden_states) if isinstance(hidden_states, (list, tuple)) else [hidden_states]
    if len(hs) == 4:
        x = (hs[0] + hs[1]) + (hs[2] + hs[3])
    else:
        x = hs[0]
        for h in hs[1:]:
            x = x + h
    y = jnp.dot(x.astype(jnp.bfloat16), w1f,
                preferred_element_type=jnp.float32) + b1f
    y = y * jax.nn.sigmoid(y)
    logits = jnp.dot(y.astype(jnp.bfloat16), w2f,
                     preferred_element_type=jnp.float32) + b2f
    return jax.nn.softmax(logits, axis=-1)


def init_params(key, hidden, vocab):
    ks = jax.random.split(key, 6)
    scale1 = 1.0 / jnp.sqrt(hidden)
    return {
        # BatchNorm1d(768): affine params + deterministic running stats
        "gamma": jax.random.normal(ks[0], (1, hidden), jnp.float32) * 0.1 + 1.0,
        "beta": jax.random.normal(ks[1], (1, hidden), jnp.float32) * 0.1,
        "mean": jax.random.normal(ks[2], (1, hidden), jnp.float32) * 0.1,
        "var": jnp.abs(jax.random.normal(ks[3], (1, hidden), jnp.float32)) * 0.1 + 1.0,
        # Linear weights stored already transposed: (in, out)
        "w1": jax.random.normal(ks[4], (hidden, hidden), jnp.float32) * scale1,
        "b1": jnp.zeros((1, hidden), jnp.float32),
        "w2": jax.random.normal(ks[5], (hidden, vocab), jnp.float32) * scale1,
        "b2": jnp.zeros((1, vocab), jnp.float32),
    }


if __name__ == "__main__":
    B, S, H, V = 2, 8, 768, 512   # H=768 fixed by the module's classifier
    N = B * S

    key = jax.random.PRNGKey(0)
    k_h, k_p = jax.random.split(key)
    hk = jax.random.split(k_h, 4)
    # synthetic stand-ins for BERT hidden_states[-1..-4], flattened (B*S, H), bf16
    hidden_states = [(jax.random.normal(hk[i], (N, H), jnp.float32) * 0.5
                      ).astype(jnp.bfloat16) for i in range(4)]
    params = init_params(k_p, H, V)

    # tv=256 -> two vocabulary tiles, exercising the online/two-pass softmax path
    out = wsd_classification(hidden_states, params, tv=256)
    out = jax.block_until_ready(out)

    ref = reference(hidden_states, params)
    assert out.shape == (N, V) and out.dtype == jnp.bfloat16
    out_f32 = out.astype(jnp.float32)
    assert jnp.allclose(jnp.sum(out_f32, axis=-1), 1.0, atol=5e-3)
    assert jnp.allclose(out_f32, ref, rtol=2e-2, atol=4e-3)

    # pre-summed embedding path (upstream BERT graph emits the fused layer sum)
    presummed = (hidden_states[0] + hidden_states[1]) + (hidden_states[2] + hidden_states[3])
    out2 = jax.block_until_ready(wsd_classification(presummed, params, tv=256))
    assert jnp.allclose(out2.astype(jnp.float32), ref, rtol=2e-2, atol=4e-3)

    print("KERNEL_OK")
</pallas_src>

<mosaic_0001>
module attributes {stable_mosaic.version = 11 : i64} {
  func.func @kernel(%arg0: i32, %arg1: i32, %arg2: i32, %arg3: memref<16x768xbf16, #tpu.memory_space<vmem>>, %arg4: memref<16x768xbf16, #tpu.memory_space<vmem>>, %arg5: memref<16x768xbf16, #tpu.memory_space<vmem>>, %arg6: memref<16x768xbf16, #tpu.memory_space<vmem>>, %arg7: memref<768x768xbf16, #tpu.memory_space<vmem>>, %arg8: memref<1x768xf32, #tpu.memory_space<vmem>>, %arg9: memref<768x256xbf16, #tpu.memory_space<vmem>>, %arg10: memref<1x256xf32, #tpu.memory_space<vmem>>, %arg11: memref<16x256xbf16, #tpu.memory_space<vmem>>, %arg12: memref<16x768xbf16, #tpu.memory_space<vmem>>, %arg13: memref<16x1xf32, #tpu.memory_space<vmem>>, %arg14: memref<16x1xf32, #tpu.memory_space<vmem>>) attributes {dimension_semantics = [#tpu.dimension_semantics<parallel>, #tpu.dimension_semantics<arbitrary>, #tpu.dimension_semantics<arbitrary>], iteration_bounds = array<i64: 1, 2, 2>, scalar_prefetch = 0 : i64, scratch_operands = 3 : i64, tpu.core_type = #tpu.core_type<tc>, window_params = [{transform_indices = @transform_0, window_bounds = array<i64: 16, 768>}, {transform_indices = @transform_1, window_bounds = array<i64: 16, 768>}, {transform_indices = @transform_2, window_bounds = array<i64: 16, 768>}, {transform_indices = @transform_3, window_bounds = array<i64: 16, 768>}, {pipeline_mode = #tpu.pipeline_mode<synchronous>, transform_indices = @transform_4, window_bounds = array<i64: 768, 768>}, {pipeline_mode = #tpu.pipeline_mode<synchronous>, transform_indices = @transform_5, window_bounds = array<i64: 1, 768>}, {transform_indices = @transform_6, window_bounds = array<i64: 768, 256>}, {transform_indices = @transform_7, window_bounds = array<i64: 1, 256>}, {transform_indices = @transform_8, window_bounds = array<i64: 16, 256>}]} {
    %c0_i32 = arith.constant 0 : i32
    %0 = arith.cmpi eq, %arg1, %c0_i32 : i32
    %c0_i32_0 = arith.constant 0 : i32
    %1 = arith.cmpi eq, %arg2, %c0_i32_0 : i32
    %2 = arith.andi %0, %1 : i1
    %3 = arith.extui %2 : i1 to i32
    %c0_i32_1 = arith.constant 0 : i32
    %4 = arith.cmpi ne, %3, %c0_i32_1 : i32
    scf.if %4 {
      %c0_10 = arith.constant 0 : index
      %c0_11 = arith.constant 0 : index
      %17 = vector.load %arg3[%c0_10, %c0_11] : memref<16x768xbf16, #tpu.memory_space<vmem>>, vector<16x768xbf16>
      %c0_12 = arith.constant 0 : index
      %c0_13 = arith.constant 0 : index
      %18 = vector.load %arg4[%c0_12, %c0_13] : memref<16x768xbf16, #tpu.memory_space<vmem>>, vector<16x768xbf16>
      %19 = arith.addf %17, %18 : vector<16x768xbf16>
      %c0_14 = arith.constant 0 : index
      %c0_15 = arith.constant 0 : index
      %20 = vector.load %arg5[%c0_14, %c0_15] : memref<16x768xbf16, #tpu.memory_space<vmem>>, vector<16x768xbf16>
      %c0_16 = arith.constant 0 : index
      %c0_17 = arith.constant 0 : index
      %21 = vector.load %arg6[%c0_16, %c0_17] : memref<16x768xbf16, #tpu.memory_space<vmem>>, vector<16x768xbf16>
      %22 = arith.addf %20, %21 : vector<16x768xbf16>
      %23 = arith.addf %19, %22 : vector<16x768xbf16>
      %c0_18 = arith.constant 0 : index
      %c0_19 = arith.constant 0 : index
      %24 = vector.load %arg7[%c0_18, %c0_19] : memref<768x768xbf16, #tpu.memory_space<vmem>>, vector<768x768xbf16>
      %cst_20 = arith.constant dense<0.000000e+00> : vector<16x768xf32>
      %25 = tpu.matmul %23, %24, %cst_20 {dimension_numbers = #tpu.dot_dimension_numbers<[1], [0], [0], [1], [0, 0, 1, 1], [], []>} : vector<16x768xbf16>, vector<768x768xbf16>, vector<16x768xf32> -> vector<16x768xf32>
      %c0_21 = arith.constant 0 : index
      %c0_22 = arith.constant 0 : index
      %26 = vector.load %arg8[%c0_21, %c0_22] : memref<1x768xf32, #tpu.memory_space<vmem>>, vector<1x768xf32>
      %27 = vector.broadcast %26 : vector<1x768xf32> to vector<16x768xf32>
      %28 = arith.addf %25, %27 : vector<16x768xf32>
      %29 = arith.negf %28 : vector<16x768xf32>
      %30 = math.exp %29 : vector<16x768xf32>
      %cst_23 = arith.constant 1.000000e+00 : f32
      %31 = vector.broadcast %cst_23 : f32 to vector<16x768xf32>
      %32 = arith.addf %31, %30 : vector<16x768xf32>
      %33 = arith.divf %31, %32 : vector<16x768xf32>
      %34 = arith.mulf %28, %33 : vector<16x768xf32>
      %35 = arith.truncf %34 : vector<16x768xf32> to vector<16x768xbf16>
      %c0_24 = arith.constant 0 : index
      %c0_25 = arith.constant 0 : index
      %36 = vector.load %arg12[%c0_24, %c0_25] : memref<16x768xbf16, #tpu.memory_space<vmem>>, vector<16x768xbf16>
      tpu.vector_store %arg12[%c0_24, %c0_25], %35 {strides = array<i32>} : memref<16x768xbf16, #tpu.memory_space<vmem>>, vector<16x768xbf16>,
      %cst_26 = arith.constant 0xFF800000 : f32
      %37 = vector.broadcast %cst_26 : f32 to vector<16x1xf32>
      %c0_27 = arith.constant 0 : index
      %c0_28 = arith.constant 0 : index
      %38 = vector.load %arg13[%c0_27, %c0_28] : memref<16x1xf32, #tpu.memory_space<vmem>>, vector<16x1xf32>
      tpu.vector_store %arg13[%c0_27, %c0_28], %37 {strides = array<i32>} : memref<16x1xf32, #tpu.memory_space<vmem>>, vector<16x1xf32>,
      %cst_29 = arith.constant 0.000000e+00 : f32
      %39 = vector.broadcast %cst_29 : f32 to vector<16x1xf32>
      %c0_30 = arith.constant 0 : index
      %c0_31 = arith.constant 0 : index
      %40 = vector.load %arg14[%c0_30, %c0_31] : memref<16x1xf32, #tpu.memory_space<vmem>>, vector<16x1xf32>
      tpu.vector_store %arg14[%c0_30, %c0_31], %39 {strides = array<i32>} : memref<16x1xf32, #tpu.memory_space<vmem>>, vector<16x1xf32>,
    } else {
    }
    %c0 = arith.constant 0 : index
    %c0_2 = arith.constant 0 : index
    %5 = vector.load %arg12[%c0, %c0_2] : memref<16x768xbf16, #tpu.memory_space<vmem>>, vector<16x768xbf16>
    %c0_3 = arith.constant 0 : index
    %c0_4 = arith.constant 0 : index
    %6 = vector.load %arg9[%c0_3, %c0_4] : memref<768x256xbf16, #tpu.memory_space<vmem>>, vector<768x256xbf16>
    %cst = arith.constant dense<0.000000e+00> : vector<16x256xf32>
    %7 = tpu.matmul %5, %6, %cst {dimension_numbers = #tpu.dot_dimension_numbers<[1], [0], [0], [1], [0, 0, 1, 1], [], []>} : vector<16x768xbf16>, vector<768x256xbf16>, vector<16x256xf32> -> vector<16x256xf32>
    %c0_5 = arith.constant 0 : index
    %c0_6 = arith.constant 0 : index
    %8 = vector.load %arg10[%c0_5, %c0_6] : memref<1x256xf32, #tpu.memory_space<vmem>>, vector<1x256xf32>
    %9 = vector.broadcast %8 : vector<1x256xf32> to vector<16x256xf32>
    %10 = arith.addf %7, %9 : vector<16x256xf32>
    %c0_i32_7 = arith.constant 0 : i32
    %11 = arith.cmpi eq, %arg1, %c0_i32_7 : i32
    %12 = arith.extui %11 : i1 to i32
    %c0_i32_8 = arith.constant 0 : i32
    %13 = arith.cmpi ne, %12, %c0_i32_8 : i32
    scf.if %13 {
      %c0_10 = arith.constant 0 : index
      %c0_11 = arith.constant 0 : index
      %17 = vector.load %arg13[%c0_10, %c0_11] : memref<16x1xf32, #tpu.memory_space<vmem>>, vector<16x1xf32>
      %cst_12 = arith.constant dense<0xFF800000> : vector<16xf32>
      %18 = vector.multi_reduction <maximumf>, %10, %cst_12 [1] : vector<16x256xf32> to vector<16xf32>
      %19 = vector.shape_cast %18 : vector<16xf32> to vector<16x1xf32>
      %20 = arith.maximumf %17, %19 : vector<16x1xf32>
      %c0_13 = arith.constant 0 : index
      %c0_14 = arith.constant 0 : index
      %21 = vector.load %arg14[%c0_13, %c0_14] : memref<16x1xf32, #tpu.memory_space<vmem>>, vector<16x1xf32>
      %c0_15 = arith.constant 0 : index
      %c0_16 = arith.constant 0 : index
      %22 = vector.load %arg13[%c0_15, %c0_16] : memref<16x1xf32, #tpu.memory_space<vmem>>, vector<16x1xf32>
      %23 = arith.subf %22, %20 : vector<16x1xf32>
      %24 = math.exp %23 : vector<16x1xf32>
      %25 = arith.mulf %21, %24 : vector<16x1xf32>
      %26 = vector.broadcast %20 : vector<16x1xf32> to vector<16x256xf32>
      %27 = arith.subf %10, %26 : vector<16x256xf32>
      %28 = math.exp %27 : vector<16x256xf32>
      %cst_17 = arith.constant dense<0.000000e+00> : vector<16xf32>
      %29 = vector.multi_reduction <add>, %28, %cst_17 [1] : vector<16x256xf32> to vector<16xf32>
      %30 = vector.shape_cast %29 : vector<16xf32> to vector<16x1xf32>
      %31 = arith.addf %25, %30 : vector<16x1xf32>
      %c0_18 = arith.constant 0 : index
      %c0_19 = arith.constant 0 : index
      %32 = vector.load %arg14[%c0_18, %c0_19] : memref<16x1xf32, #tpu.memory_space<vmem>>, vector<16x1xf32>
      tpu.vector_store %arg14[%c0_18, %c0_19], %31 {strides = array<i32>} : memref<16x1xf32, #tpu.memory_space<vmem>>, vector<16x1xf32>,
      %c0_20 = arith.constant 0 : index
      %c0_21 = arith.constant 0 : index
      %33 = vector.load %arg13[%c0_20, %c0_21] : memref<16x1xf32, #tpu.memory_space<vmem>>, vector<16x1xf32>
      tpu.vector_store %arg13[%c0_20, %c0_21], %20 {strides = array<i32>} : memref<16x1xf32, #tpu.memory_space<vmem>>, vector<16x1xf32>,
    } else {
    }
    %c1_i32 = arith.constant 1 : i32
    %14 = arith.cmpi eq, %arg1, %c1_i32 : i32
    %15 = arith.extui %14 : i1 to i32
    %c0_i32_9 = arith.constant 0 : i32
    %16 = arith.cmpi ne, %15, %c0_i32_9 : i32
    scf.if %16 {
      %c0_10 = arith.constant 0 : index
      %c0_11 = arith.constant 0 : index
      %17 = vector.load %arg13[%c0_10, %c0_11] : memref<16x1xf32, #tpu.memory_space<vmem>>, vector<16x1xf32>
      %18 = vector.broadcast %17 : vector<16x1xf32> to vector<16x256xf32>
      %19 = arith.subf %10, %18 : vector<16x256xf32>
      %20 = math.exp %19 : vector<16x256xf32>
      %c0_12 = arith.constant 0 : index
      %c0_13 = arith.constant 0 : index
      %21 = vector.load %arg14[%c0_12, %c0_13] : memref<16x1xf32, #tpu.memory_space<vmem>>, vector<16x1xf32>
      %cst_14 = arith.constant 1.000000e+00 : f32
      %22 = vector.broadcast %cst_14 : f32 to vector<16x1xf32>
      %23 = arith.divf %22, %21 : vector<16x1xf32>
      %24 = vector.broadcast %23 : vector<16x1xf32> to vector<16x256xf32>
      %25 = arith.mulf %20, %24 : vector<16x256xf32>
      %26 = arith.truncf %25 : vector<16x256xf32> to vector<16x256xbf16>
      %c0_15 = arith.constant 0 : index
      %c0_16 = arith.constant 0 : index
      %27 = vector.load %arg11[%c0_15, %c0_16] : memref<16x256xbf16, #tpu.memory_space<vmem>>, vector<16x256xbf16>
      tpu.vector_store %arg11[%c0_15, %c0_16], %26 {strides = array<i32>} : memref<16x256xbf16, #tpu.memory_space<vmem>>, vector<16x256xbf16>,
    } else {
    }
    return
  }
  func.func @transform_0(%arg0: i32, %arg1: i32, %arg2: i32) -> (i32, i32) {
    %c0_i32 = arith.constant 0 : i32
    %c0_i32_0 = arith.constant 0 : i32
    return %arg0, %c0_i32 : i32, i32
  }
  func.func @transform_1(%arg0: i32, %arg1: i32, %arg2: i32) -> (i32, i32) {
    %c0_i32 = arith.constant 0 : i32
    %c0_i32_0 = arith.constant 0 : i32
    return %arg0, %c0_i32 : i32, i32
  }
  func.func @transform_2(%arg0: i32, %arg1: i32, %arg2: i32) -> (i32, i32) {
    %c0_i32 = arith.constant 0 : i32
    %c0_i32_0 = arith.constant 0 : i32
    return %arg0, %c0_i32 : i32, i32
  }
  func.func @transform_3(%arg0: i32, %arg1: i32, %arg2: i32) -> (i32, i32) {
    %c0_i32 = arith.constant 0 : i32
    %c0_i32_0 = arith.constant 0 : i32
    return %arg0, %c0_i32 : i32, i32
  }
  func.func @transform_4(%arg0: i32, %arg1: i32, %arg2: i32) -> (i32, i32) {
    %c0_i32 = arith.constant 0 : i32
    %c0_i32_0 = arith.constant 0 : i32
    %c0_i32_1 = arith.constant 0 : i32
    return %c0_i32, %c0_i32_0 : i32, i32
  }
  func.func @transform_5(%arg0: i32, %arg1: i32, %arg2: i32) -> (i32, i32) {
    %c0_i32 = arith.constant 0 : i32
    %c0_i32_0 = arith.constant 0 : i32
    %c0_i32_1 = arith.constant 0 : i32
    return %c0_i32, %c0_i32_0 : i32, i32
  }
  func.func @transform_6(%arg0: i32, %arg1: i32, %arg2: i32) -> (i32, i32) {
    %c0_i32 = arith.constant 0 : i32
    %c0_i32_0 = arith.constant 0 : i32
    return %c0_i32, %arg2 : i32, i32
  }
  func.func @transform_7(%arg0: i32, %arg1: i32, %arg2: i32) -> (i32, i32) {
    %c0_i32 = arith.constant 0 : i32
    %c0_i32_0 = arith.constant 0 : i32
    return %c0_i32, %arg2 : i32, i32
  }
  func.func @transform_8(%arg0: i32, %arg1: i32, %arg2: i32) -> (i32, i32) {
    %c0_i32 = arith.constant 0 : i32
    return %arg0, %arg2 : i32, i32
  }
}

</mosaic_0001>

<llo_original>
// kernel: tpu_custom_call.1
$region0: #{tpu_custom_call.1}
  #allocation0 [shape = 'u32[]', space=smem, size = 0x4, offset = 0x4, fixed_abs, tag = 'smem constant byte address 0x4 - core index']
  #allocation1 [shape = 'u32[144,128]{1,0:T(1,128)}', space=vmem, size = 0x12000, scoped, tag = 'internal scratch']
  #allocation2 [shape = 'bf16[16,768]{1,0:T(16,128)(2,1)}', space=vmem, size = 0x6000, scoped, tag = 'scratch operand']
  #allocation3 [shape = 'f32[16,1]{1,0:T(8,128)}', space=vmem, size = 0x2000, scoped, tag = 'scratch operand']
  #allocation4 [shape = 'f32[16,1]{1,0:T(8,128)}', space=vmem, size = 0x2000, scoped, tag = 'scratch operand']
  %s0 = inlined_call_operand.hbm [shape: bf16[16,768], index: 0, kind: input, shape index: {}]
  %s1 = inlined_call_operand.hbm [shape: bf16[16,768], index: 1, kind: input, shape index: {}]
  %s2 = inlined_call_operand.hbm [shape: bf16[16,768], index: 2, kind: input, shape index: {}]
  %s3 = inlined_call_operand.hbm [shape: bf16[16,768], index: 3, kind: input, shape index: {}]
  %s4 = inlined_call_operand.hbm [shape: bf16[768,768], index: 4, kind: input, shape index: {}]
  %s5 = inlined_call_operand.hbm [shape: f32[1,768], index: 5, kind: input, shape index: {}]
  %s6 = inlined_call_operand.hbm [shape: bf16[768,512], index: 6, kind: input, shape index: {}]
  %s7 = inlined_call_operand.hbm [shape: f32[1,512], index: 7, kind: input, shape index: {}]
  %s8 = inlined_call_operand.hbm [shape: bf16[16,512], index: 8, kind: output, shape index: {}]
  %s9 = sld [smem:[#allocation0]]
  $region109: #{tpu_custom_call.1} parent=0
    _
  %s11 = ssub.s32 1, %s9
  %s12 = scalar_select 0, %s11, %s9
  $region1: #{tpu_custom_call.1} parent=0
    #allocation5 [shape = 'u8[24576]{0}', space=vmem, size = 0x6000, scoped, tag = 'input window, operand 0, single buffered']
    #allocation6 [shape = 's32[2]{0}', space=sflag, size = 0x8, scoped, tag = 'scoped memory for tpu_custom_call.1']
    #allocation7 [shape = 's32[2]{0}', space=sflag, size = 0x8, scoped, tag = 'scoped memory for tpu_custom_call.1']
    #allocation8 [shape = 'u8[24576]{0}', space=vmem, size = 0x6000, scoped, tag = 'input window, operand 1, single buffered']
    #allocation9 [shape = 's32[1]{0}', space=sflag, size = 0x4, scoped, tag = 'scoped memory for tpu_custom_call.1']
    #allocation10 [shape = 'u8[24576]{0}', space=vmem, size = 0x6000, scoped, tag = 'input window, operand 2, single buffered']
    #allocation11 [shape = 'u8[24576]{0}', space=vmem, size = 0x6000, scoped, tag = 'input window, operand 3, single buffered']
    #allocation12 [shape = 's32[1]{0}', space=sflag, size = 0x4, scoped, tag = 'scoped memory for tpu_custom_call.1']
    #allocation13 [shape = 'u8[1179648]{0}', space=vmem, size = 0x120000, scoped, tag = 'input window, operand 4, single buffered']
    #allocation14 [shape = 'u8[3072]{0}', space=vmem, size = 0xc00, scoped, tag = 'input window, operand 5, single buffered']
    #allocation15 [shape = 's32[1]{0}', space=sflag, size = 0x4, scoped, tag = 'scoped memory for tpu_custom_call.1']
    #allocation16 [shape = 'u8[786432]{0}', space=vmem, size = 0xc0000, scoped, tag = 'input window, operand 6']
    #allocation17 [shape = 'u8[2048]{0}', space=vmem, size = 0x800, scoped, tag = 'input window, operand 7']
    #allocation18 [shape = 'u8[16384]{0}', space=vmem, size = 0x4000, scoped, tag = 'output window, operand 0']
    %13 = vsyncpa [#allocation6], 0
    %14 = vsyncpa [#allocation9], 0
    %15 = vsyncpa [#allocation12], 0
    %16 = vsyncpa [#allocation15], 0
    %17 = vsyncpa [#allocation7], 0
    %s18 = scalar_lea.sflag [#allocation7], 1
    %19 = vsyncpa %s18, 0
    loop: start=0, step=1, limit=6
    $region2: #{tpu_custom_call.1} parent=1 // loop_pre_header
      _
    $region3: #{tpu_custom_call.1} parent=1 // loop_header
      %s21 = sphi 0, %s25
      %p22 = scmp.ge.s32.totalorder %s21, 6
      %s28 = sphi 0, %s47
      %s29 = sphi 0, %s43
      %s30 = sphi 0, %s39
      %s31 = sphi 0, %s28
      %s32 = sphi 0, %s29
      %s33 = sphi 0, %s30
      %s34 = sphi 0, %s31
      %s35 = sphi 0, %s32
      %s36 = sphi 0, %s33
      %s50 = sphi 0, %s52
      %s53 = sphi 0, %s50
      %s54 = sphi 0, %s53
      %s70 = sphi 0, %s54
      %s76 = sphi 0, %s78
      %s79 = sphi 0, %s76
      %s80 = sphi 0, %s79
      %s96 = sphi 0, %s80
      %s102 = sphi 0, %s104
      %s105 = sphi 0, %s102
      %s106 = sphi 0, %s105
      %s122 = sphi 0, %s106
      %s128 = sphi 0, %s130
      %s131 = sphi 0, %s128
      %s132 = sphi 0, %s131
      %s148 = sphi 0, %s132
      %s152 = sphi 0, %s152
      %s154 = sphi 0, %s152
      %s155 = sphi 0, %s154
      %s169 = sphi 0, %s155
      %s173 = sphi 0, %s173
      %s175 = sphi 0, %s173
      %s176 = sphi 0, %s175
      %s190 = sphi 0, %s176
      %s196 = sphi 0, %s198
      %s199 = sphi 0, %s196
      %s200 = sphi 0, %s199
      %s216 = sphi 0, %s200
      %s222 = sphi 0, %s224
      %s225 = sphi 0, %s222
      %s226 = sphi 0, %s225
      %s242 = sphi 0, %s226
      %s250 = sphi 0, %s252
      %s253 = sphi 0, %s250
      %s254 = sphi 0, %s253
      %s270 = sphi 0, %s254
    $region4: #{tpu_custom_call.1} parent=1 // loop_header_branch
      %24 = sbr.rel (%p22) target = $region8
    $region5: #{tpu_custom_call.1} parent=1 // loop_body
      %s26 = ssub.s32 %s21, 1
      %s27 = ssub.s32 %s21, 2
      %s37 = sadd.s32 1, %s30
      %p38 = scmp.ge.s32.totalorder %s37, 2
      %s39 = scalar_select %p38, 0, %s37
      %s40 = sadd.s32 1, %s29
      %s41 = scalar_select %p38, %s40, %s29
      %p42 = scmp.ge.s32.totalorder %s41, 2
      %s43 = scalar_select %p42, 0, %s41
      %s44 = sadd.s32 1, %s28
      %s45 = scalar_select %p42, %s44, %s28
      %p46 = scmp.ge.s32.totalorder %s45, 1
      %s47 = scalar_select %p46, 0, %s45
      %s48 = ssub.s32 %s28, %s47
      %p49 = scmp.eq.s32.totalorder %s48, 0
      %s51 = sadd.s32 %s50, 1
      %s52 = scalar_select %p49, %s50, %s51
      %p55 = pneg %p49
      %p56 = scmp.eq.s32.totalorder %s21, 3
      %p57 = por %p55, %p56
      %p58 = scmp.ne.s32.totalorder %s50, %s53
      %p59 = scmp.eq.s32.totalorder %s21, 0
      %p60 = por %p58, %p59
      %p61 = scmp.ne.s32.totalorder %s50, %s53
      %p62 = scmp.eq.s32.totalorder %s26, 3
      %p63 = por %p61, %p62
      %p64 = scmp.ne.s32.totalorder %s53, %s54
      %p65 = scmp.eq.s32.totalorder %s26, 0
      %p66 = por %p64, %p65
      %p67 = scmp.ne.s32.totalorder %s53, %s54
      %p68 = scmp.eq.s32.totalorder %s27, 3
      %p69 = por %p67, %p68
      %p71 = scmp.ne.s32.totalorder %s54, %s70
      %p72 = scmp.eq.s32.totalorder %s27, 0
      %p73 = por %p71, %p72
      %s74 = ssub.s32 %s28, %s47
      %p75 = scmp.eq.s32.totalorder %s74, 0
      %s77 = sadd.s32 %s76, 1
      %s78 = scalar_select %p75, %s76, %s77
      %p81 = pneg %p75
      %p82 = scmp.eq.s32.totalorder %s21, 3
      %p83 = por %p81, %p82
      %p84 = scmp.ne.s32.totalorder %s76, %s79
      %p85 = scmp.eq.s32.totalorder %s21, 0
      %p86 = por %p84, %p85
      %p87 = scmp.ne.s32.totalorder %s76, %s79
      %p88 = scmp.eq.s32.totalorder %s26, 3
      %p89 = por %p87, %p88
      %p90 = scmp.ne.s32.totalorder %s79, %s80
      %p91 = scmp.eq.s32.totalorder %s26, 0
      %p92 = por %p90, %p91
      %p93 = scmp.ne.s32.totalorder %s79, %s80
      %p94 = scmp.eq.s32.totalorder %s27, 3
      %p95 = por %p93, %p94
      %p97 = scmp.ne.s32.totalorder %s80, %s96
      %p98 = scmp.eq.s32.totalorder %s27, 0
      %p99 = por %p97, %p98
      %s100 = ssub.s32 %s28, %s47
      %p101 = scmp.eq.s32.totalorder %s100, 0
      %s103 = sadd.s32 %s102, 1
      %s104 = scalar_select %p101, %s102, %s103
      %p107 = pneg %p101
      %p108 = scmp.eq.s32.totalorder %s21, 3
      %p109 = por %p107, %p108
      %p110 = scmp.ne.s32.totalorder %s102, %s105
      %p111 = scmp.eq.s32.totalorder %s21, 0
      %p112 = por %p110, %p111
      %p113 = scmp.ne.s32.totalorder %s102, %s105
      %p114 = scmp.eq.s32.totalorder %s26, 3
      %p115 = por %p113, %p114
      %p116 = scmp.ne.s32.totalorder %s105, %s106
      %p117 = scmp.eq.s32.totalorder %s26, 0
      %p118 = por %p116, %p117
      %p119 = scmp.ne.s32.totalorder %s105, %s106
      %p120 = scmp.eq.s32.totalorder %s27, 3
      %p121 = por %p119, %p120
      %p123 = scmp.ne.s32.totalorder %s106, %s122
      %p124 = scmp.eq.s32.totalorder %s27, 0
      %p125 = por %p123, %p124
      %s126 = ssub.s32 %s28, %s47
      %p127 = scmp.eq.s32.totalorder %s126, 0
      %s129 = sadd.s32 %s128, 1
      %s130 = scalar_select %p127, %s128, %s129
      %p133 = pneg %p127
      %p134 = scmp.eq.s32.totalorder %s21, 3
      %p135 = por %p133, %p134
      %p136 = scmp.ne.s32.totalorder %s128, %s131
      %p137 = scmp.eq.s32.totalorder %s21, 0
      %p138 = por %p136, %p137
      %p139 = scmp.ne.s32.totalorder %s128, %s131
      %p140 = scmp.eq.s32.totalorder %s26, 3
      %p141 = por %p139, %p140
      %p142 = scmp.ne.s32.totalorder %s131, %s132
      %p143 = scmp.eq.s32.totalorder %s26, 0
      %p144 = por %p142, %p143
      %p145 = scmp.ne.s32.totalorder %s131, %s132
      %p146 = scmp.eq.s32.totalorder %s27, 3
      %p147 = por %p145, %p146
      %p149 = scmp.ne.s32.totalorder %s132, %s148
      %p150 = scmp.eq.s32.totalorder %s27, 0
      %p151 = por %p149, %p150
      %s153 = sadd.s32 %s152, 1
      %p156 = scmp.eq.s32.totalorder %s21, 3
      %p157 = scmp.ne.s32.totalorder %s152, %s154
      %p158 = scmp.eq.s32.totalorder %s21, 0
      %p159 = por %p157, %p158
      %p160 = scmp.ne.s32.totalorder %s152, %s154
      %p161 = scmp.eq.s32.totalorder %s26, 3
      %p162 = por %p160, %p161
      %p163 = scmp.ne.s32.totalorder %s154, %s155
      %p164 = scmp.eq.s32.totalorder %s26, 0
      %p165 = por %p163, %p164
      %p166 = scmp.ne.s32.totalorder %s154, %s155
      %p167 = scmp.eq.s32.totalorder %s27, 3
      %p168 = por %p166, %p167
      %p170 = scmp.ne.s32.totalorder %s155, %s169
      %p171 = scmp.eq.s32.totalorder %s27, 0
      %p172 = por %p170, %p171
      %s174 = sadd.s32 %s173, 1
      %p177 = scmp.eq.s32.totalorder %s21, 3
      %p178 = scmp.ne.s32.totalorder %s173, %s175
      %p179 = scmp.eq.s32.totalorder %s21, 0
      %p180 = por %p178, %p179
      %p181 = scmp.ne.s32.totalorder %s173, %s175
      %p182 = scmp.eq.s32.totalorder %s26, 3
      %p183 = por %p181, %p182
      %p184 = scmp.ne.s32.totalorder %s175, %s176
      %p185 = scmp.eq.s32.totalorder %s26, 0
      %p186 = por %p184, %p185
      %p187 = scmp.ne.s32.totalorder %s175, %s176
      %p188 = scmp.eq.s32.totalorder %s27, 3
      %p189 = por %p187, %p188
      %p191 = scmp.ne.s32.totalorder %s176, %s190
      %p192 = scmp.eq.s32.totalorder %s27, 0
      %p193 = por %p191, %p192
      %s194 = ssub.s32 %s30, %s39
      %p195 = scmp.eq.s32.totalorder %s194, 0
      %s197 = sadd.s32 %s196, 1
      %s198 = scalar_select %p195, %s196, %s197
      %p201 = pneg %p195
      %p202 = scmp.eq.s32.totalorder %s21, 3
      %p203 = por %p201, %p202
      %p204 = scmp.ne.s32.totalorder %s196, %s199
      %p205 = scmp.eq.s32.totalorder %s21, 0
      %p206 = por %p204, %p205
      %p207 = scmp.ne.s32.totalorder %s196, %s199
      %p208 = scmp.eq.s32.totalorder %s26, 3
      %p209 = por %p207, %p208
      %p210 = scmp.ne.s32.totalorder %s199, %s200
      %p211 = scmp.eq.s32.totalorder %s26, 0
      %p212 = por %p210, %p211
      %p213 = scmp.ne.s32.totalorder %s199, %s200
      %p214 = scmp.eq.s32.totalorder %s27, 3
      %p215 = por %p213, %p214
      %p217 = scmp.ne.s32.totalorder %s200, %s216
      %p218 = scmp.eq.s32.totalorder %s27, 0
      %p219 = por %p217, %p218
      %s220 = ssub.s32 %s30, %s39
      %p221 = scmp.eq.s32.totalorder %s220, 0
      %s223 = sadd.s32 %s222, 1
      %s224 = scalar_select %p221, %s222, %s223
      %p227 = pneg %p221
      %p228 = scmp.eq.s32.totalorder %s21, 3
      %p229 = por %p227, %p228
      %p230 = scmp.ne.s32.totalorder %s222, %s225
      %p231 = scmp.eq.s32.totalorder %s21, 0
      %p232 = por %p230, %p231
      %p233 = scmp.ne.s32.totalorder %s222, %s225
      %p234 = scmp.eq.s32.totalorder %s26, 3
      %p235 = por %p233, %p234
      %p236 = scmp.ne.s32.totalorder %s225, %s226
      %p237 = scmp.eq.s32.totalorder %s26, 0
      %p238 = por %p236, %p237
      %p239 = scmp.ne.s32.totalorder %s225, %s226
      %p240 = scmp.eq.s32.totalorder %s27, 3
      %p241 = por %p239, %p240
      %p243 = scmp.ne.s32.totalorder %s226, %s242
      %p244 = scmp.eq.s32.totalorder %s27, 0
      %p245 = por %p243, %p244
      %s246 = ssub.s32 %s28, %s47
      %s247 = ssub.s32 %s30, %s39
      %s248 = sor.u32 %s246, %s247
      %p249 = scmp.eq.s32.totalorder %s248, 0
      %s251 = sadd.s32 %s250, 1
      %s252 = scalar_select %p249, %s250, %s251
      %p255 = pneg %p249
      %p256 = scmp.eq.s32.totalorder %s21, 3
      %p257 = por %p255, %p256
      %p258 = scmp.ne.s32.totalorder %s250, %s253
      %p259 = scmp.eq.s32.totalorder %s21, 0
      %p260 = por %p258, %p259
      %p261 = scmp.ne.s32.totalorder %s250, %s253
      %p262 = scmp.eq.s32.totalorder %s26, 3
      %p263 = por %p261, %p262
      %p264 = scmp.ne.s32.totalorder %s253, %s254
      %p265 = scmp.eq.s32.totalorder %s26, 0
      %p266 = por %p264, %p265
      %p267 = scmp.ne.s32.totalorder %s253, %s254
      %p268 = scmp.eq.s32.totalorder %s27, 3
      %p269 = por %p267, %p268
      %p271 = scmp.ne.s32.totalorder %s254, %s270
      %p272 = scmp.eq.s32.totalorder %s27, 0
      %p273 = por %p271, %p272
      %p274 = scmp.le.s32.totalorder 1, %s21
      %p275 = scmp.lt.s32.totalorder %s21, 5
      %p276 = pnand %p274, %p275
      %p277 = pneg %p276
      // Predicated region
      $region9: #{tpu_custom_call.1} parent=5 // pred_check
        _
      $region10: #{tpu_custom_call.1} parent=5 // pred_check_branch
        %279 = sbr.rel (%p276) target = $region12
      $region11: #{tpu_custom_call.1} parent=5 // pred_region
        %s280 = ssub.s32 %s21, 1
        // Predicated region
        $region13: #{tpu_custom_call.1} parent=11 // pred_check
          %p281 = pneg %p66
        $region14: #{tpu_custom_call.1} parent=11 // pred_check_branch
          %283 = sbr.rel (%p281) target = $region16
        $region15: #{tpu_custom_call.1} parent=11 // pred_region
          %s284 = smul.u32 2, %s31
          %s286 = ssub.s32 768, 768
          %287 = vsyncadd [#allocation6], %s286
          %s288 = smul.addr %s284, 6
          %s289 = smul.addr %s288, 64
          %s290 = scalar_lea.hbm %s0, %s289
          %s291 = sshll.u32 [#allocation5], 4
          %s292 = int_to_ptr.vmem [resolvable:$true] %s291
          %297 = dma.hbm_to_vmem [thread:$0]  %s290, 768, %s292, [#allocation6], 384, 384, 24
        $region16: #{tpu_custom_call.1} parent=11 // pred_fallthru
          _
        // Predicated region
        $region17: #{tpu_custom_call.1} parent=11 // pred_check
          %p298 = pneg %p92
        $region18: #{tpu_custom_call.1} parent=11 // pred_check_branch
          %300 = sbr.rel (%p298) target = $region20
        $region19: #{tpu_custom_call.1} parent=11 // pred_region
          %s301 = smul.u32 2, %s31
          %s303 = ssub.s32 768, 768
          %304 = vsyncadd [#allocation9], %s303
          %s305 = smul.addr %s301, 6
          %s306 = smul.addr %s305, 64
          %s307 = scalar_lea.hbm %s1, %s306
          %s308 = sshll.u32 [#allocation8], 4
          %s309 = int_to_ptr.vmem [resolvable:$true] %s308
          %314 = dma.hbm_to_vmem [thread:$0]  %s307, 768, %s309, [#allocation9], 384, 384, 24
        $region20: #{tpu_custom_call.1} parent=11 // pred_fallthru
          _
        // Predicated region
        $region21: #{tpu_custom_call.1} parent=11 // pred_check
          %p315 = pneg %p118
        $region22: #{tpu_custom_call.1} parent=11 // pred_check_branch
          %317 = sbr.rel (%p315) target = $region24
        $region23: #{tpu_custom_call.1} parent=11 // pred_region
          %s318 = smul.u32 2, %s31
          %s320 = ssub.s32 768, 768
          %321 = vsyncadd [#allocation9], %s320
          %s322 = smul.addr %s318, 6
          %s323 = smul.addr %s322, 64
          %s324 = scalar_lea.hbm %s2, %s323
          %s325 = sshll.u32 [#allocation10], 4
          %s326 = int_to_ptr.vmem [resolvable:$true] %s325
          %331 = dma.hbm_to_vmem [thread:$0]  %s324, 768, %s326, [#allocation9], 384, 384, 24
        $region24: #{tpu_custom_call.1} parent=11 // pred_fallthru
          _
        // Predicated region
        $region25: #{tpu_custom_call.1} parent=11 // pred_check
          %p332 = pneg %p144
        $region26: #{tpu_custom_call.1} parent=11 // pred_check_branch
          %334 = sbr.rel (%p332) target = $region28
        $region27: #{tpu_custom_call.1} parent=11 // pred_region
          %s335 = smul.u32 2, %s31
          %s337 = ssub.s32 768, 768
          %338 = vsyncadd [#allocation12], %s337
          %s339 = smul.addr %s335, 6
          %s340 = smul.addr %s339, 64
          %s341 = scalar_lea.hbm %s3, %s340
          %s342 = sshll.u32 [#allocation11], 4
          %s343 = int_to_ptr.vmem [resolvable:$true] %s342
          %348 = dma.hbm_to_vmem [thread:$0]  %s341, 768, %s343, [#allocation12], 384, 384, 24
        $region28: #{tpu_custom_call.1} parent=11 // pred_fallthru
          _
        // Predicated region
        $region29: #{tpu_custom_call.1} parent=11 // pred_check
          %p349 = pneg %p165
        $region30: #{tpu_custom_call.1} parent=11 // pred_check_branch
          %351 = sbr.rel (%p349) target = $region32
        $region31: #{tpu_custom_call.1} parent=11 // pred_region
          %s353 = ssub.s32 36864, 36864
          %354 = vsyncadd [#allocation12], %s353
          %s355 = sshll.u32 [#allocation13], 4
          %s356 = int_to_ptr.vmem [resolvable:$true] %s355
          %361 = dma.hbm_to_vmem [thread:$0]  %s4, 36864, %s356, [#allocation12], 384, 384, 24
        $region32: #{tpu_custom_call.1} parent=11 // pred_fallthru
          _
        // Predicated region
        $region33: #{tpu_custom_call.1} parent=11 // pred_check
          %p362 = pneg %p186
        $region34: #{tpu_custom_call.1} parent=11 // pred_check_branch
          %364 = sbr.rel (%p362) target = $region36
        $region35: #{tpu_custom_call.1} parent=11 // pred_region
          %s366 = ssub.s32 96, 96
          %367 = vsyncadd [#allocation15], %s366
          %s369 = sshll.u32 [#allocation14], 4
          %s370 = int_to_ptr.vmem [resolvable:$true] %s369
          %372 = dma.hbm_to_vmem [thread:$0]  %s5, 96, %s370, [#allocation15]
        $region36: #{tpu_custom_call.1} parent=11 // pred_fallthru
          _
      $region12: #{tpu_custom_call.1} parent=5 // pred_fallthru
        _
      %p373 = scmp.lt.s32.totalorder %s21, 4
      // Predicated region
      $region37: #{tpu_custom_call.1} parent=5 // pred_check
        %p374 = pneg %p373
      $region38: #{tpu_custom_call.1} parent=5 // pred_check_branch
        %376 = sbr.rel (%p374) target = $region40
      $region39: #{tpu_custom_call.1} parent=5 // pred_region
        // Predicated region
        $region41: #{tpu_custom_call.1} parent=39 // pred_check
          %p377 = pneg %p206
        $region42: #{tpu_custom_call.1} parent=39 // pred_check_branch
          %379 = sbr.rel (%p377) target = $region44
        $region43: #{tpu_custom_call.1} parent=39 // pred_region
          %s380 = sand.u32 %s21, 1
          %s381 = scalar_lea.sflag [#allocation6], %s380
          %s382 = sand.u32 %s196, 1
          %s383 = smul.addr %s382, 768
          %s384 = scalar_lea.vmem [#allocation16], %s383
          %s385 = smul.u32 2, %s30
          %s387 = ssub.s32 12288, 12288
          %388 = vsyncadd %s381, %s387
          %s389 = smul.addr %s385, 64
          %s390 = scalar_lea.hbm %s6, %s389
          %s391 = sshll.u32 %s384, 4
          %s392 = int_to_ptr.vmem [resolvable:$true] %s391
          %397 = dma.hbm_to_vmem [thread:$0]  %s390, 12288, %s392, %s381, 256, 128, 8
        $region44: #{tpu_custom_call.1} parent=39 // pred_fallthru
          _
        // Predicated region
        $region45: #{tpu_custom_call.1} parent=39 // pred_check
          %p398 = pneg %p232
        $region46: #{tpu_custom_call.1} parent=39 // pred_check_branch
          %400 = sbr.rel (%p398) target = $region48
        $region47: #{tpu_custom_call.1} parent=39 // pred_region
          %s401 = sand.u32 %s21, 1
          %s402 = scalar_lea.sflag [#allocation6], %s401
          %s403 = sand.u32 %s222, 1
          %s404 = smul.addr %s403, 2
          %s405 = scalar_lea.vmem [#allocation17], %s404
          %s406 = smul.u32 2, %s30
          %s408 = ssub.s32 32, 32
          %409 = vsyncadd %s402, %s408
          %s410 = smul.addr %s406, 16
          %s411 = scalar_lea.hbm %s7, %s410
          %s413 = sshll.u32 %s405, 4
          %s414 = int_to_ptr.vmem [resolvable:$true] %s413
          %416 = dma.hbm_to_vmem [thread:$0]  %s411, 32, %s414, %s402
        $region48: #{tpu_custom_call.1} parent=39 // pred_fallthru
          _
      $region40: #{tpu_custom_call.1} parent=5 // pred_fallthru
        _
      %p417 = scmp.le.s32.totalorder 1, %s21
      %p418 = scmp.lt.s32.totalorder %s21, 5
      %p419 = pnand %p417, %p418
      %p420 = pneg %p419
      // Predicated region
      $region49: #{tpu_custom_call.1} parent=5 // pred_check
        _
      $region50: #{tpu_custom_call.1} parent=5 // pred_check_branch
        %422 = sbr.rel (%p419) target = $region52
      $region51: #{tpu_custom_call.1} parent=5 // pred_region
        %s423 = ssub.s32 %s21, 1
        // Predicated region
        $region53: #{tpu_custom_call.1} parent=51 // pred_check
          %p424 = pneg %p66
        $region54: #{tpu_custom_call.1} parent=51 // pred_check_branch
          %426 = sbr.rel (%p424) target = $region56
        $region55: #{tpu_custom_call.1} parent=51 // pred_region
          %427 = dma.done [#allocation6], 768
        $region56: #{tpu_custom_call.1} parent=51 // pred_fallthru
          _
        // Predicated region
        $region57: #{tpu_custom_call.1} parent=51 // pred_check
          %p428 = pneg %p92
        $region58: #{tpu_custom_call.1} parent=51 // pred_check_branch
          %430 = sbr.rel (%p428) target = $region60
        $region59: #{tpu_custom_call.1} parent=51 // pred_region
          %431 = dma.done [#allocation9], 768
        $region60: #{tpu_custom_call.1} parent=51 // pred_fallthru
          _
        // Predicated region
        $region61: #{tpu_custom_call.1} parent=51 // pred_check
          %p432 = pneg %p118
        $region62: #{tpu_custom_call.1} parent=51 // pred_check_branch
          %434 = sbr.rel (%p432) target = $region64
        $region63: #{tpu_custom_call.1} parent=51 // pred_region
          %435 = dma.done [#allocation9], 768
        $region64: #{tpu_custom_call.1} parent=51 // pred_fallthru
          _
        // Predicated region
        $region65: #{tpu_custom_call.1} parent=51 // pred_check
          %p436 = pneg %p144
        $region66: #{tpu_custom_call.1} parent=51 // pred_check_branch
          %438 = sbr.rel (%p436) target = $region68
        $region67: #{tpu_custom_call.1} parent=51 // pred_region
          %439 = dma.done [#allocation12], 768
        $region68: #{tpu_custom_call.1} parent=51 // pred_fallthru
          _
        // Predicated region
        $region69: #{tpu_custom_call.1} parent=51 // pred_check
          %p440 = pneg %p165
        $region70: #{tpu_custom_call.1} parent=51 // pred_check_branch
          %442 = sbr.rel (%p440) target = $region72
        $region71: #{tpu_custom_call.1} parent=51 // pred_region
          %443 = dma.done [#allocation12], 36864
        $region72: #{tpu_custom_call.1} parent=51 // pred_fallthru
          _
        // Predicated region
        $region73: #{tpu_custom_call.1} parent=51 // pred_check
          %p444 = pneg %p186
        $region74: #{tpu_custom_call.1} parent=51 // pred_check_branch
          %446 = sbr.rel (%p444) target = $region76
        $region75: #{tpu_custom_call.1} parent=51 // pred_region
          %447 = dma.done [#allocation15], 96
        $region76: #{tpu_custom_call.1} parent=51 // pred_fallthru
          _
        %s448 = sand.u32 %s26, 1
        %s449 = scalar_lea.sflag [#allocation6], %s448
        %s450 = sand.u32 %s199, 1
        %s451 = smul.addr %s450, 768
        %s452 = scalar_lea.vmem [#allocation16], %s451
        // Predicated region
        $region77: #{tpu_custom_call.1} parent=51 // pred_check
          %p453 = pneg %p212
        $region78: #{tpu_custom_call.1} parent=51 // pred_check_branch
          %455 = sbr.rel (%p453) target = $region80
        $region79: #{tpu_custom_call.1} parent=51 // pred_region
          %456 = dma.done %s449, 12288
        $region80: #{tpu_custom_call.1} parent=51 // pred_fallthru
          _
        %s457 = sand.u32 %s26, 1
        %s458 = scalar_lea.sflag [#allocation6], %s457
        %s459 = sand.u32 %s225, 1
        %s460 = smul.addr %s459, 2
        %s461 = scalar_lea.vmem [#allocation17], %s460
        // Predicated region
        $region81: #{tpu_custom_call.1} parent=51 // pred_check
          %p462 = pneg %p238
        $region82: #{tpu_custom_call.1} parent=51 // pred_check_branch
          %464 = sbr.rel (%p462) target = $region84
        $region83: #{tpu_custom_call.1} parent=51 // pred_region
          %465 = dma.done %s458, 32
        $region84: #{tpu_custom_call.1} parent=51 // pred_fallthru
          _
        %p466 = pneg %p66
        %p467 = pneg %p63
        %p468 = pneg %p92
        %p469 = pneg %p89
        %p470 = pneg %p118
        %p471 = pneg %p115
        %p472 = pneg %p144
        %p473 = pneg %p141
        %p474 = pneg %p165
        %p475 = pneg %p162
        %p476 = pneg %p186
        %p477 = pneg %p183
        %s478 = sand.u32 %s26, 1
        %s479 = scalar_lea.sflag [#allocation6], %s478
        %s480 = sand.u32 %s199, 1
        %s481 = smul.addr %s480, 768
        %s482 = scalar_lea.vmem [#allocation16], %s481
        %p483 = pneg %p212
        %p484 = pneg %p209
        %s485 = sand.u32 %s26, 1
        %s486 = scalar_lea.sflag [#allocation6], %s485
        %s487 = sand.u32 %s225, 1
        %s488 = smul.addr %s487, 2
        %s489 = scalar_lea.vmem [#allocation17], %s488
        %p490 = pneg %p238
        %p491 = pneg %p235
        %p492 = pneg %p266
        %p493 = pneg %p263
        %s494 = sand.u32 %s253, 1
        %s495 = scalar_lea.sflag [#allocation7], %s494
        %s496 = sand.u32 %s253, 1
        %s497 = smul.addr %s496, 16
        %s498 = scalar_lea.vmem [#allocation18], %s497
        %s499 = smul.u32 2, %s31
        %s500 = smul.u32 2, %s31
        %s501 = smul.u32 2, %s31
        %s502 = smul.u32 2, %s31
        %s503 = smul.u32 2, %s33
        %s504 = smul.u32 2, %s33
        %s505 = smul.u32 2, %s31
        %s506 = smul.u32 2, %s33
        %p507 = scmp.eq.s32.totalorder %s32, 0
        %p508 = scmp.eq.s32.totalorder %s33, 0
        %p509 = pnand %p507, %p508
        %p510 = pneg %p509
        // Predicated region
        $region85: #{tpu_custom_call.1} parent=51 // pred_check
          _
        $region86: #{tpu_custom_call.1} parent=51 // pred_check_branch
          %512 = sbr.rel (%p509) target = $region88
        $region87: #{tpu_custom_call.1} parent=51 // pred_region
          %v513 = vld [vmem:[#allocation5] sm:$0xff]
          %v514 = vld [vmem:[#allocation5 + $0x8] sm:$0xff]
          %v515 = vld [vmem:[#allocation5 + $0x10] sm:$0xff]
          %v516 = vld [vmem:[#allocation5 + $0x18] sm:$0xff]
          %v517 = vld [vmem:[#allocation5 + $0x20] sm:$0xff]
          %v518 = vld [vmem:[#allocation5 + $0x28] sm:$0xff]
          %v519 = vld [vmem:[#allocation8] sm:$0xff]
          %v520 = vld [vmem:[#allocation8 + $0x8] sm:$0xff]
          %v521 = vld [vmem:[#allocation8 + $0x10] sm:$0xff]
          %v522 = vld [vmem:[#allocation8 + $0x18] sm:$0xff]
          %v523 = vld [vmem:[#allocation8 + $0x20] sm:$0xff]
          %v524 = vld [vmem:[#allocation8 + $0x28] sm:$0xff]
          %v525 = vadd.bf16 %v513, %v519
          %v526 = vadd.bf16 %v514, %v520
          %v527 = vadd.bf16 %v515, %v521
          %v528 = vadd.bf16 %v516, %v522
          %v529 = vadd.bf16 %v517, %v523
          %v530 = vadd.bf16 %v518, %v524
          %v531 = vld [vmem:[#allocation10] sm:$0xff]
          %v532 = vld [vmem:[#allocation10 + $0x8] sm:$0xff]
          %v533 = vld [vmem:[#allocation10 + $0x10] sm:$0xff]
          %v534 = vld [vmem:[#allocation10 + $0x18] sm:$0xff]
          %v535 = vld [vmem:[#allocation10 + $0x20] sm:$0xff]
          %v536 = vld [vmem:[#allocation10 + $0x28] sm:$0xff]
          %v537 = vld [vmem:[#allocation11] sm:$0xff]
          %v538 = vld [vmem:[#allocation11 + $0x8] sm:$0xff]
          %v539 = vld [vmem:[#allocation11 + $0x10] sm:$0xff]
          %v540 = vld [vmem:[#allocation11 + $0x18] sm:$0xff]
          %v541 = vld [vmem:[#allocation11 + $0x20] sm:$0xff]
          %v542 = vld [vmem:[#allocation11 + $0x28] sm:$0xff]
          %v543 = vadd.bf16 %v531, %v537
          %v544 = vadd.bf16 %v532, %v538
          %v545 = vadd.bf16 %v533, %v539
          %v546 = vadd.bf16 %v534, %v540
          %v547 = vadd.bf16 %v535, %v541
          %v548 = vadd.bf16 %v536, %v542
          %v549 = vadd.bf16 %v525, %v543
          %v550 = vadd.bf16 %v526, %v544
          %v551 = vadd.bf16 %v527, %v545
          %v552 = vadd.bf16 %v528, %v546
          %v553 = vadd.bf16 %v529, %v547
          %v554 = vadd.bf16 %v530, %v548
          %v555 = vld [vmem:[#allocation13] sm:$0xff]
          %v556 = vld [vmem:[#allocation13 + $0x8] sm:$0xff]
          %v557 = vld [vmem:[#allocation13 + $0x10] sm:$0xff]
          %v558 = vld [vmem:[#allocation13 + $0x18] sm:$0xff]
          %v559 = vld [vmem:[#allocation13 + $0x20] sm:$0xff]
          %v560 = vld [vmem:[#allocation13 + $0x28] sm:$0xff]
          %v561 = vld [vmem:[#allocation13 + $0x30] sm:$0xff]
          %v562 = vld [vmem:[#allocation13 + $0x38] sm:$0xff]
          %v563 = vld [vmem:[#allocation13 + $0x40] sm:$0xff]
          %v564 = vld [vmem:[#allocation13 + $0x48] sm:$0xff]
          %v565 = vld [vmem:[#allocation13 + $0x50] sm:$0xff]
          %v566 = vld [vmem:[#allocation13 + $0x58] sm:$0xff]
          %v567 = vld [vmem:[#allocation13 + $0x60] sm:$0xff]
          %v568 = vld [vmem:[#allocation13 + $0x68] sm:$0xff]
          %v569 = vld [vmem:[#allocation13 + $0x70] sm:$0xff]
          %v570 = vld [vmem:[#allocation13 + $0x78] sm:$0xff]
          %v571 = vld [vmem:[#allocation13 + $0x80] sm:$0xff]
          %v572 = vld [vmem:[#allocation13 + $0x88] sm:$0xff]
          %v573 = vld [vmem:[#allocation13 + $0x90] sm:$0xff]
          %v574 = vld [vmem:[#allocation13 + $0x98] sm:$0xff]
          %v575 = vld [vmem:[#allocation13 + $0xa0] sm:$0xff]
          %v576 = vld [vmem:[#allocation13 + $0xa8] sm:$0xff]
          %v577 = vld [vmem:[#allocation13 + $0xb0] sm:$0xff]
          %v578 = vld [vmem:[#allocation13 + $0xb8] sm:$0xff]
          %v579 = vld [vmem:[#allocation13 + $0xc0] sm:$0xff]
          %v580 = vld [vmem:[#allocation13 + $0xc8] sm:$0xff]
          %v581 = vld [vmem:[#allocation13 + $0xd0] sm:$0xff]
          %v582 = vld [vmem:[#allocation13 + $0xd8] sm:$0xff]
          %v583 = vld [vmem:[#allocation13 + $0xe0] sm:$0xff]
          %v584 = vld [vmem:[#allocation13 + $0xe8] sm:$0xff]
          %v585 = vld [vmem:[#allocation13 + $0xf0] sm:$0xff]
          %v586 = vld [vmem:[#allocation13 + $0xf8] sm:$0xff]
          %v587 = vld [vmem:[#allocation13 + $0x100] sm:$0xff]
          %v588 = vld [vmem:[#allocation13 + $0x108] sm:$0xff]
          %v589 = vld [vmem:[#allocation13 + $0x110] sm:$0xff]
          %v590 = vld [vmem:[#allocation13 + $0x118] sm:$0xff]
          %v591 = vld [vmem:[#allocation13 + $0x120] sm:$0xff]
          %v592 = vld [vmem:[#allocation13 + $0x128] sm:$0xff]
          %v593 = vld [vmem:[#allocation13 + $0x130] sm:$0xff]
          %v594 = vld [vmem:[#allocation13 + $0x138] sm:$0xff]
          %v595 = vld [vmem:[#allocation13 + $0x140] sm:$0xff]
          %v596 = vld [vmem:[#allocation13 + $0x148] sm:$0xff]
          %v597 = vld [vmem:[#allocation13 + $0x150] sm:$0xff]
          %v598 = vld [vmem:[#allocation13 + $0x158] sm:$0xff]
          %v599 = vld [vmem:[#allocation13 + $0x160] sm:$0xff]
          %v600 = vld [vmem:[#allocation13 + $0x168] sm:$0xff]
          %v601 = vld [vmem:[#allocation13 + $0x170] sm:$0xff]
          %v602 = vld [vmem:[#allocation13 + $0x178] sm:$0xff]
          %v603 = vld [vmem:[#allocation13 + $0x180] sm:$0xff]
          %v604 = vld [vmem:[#allocation13 + $0x188] sm:$0xff]
          %v605 = vld [vmem:[#allocation13 + $0x190] sm:$0xff]
          %v606 = vld [vmem:[#allocation13 + $0x198] sm:$0xff]
          %v607 = vld [vmem:[#allocation13 + $0x1a0] sm:$0xff]
          %v608 = vld [vmem:[#allocation13 + $0x1a8] sm:$0xff]
          %v609 = vld [vmem:[#allocation13 + $0x1b0] sm:$0xff]
          %v610 = vld [vmem:[#allocation13 + $0x1b8] sm:$0xff]
          %v611 = vld [vmem:[#allocation13 + $0x1c0] sm:$0xff]
          %v612 = vld [vmem:[#allocation13 + $0x1c8] sm:$0xff]
          %v613 = vld [vmem:[#allocation13 + $0x1d0] sm:$0xff]
          %v614 = vld [vmem:[#allocation13 + $0x1d8] sm:$0xff]
          %v615 = vld [vmem:[#allocation13 + $0x1e0] sm:$0xff]
          %v616 = vld [vmem:[#allocation13 + $0x1e8] sm:$0xff]
          %v617 = vld [vmem:[#allocation13 + $0x1f0] sm:$0xff]
          %v618 = vld [vmem:[#allocation13 + $0x1f8] sm:$0xff]
          %v619 = vld [vmem:[#allocation13 + $0x200] sm:$0xff]
          %v620 = vld [vmem:[#allocation13 + $0x208] sm:$0xff]
          %v621 = vld [vmem:[#allocation13 + $0x210] sm:$0xff]
          %v622 = vld [vmem:[#allocation13 + $0x218] sm:$0xff]
          %v623 = vld [vmem:[#allocation13 + $0x220] sm:$0xff]
          %v624 = vld [vmem:[#allocation13 + $0x228] sm:$0xff]
          %v625 = vld [vmem:[#allocation13 + $0x230] sm:$0xff]
          %v626 = vld [vmem:[#allocation13 + $0x238] sm:$0xff]
          %v627 = vld [vmem:[#allocation13 + $0x240] sm:$0xff]
          %v628 = vld [vmem:[#allocation13 + $0x248] sm:$0xff]
          %v629 = vld [vmem:[#allocation13 + $0x250] sm:$0xff]
          %v630 = vld [vmem:[#allocation13 + $0x258] sm:$0xff]
          %v631 = vld [vmem:[#allocation13 + $0x260] sm:$0xff]
          %v632 = vld [vmem:[#allocation13 + $0x268] sm:$0xff]
          %v633 = vld [vmem:[#allocation13 + $0x270] sm:$0xff]
          %v634 = vld [vmem:[#allocation13 + $0x278] sm:$0xff]
          %v635 = vld [vmem:[#allocation13 + $0x280] sm:$0xff]
          %v636 = vld [vmem:[#allocation13 + $0x288] sm:$0xff]
          %v637 = vld [vmem:[#allocation13 + $0x290] sm:$0xff]
          %v638 = vld [vmem:[#allocation13 + $0x298] sm:$0xff]
          %v639 = vld [vmem:[#allocation13 + $0x2a0] sm:$0xff]
          %v640 = vld [vmem:[#allocation13 + $0x2a8] sm:$0xff]
          %v641 = vld [vmem:[#allocation13 + $0x2b0] sm:$0xff]
          %v642 = vld [vmem:[#allocation13 + $0x2b8] sm:$0xff]
          %v643 = vld [vmem:[#allocation13 + $0x2c0] sm:$0xff]
          %v644 = vld [vmem:[#allocation13 + $0x2c8] sm:$0xff]
          %v645 = vld [vmem:[#allocation13 + $0x2d0] sm:$0xff]
          %v646 = vld [vmem:[#allocation13 + $0x2d8] sm:$0xff]
          %v647 = vld [vmem:[#allocation13 + $0x2e0] sm:$0xff]
          %v648 = vld [vmem:[#allocation13 + $0x2e8] sm:$0xff]
          %v649 = vld [vmem:[#allocation13 + $0x2f0] sm:$0xff]
          %v650 = vld [vmem:[#allocation13 + $0x2f8] sm:$0xff]
          %v651 = vld [vmem:[#allocation13 + $0x300] sm:$0xff]
          %v652 = vld [vmem:[#allocation13 + $0x308] sm:$0xff]
          %v653 = vld [vmem:[#allocation13 + $0x310] sm:$0xff]
          %v654 = vld [vmem:[#allocation13 + $0x318] sm:$0xff]
          %v655 = vld [vmem:[#allocation13 + $0x320] sm:$0xff]
          %v656 = vld [vmem:[#allocation13 + $0x328] sm:$0xff]
          %v657 = vld [vmem:[#allocation13 + $0x330] sm:$0xff]
          %v658 = vld [vmem:[#allocation13 + $0x338] sm:$0xff]
          %v659 = vld [vmem:[#allocation13 + $0x340] sm:$0xff]
          %v660 = vld [vmem:[#allocation13 + $0x348] sm:$0xff]
          %v661 = vld [vmem:[#allocation13 + $0x350] sm:$0xff]
          %v662 = vld [vmem:[#allocation13 + $0x358] sm:$0xff]
          %v663 = vld [vmem:[#allocation13 + $0x360] sm:$0xff]
          %v664 = vld [vmem:[#allocation13 + $0x368] sm:$0xff]
          %v665 = vld [vmem:[#allocation13 + $0x370] sm:$0xff]
          %v666 = vld [vmem:[#allocation13 + $0x378] sm:$0xff]
          %v667 = vld [vmem:[#allocation13 + $0x380] sm:$0xff]
          %v668 = vld [vmem:[#allocation13 + $0x388] sm:$0xff]
          %v669 = vld [vmem:[#allocation13 + $0x390] sm:$0xff]
          %v670 = vld [vmem:[#allocation13 + $0x398] sm:$0xff]
          %v671 = vld [vmem:[#allocation13 + $0x3a0] sm:$0xff]
          %v672 = vld [vmem:[#allocation13 + $0x3a8] sm:$0xff]
          %v673 = vld [vmem:[#allocation13 + $0x3b0] sm:$0xff]
          %v674 = vld [vmem:[#allocation13 + $0x3b8] sm:$0xff]
          %v675 = vld [vmem:[#allocation13 + $0x3c0] sm:$0xff]
          %v676 = vld [vmem:[#allocation13 + $0x3c8] sm:$0xff]
          %v677 = vld [vmem:[#allocation13 + $0x3d0] sm:$0xff]
          %v678 = vld [vmem:[#allocation13 + $0x3d8] sm:$0xff]
          %v679 = vld [vmem:[#allocation13 + $0x3e0] sm:$0xff]
          %v680 = vld [vmem:[#allocation13 + $0x3e8] sm:$0xff]
          %v681 = vld [vmem:[#allocation13 + $0x3f0] sm:$0xff]
          %v682 = vld [vmem:[#allocation13 + $0x3f8] sm:$0xff]
          %v683 = vld [vmem:[#allocation13 + $0x400] sm:$0xff]
          %v684 = vld [vmem:[#allocation13 + $0x408] sm:$0xff]
          %v685 = vld [vmem:[#allocation13 + $0x410] sm:$0xff]
          %v686 = vld [vmem:[#allocation13 + $0x418] sm:$0xff]
          %v687 = vld [vmem:[#allocation13 + $0x420] sm:$0xff]
          %v688 = vld [vmem:[#allocation13 + $0x428] sm:$0xff]
          %v689 = vld [vmem:[#allocation13 + $0x430] sm:$0xff]
          %v690 = vld [vmem:[#allocation13 + $0x438] sm:$0xff]
          %v691 = vld [vmem:[#allocation13 + $0x440] sm:$0xff]
          %v692 = vld [vmem:[#allocation13 + $0x448] sm:$0xff]
          %v693 = vld [vmem:[#allocation13 + $0x450] sm:$0xff]
          %v694 = vld [vmem:[#allocation13 + $0x458] sm:$0xff]
          %v695 = vld [vmem:[#allocation13 + $0x460] sm:$0xff]
          %v696 = vld [vmem:[#allocation13 + $0x468] sm:$0xff]
          %v697 = vld [vmem:[#allocation13 + $0x470] sm:$0xff]
          %v698 = vld [vmem:[#allocation13 + $0x478] sm:$0xff]
          %v699 = vld [vmem:[#allocation13 + $0x480] sm:$0xff]
          %v700 = vld [vmem:[#allocation13 + $0x488] sm:$0xff]
          %v701 = vld [vmem:[#allocation13 + $0x490] sm:$0xff]
          %v702 = vld [vmem:[#allocation13 + $0x498] sm:$0xff]
          %v703 = vld [vmem:[#allocation13 + $0x4a0] sm:$0xff]
          %v704 = vld [vmem:[#allocation13 + $0x4a8] sm:$0xff]
          %v705 = vld [vmem:[#allocation13 + $0x4b0] sm:$0xff]
          %v706 = vld [vmem:[#allocation13 + $0x4b8] sm:$0xff]
          %v707 = vld [vmem:[#allocation13 + $0x4c0] sm:$0xff]
          %v708 = vld [vmem:[#allocation13 + $0x4c8] sm:$0xff]
          %v709 = vld [vmem:[#allocation13 + $0x4d0] sm:$0xff]
          %v710 = vld [vmem:[#allocation13 + $0x4d8] sm:$0xff]
          %v711 = vld [vmem:[#allocation13 + $0x4e0] sm:$0xff]
          %v712 = vld [vmem:[#allocation13 + $0x4e8] sm:$0xff]
          %v713 = vld [vmem:[#allocation13 + $0x4f0] sm:$0xff]
          %v714 = vld [vmem:[#allocation13 + $0x4f8] sm:$0xff]
          %v715 = vld [vmem:[#allocation13 + $0x500] sm:$0xff]
          %v716 = vld [vmem:[#allocation13 + $0x508] sm:$0xff]
          %v717 = vld [vmem:[#allocation13 + $0x510] sm:$0xff]
          %v718 = vld [vmem:[#allocation13 + $0x518] sm:$0xff]
          %v719 = vld [vmem:[#allocation13 + $0x520] sm:$0xff]
          %v720 = vld [vmem:[#allocation13 + $0x528] sm:$0xff]
          %v721 = vld [vmem:[#allocation13 + $0x530] sm:$0xff]
          %v722 = vld [vmem:[#allocation13 + $0x538] sm:$0xff]
          %v723 = vld [vmem:[#allocation13 + $0x540] sm:$0xff]
          %v724 = vld [vmem:[#allocation13 + $0x548] sm:$0xff]
          %v725 = vld [vmem:[#allocation13 + $0x550] sm:$0xff]
          %v726 = vld [vmem:[#allocation13 + $0x558] sm:$0xff]
          %v727 = vld [vmem:[#allocation13 + $0x560] sm:$0xff]
          %v728 = vld [vmem:[#allocation13 + $0x568] sm:$0xff]
          %v729 = vld [vmem:[#allocation13 + $0x570] sm:$0xff]
          %v730 = vld [vmem:[#allocation13 + $0x578] sm:$0xff]
          %v731 = vld [vmem:[#allocation13 + $0x580] sm:$0xff]
          %v732 = vld [vmem:[#allocation13 + $0x588] sm:$0xff]
          %v733 = vld [vmem:[#allocation13 + $0x590] sm:$0xff]
          %v734 = vld [vmem:[#allocation13 + $0x598] sm:$0xff]
          %v735 = vld [vmem:[#allocation13 + $0x5a0] sm:$0xff]
          %v736 = vld [vmem:[#allocation13 + $0x5a8] sm:$0xff]
          %v737 = vld [vmem:[#allocation13 + $0x5b0] sm:$0xff]
          %v738 = vld [vmem:[#allocation13 + $0x5b8] sm:$0xff]
          %v739 = vld [vmem:[#allocation13 + $0x5c0] sm:$0xff]
          %v740 = vld [vmem:[#allocation13 + $0x5c8] sm:$0xff]
          %v741 = vld [vmem:[#allocation13 + $0x5d0] sm:$0xff]
          %v742 = vld [vmem:[#allocation13 + $0x5d8] sm:$0xff]
          %v743 = vld [vmem:[#allocation13 + $0x5e0] sm:$0xff]
          %v744 = vld [vmem:[#allocation13 + $0x5e8] sm:$0xff]
          %v745 = vld [vmem:[#allocation13 + $0x5f0] sm:$0xff]
          %v746 = vld [vmem:[#allocation13 + $0x5f8] sm:$0xff]
          %v747 = vld [vmem:[#allocation13 + $0x600] sm:$0xff]
          %v748 = vld [vmem:[#allocation13 + $0x608] sm:$0xff]
          %v749 = vld [vmem:[#allocation13 + $0x610] sm:$0xff]
          %v750 = vld [vmem:[#allocation13 + $0x618] sm:$0xff]
          %v751 = vld [vmem:[#allocation13 + $0x620] sm:$0xff]
          %v752 = vld [vmem:[#allocation13 + $0x628] sm:$0xff]
          %v753 = vld [vmem:[#allocation13 + $0x630] sm:$0xff]
          %v754 = vld [vmem:[#allocation13 + $0x638] sm:$0xff]
          %v755 = vld [vmem:[#allocation13 + $0x640] sm:$0xff]
          %v756 = vld [vmem:[#allocation13 + $0x648] sm:$0xff]
          %v757 = vld [vmem:[#allocation13 + $0x650] sm:$0xff]
          %v758 = vld [vmem:[#allocation13 + $0x658] sm:$0xff]
          %v759 = vld [vmem:[#allocation13 + $0x660] sm:$0xff]
          %v760 = vld [vmem:[#allocation13 + $0x668] sm:$0xff]
          %v761 = vld [vmem:[#allocation13 + $0x670] sm:$0xff]
          %v762 = vld [vmem:[#allocation13 + $0x678] sm:$0xff]
          %v763 = vld [vmem:[#allocation13 + $0x680] sm:$0xff]
          %v764 = vld [vmem:[#allocation13 + $0x688] sm:$0xff]
          %v765 = vld [vmem:[#allocation13 + $0x690] sm:$0xff]
          %v766 = vld [vmem:[#allocation13 + $0x698] sm:$0xff]
          %v767 = vld [vmem:[#allocation13 + $0x6a0] sm:$0xff]
          %v768 = vld [vmem:[#allocation13 + $0x6a8] sm:$0xff]
          %v769 = vld [vmem:[#allocation13 + $0x6b0] sm:$0xff]
          %v770 = vld [vmem:[#allocation13 + $0x6b8] sm:$0xff]
          %v771 = vld [vmem:[#allocation13 + $0x6c0] sm:$0xff]
          %v772 = vld [vmem:[#allocation13 + $0x6c8] sm:$0xff]
          %v773 = vld [vmem:[#allocation13 + $0x6d0] sm:$0xff]
          %v774 = vld [vmem:[#allocation13 + $0x6d8] sm:$0xff]
          %v775 = vld [vmem:[#allocation13 + $0x6e0] sm:$0xff]
          %v776 = vld [vmem:[#allocation13 + $0x6e8] sm:$0xff]
          %v777 = vld [vmem:[#allocation13 + $0x6f0] sm:$0xff]
          %v778 = vld [vmem:[#allocation13 + $0x6f8] sm:$0xff]
          %v779 = vld [vmem:[#allocation13 + $0x700] sm:$0xff]
          %v780 = vld [vmem:[#allocation13 + $0x708] sm:$0xff]
          %v781 = vld [vmem:[#allocation13 + $0x710] sm:$0xff]
          %v782 = vld [vmem:[#allocation13 + $0x718] sm:$0xff]
          %v783 = vld [vmem:[#allocation13 + $0x720] sm:$0xff]
          %v784 = vld [vmem:[#allocation13 + $0x728] sm:$0xff]
          %v785 = vld [vmem:[#allocation13 + $0x730] sm:$0xff]
          %v786 = vld [vmem:[#allocation13 + $0x738] sm:$0xff]
          %v787 = vld [vmem:[#allocation13 + $0x740] sm:$0xff]
          %v788 = vld [vmem:[#allocation13 + $0x748] sm:$0xff]
          %v789 = vld [vmem:[#allocation13 + $0x750] sm:$0xff]
          %v790 = vld [vmem:[#allocation13 + $0x758] sm:$0xff]
          %v791 = vld [vmem:[#allocation13 + $0x760] sm:$0xff]
          %v792 = vld [vmem:[#allocation13 + $0x768] sm:$0xff]
          %v793 = vld [vmem:[#allocation13 + $0x770] sm:$0xff]
          %v794 = vld [vmem:[#allocation13 + $0x778] sm:$0xff]
          %v795 = vld [vmem:[#allocation13 + $0x780] sm:$0xff]
          %v796 = vld [vmem:[#allocation13 + $0x788] sm:$0xff]
          %v797 = vld [vmem:[#allocation13 + $0x790] sm:$0xff]
          %v798 = vld [vmem:[#allocation13 + $0x798] sm:$0xff]
          %v799 = vld [vmem:[#allocation13 + $0x7a0] sm:$0xff]
          %v800 = vld [vmem:[#allocation13 + $0x7a8] sm:$0xff]
          %v801 = vld [vmem:[#allocation13 + $0x7b0] sm:$0xff]
          %v802 = vld [vmem:[#allocation13 + $0x7b8] sm:$0xff]
          %v803 = vld [vmem:[#allocation13 + $0x7c0] sm:$0xff]
          %v804 = vld [vmem:[#allocation13 + $0x7c8] sm:$0xff]
          %v805 = vld [vmem:[#allocation13 + $0x7d0] sm:$0xff]
          %v806 = vld [vmem:[#allocation13 + $0x7d8] sm:$0xff]
          %v807 = vld [vmem:[#allocation13 + $0x7e0] sm:$0xff]
          %v808 = vld [vmem:[#allocation13 + $0x7e8] sm:$0xff]
          %v809 = vld [vmem:[#allocation13 + $0x7f0] sm:$0xff]
          %v810 = vld [vmem:[#allocation13 + $0x7f8] sm:$0xff]
          %v811 = vld [vmem:[#allocation13 + $0x800] sm:$0xff]
          %v812 = vld [vmem:[#allocation13 + $0x808] sm:$0xff]
          %v813 = vld [vmem:[#allocation13 + $0x810] sm:$0xff]
          %v814 = vld [vmem:[#allocation13 + $0x818] sm:$0xff]
          %v815 = vld [vmem:[#allocation13 + $0x820] sm:$0xff]
          %v816 = vld [vmem:[#allocation13 + $0x828] sm:$0xff]
          %v817 = vld [vmem:[#allocation13 + $0x830] sm:$0xff]
          %v818 = vld [vmem:[#allocation13 + $0x838] sm:$0xff]
          %v819 = vld [vmem:[#allocation13 + $0x840] sm:$0xff]
          %v820 = vld [vmem:[#allocation13 + $0x848] sm:$0xff]
          %v821 = vld [vmem:[#allocation13 + $0x850] sm:$0xff]
          %v822 = vld [vmem:[#allocation13 + $0x858] sm:$0xff]
          %v823 = vld [vmem:[#allocation13 + $0x860] sm:$0xff]
          %v824 = vld [vmem:[#allocation13 + $0x868] sm:$0xff]
          %v825 = vld [vmem:[#allocation13 + $0x870] sm:$0xff]
          %v826 = vld [vmem:[#allocation13 + $0x878] sm:$0xff]
          %v827 = vld [vmem:[#allocation13 + $0x880] sm:$0xff]
          %v828 = vld [vmem:[#allocation13 + $0x888] sm:$0xff]
          %v829 = vld [vmem:[#allocation13 + $0x890] sm:$0xff]
          %v830 = vld [vmem:[#allocation13 + $0x898] sm:$0xff]
          %v831 = vld [vmem:[#allocation13 + $0x8a0] sm:$0xff]
          %v832 = vld [vmem:[#allocation13 + $0x8a8] sm:$0xff]
          %v833 = vld [vmem:[#allocation13 + $0x8b0] sm:$0xff]
          %v834 = vld [vmem:[#allocation13 + $0x8b8] sm:$0xff]
          %v835 = vld [vmem:[#allocation13 + $0x8c0] sm:$0xff]
          %v836 = vld [vmem:[#allocation13 + $0x8c8] sm:$0xff]
          %v837 = vld [vmem:[#allocation13 + $0x8d0] sm:$0xff]
          %v838 = vld [vmem:[#allocation13 + $0x8d8] sm:$0xff]
          %v839 = vld [vmem:[#allocation13 + $0x8e0] sm:$0xff]
          %v840 = vld [vmem:[#allocation13 + $0x8e8] sm:$0xff]
          %v841 = vld [vmem:[#allocation13 + $0x8f0] sm:$0xff]
          %v842 = vld [vmem:[#allocation13 + $0x8f8] sm:$0xff]
          %v843 = vld [vmem:[#allocation14] sm:$0x3f]
          %v845 = vlaneseq
          %v846 = vshrl.u32 %v845, 7
          %v847 = vsub.s32 0, %v846
          %v848 = vrot.slane %v843, %v847
          %v849 = vlaneseq
          %v850 = vshrl.u32 %v849, 7
          %v851 = vsub.s32 1, %v850
          %v852 = vrot.slane %v843, %v851
          %v853 = vlaneseq
          %v854 = vshrl.u32 %v853, 7
          %v855 = vsub.s32 2, %v854
          %v856 = vrot.slane %v843, %v855
          %v857 = vlaneseq
          %v858 = vshrl.u32 %v857, 7
          %v859 = vsub.s32 3, %v858
          %v860 = vrot.slane %v843, %v859
          %v861 = vlaneseq
          %v862 = vshrl.u32 %v861, 7
          %v863 = vsub.s32 4, %v862
          %v864 = vrot.slane %v843, %v863
          %v865 = vlaneseq
          %v866 = vshrl.u32 %v865, 7
          %v867 = vsub.s32 5, %v866
          %v868 = vrot.slane %v843, %v867
          %v881 = vunpack.c.l.b16 %v549
          %v882 = vunpack.c.h.b16 %v549
          %v883 = vunpack.c.l.b16 %v550
          %v884 = vunpack.c.h.b16 %v550
          %v885 = vunpack.c.l.b16 %v551
          %v886 = vunpack.c.h.b16 %v551
          %v887 = vunpack.c.l.b16 %v552
          %v888 = vunpack.c.h.b16 %v552
          %v889 = vunpack.c.l.b16 %v553
          %v890 = vunpack.c.h.b16 %v553
          %v891 = vunpack.c.l.b16 %v554
          %v892 = vunpack.c.h.b16 %v554
          %v893 = vpack.c.b16 %v887, %v881
          %v894 = vpack.c.b16 %v888, %v882
          %v895 = vpack.c.b16 %v889, %v883
          %v896 = vpack.c.b16 %v890, %v884
          %v897 = vpack.c.b16 %v891, %v885
          %v898 = vpack.c.b16 %v892, %v886
          %v1193 = vunpack.c.l.b16 %v555
          %v1194 = vunpack.c.h.b16 %v555
          %v1195 = vunpack.c.l.b16 %v556
          %v1196 = vunpack.c.h.b16 %v556
          %v1197 = vunpack.c.l.b16 %v557
          %v1198 = vunpack.c.h.b16 %v557
          %v1199 = vunpack.c.l.b16 %v558
          %v1200 = vunpack.c.h.b16 %v558
          %v1201 = vunpack.c.l.b16 %v559
          %v1202 = vunpack.c.h.b16 %v559
          %v1203 = vunpack.c.l.b16 %v560
          %v1204 = vunpack.c.h.b16 %v560
          %v1205 = vunpack.c.l.b16 %v561
          %v1206 = vunpack.c.h.b16 %v561
          %v1207 = vunpack.c.l.b16 %v562
          %v1208 = vunpack.c.h.b16 %v562
          %v1209 = vunpack.c.l.b16 %v563
          %v1210 = vunpack.c.h.b16 %v563
          %v1211 = vunpack.c.l.b16 %v564
          %v1212 = vunpack.c.h.b16 %v564
          %v1213 = vunpack.c.l.b16 %v565
          %v1214 = vunpack.c.h.b16 %v565
          %v1215 = vunpack.c.l.b16 %v566
          %v1216 = vunpack.c.h.b16 %v566
          %v1217 = vunpack.c.l.b16 %v567
          %v1218 = vunpack.c.h.b16 %v567
          %v1219 = vunpack.c.l.b16 %v568
          %v1220 = vunpack.c.h.b16 %v568
          %v1221 = vunpack.c.l.b16 %v569
          %v1222 = vunpack.c.h.b16 %v569
          %v1223 = vunpack.c.l.b16 %v570
          %v1224 = vunpack.c.h.b16 %v570
          %v1225 = vunpack.c.l.b16 %v571
          %v1226 = vunpack.c.h.b16 %v571
          %v1227 = vunpack.c.l.b16 %v572
          %v1228 = vunpack.c.h.b16 %v572
          %v1229 = vunpack.c.l.b16 %v573
          %v1230 = vunpack.c.h.b16 %v573
          %v1231 = vunpack.c.l.b16 %v574
          %v1232 = vunpack.c.h.b16 %v574
          %v1233 = vunpack.c.l.b16 %v575
          %v1234 = vunpack.c.h.b16 %v575
          %v1235 = vunpack.c.l.b16 %v576
          %v1236 = vunpack.c.h.b16 %v576
          %v1237 = vunpack.c.l.b16 %v577
          %v1238 = vunpack.c.h.b16 %v577
          %v1239 = vunpack.c.l.b16 %v578
          %v1240 = vunpack.c.h.b16 %v578
          %v1241 = vunpack.c.l.b16 %v579
          %v1242 = vunpack.c.h.b16 %v579
          %v1243 = vunpack.c.l.b16 %v580
          %v1244 = vunpack.c.h.b16 %v580
          %v1245 = vunpack.c.l.b16 %v581
          %v1246 = vunpack.c.h.b16 %v581
          %v1247 = vunpack.c.l.b16 %v582
          %v1248 = vunpack.c.h.b16 %v582
          %v1249 = vunpack.c.l.b16 %v583
          %v1250 = vunpack.c.h.b16 %v583
          %v1251 = vunpack.c.l.b16 %v584
          %v1252 = vunpack.c.h.b16 %v584
          %v1253 = vunpack.c.l.b16 %v585
          %v1254 = vunpack.c.h.b16 %v585
          %v1255 = vunpack.c.l.b16 %v586
          %v1256 = vunpack.c.h.b16 %v586
          %v1257 = vunpack.c.l.b16 %v587
          %v1258 = vunpack.c.h.b16 %v587
          %v1259 = vunpack.c.l.b16 %v588
          %v1260 = vunpack.c.h.b16 %v588
          %v1261 = vunpack.c.l.b16 %v589
          %v1262 = vunpack.c.h.b16 %v589
          %v1263 = vunpack.c.l.b16 %v590
          %v1264 = vunpack.c.h.b16 %v590
          %v1265 = vunpack.c.l.b16 %v591
          %v1266 = vunpack.c.h.b16 %v591
          %v1267 = vunpack.c.l.b16 %v592
          %v1268 = vunpack.c.h.b16 %v592
          %v1269 = vunpack.c.l.b16 %v593
          %v1270 = vunpack.c.h.b16 %v593
          %v1271 = vunpack.c.l.b16 %v594
          %v1272 = vunpack.c.h.b16 %v594
          %v1273 = vunpack.c.l.b16 %v595
          %v1274 = vunpack.c.h.b16 %v595
          %v1275 = vunpack.c.l.b16 %v596
          %v1276 = vunpack.c.h.b16 %v596
          %v1277 = vunpack.c.l.b16 %v597
          %v1278 = vunpack.c.h.b16 %v597
          %v1279 = vunpack.c.l.b16 %v598
          %v1280 = vunpack.c.h.b16 %v598
          %v1281 = vunpack.c.l.b16 %v599
          %v1282 = vunpack.c.h.b16 %v599
          %v1283 = vunpack.c.l.b16 %v600
          %v1284 = vunpack.c.h.b16 %v600
          %v1285 = vunpack.c.l.b16 %v601
          %v1286 = vunpack.c.h.b16 %v601
          %v1287 = vunpack.c.l.b16 %v602
          %v1288 = vunpack.c.h.b16 %v602
          %v1289 = vunpack.c.l.b16 %v603
          %v1290 = vunpack.c.h.b16 %v603
          %v1291 = vunpack.c.l.b16 %v604
          %v1292 = vunpack.c.h.b16 %v604
          %v1293 = vunpack.c.l.b16 %v605
          %v1294 = vunpack.c.h.b16 %v605
          %v1295 = vunpack.c.l.b16 %v606
          %v1296 = vunpack.c.h.b16 %v606
          %v1297 = vunpack.c.l.b16 %v607
          %v1298 = vunpack.c.h.b16 %v607
          %v1299 = vunpack.c.l.b16 %v608
          %v1300 = vunpack.c.h.b16 %v608
          %v1301 = vunpack.c.l.b16 %v609
          %v1302 = vunpack.c.h.b16 %v609
          %v1303 = vunpack.c.l.b16 %v610
          %v1304 = vunpack.c.h.b16 %v610
          %v1305 = vunpack.c.l.b16 %v611
          %v1306 = vunpack.c.h.b16 %v611
          %v1307 = vunpack.c.l.b16 %v612
          %v1308 = vunpack.c.h.b16 %v612
          %v1309 = vunpack.c.l.b16 %v613
          %v1310 = vunpack.c.h.b16 %v613
          %v1311 = vunpack.c.l.b16 %v614
          %v1312 = vunpack.c.h.b16 %v614
          %v1313 = vunpack.c.l.b16 %v615
          %v1314 = vunpack.c.h.b16 %v615
          %v1315 = vunpack.c.l.b16 %v616
          %v1316 = vunpack.c.h.b16 %v616
          %v1317 = vunpack.c.l.b16 %v617
          %v1318 = vunpack.c.h.b16 %v617
          %v1319 = vunpack.c.l.b16 %v618
          %v1320 = vunpack.c.h.b16 %v618
          %v1321 = vunpack.c.l.b16 %v619
          %v1322 = vunpack.c.h.b16 %v619
          %v1323 = vunpack.c.l.b16 %v620
          %v1324 = vunpack.c.h.b16 %v620
          %v1325 = vunpack.c.l.b16 %v621
          %v1326 = vunpack.c.h.b16 %v621
          %v1327 = vunpack.c.l.b16 %v622
          %v1328 = vunpack.c.h.b16 %v622
          %v1329 = vunpack.c.l.b16 %v623
          %v1330 = vunpack.c.h.b16 %v623
          %v1331 = vunpack.c.l.b16 %v624
          %v1332 = vunpack.c.h.b16 %v624
          %v1333 = vunpack.c.l.b16 %v625
          %v1334 = vunpack.c.h.b16 %v625
          %v1335 = vunpack.c.l.b16 %v626
          %v1336 = vunpack.c.h.b16 %v626
          %v1337 = vunpack.c.l.b16 %v627
          %v1338 = vunpack.c.h.b16 %v627
          %v1339 = vunpack.c.l.b16 %v628
          %v1340 = vunpack.c.h.b16 %v628
          %v1341 = vunpack.c.l.b16 %v629
          %v1342 = vunpack.c.h.b16 %v629
          %v1343 = vunpack.c.l.b16 %v630
          %v1344 = vunpack.c.h.b16 %v630
          %v1345 = vunpack.c.l.b16 %v631
          %v1346 = vunpack.c.h.b16 %v631
          %v1347 = vunpack.c.l.b16 %v632
          %v1348 = vunpack.c.h.b16 %v632
          %v1349 = vunpack.c.l.b16 %v633
          %v1350 = vunpack.c.h.b16 %v633
          %v1351 = vunpack.c.l.b16 %v634
          %v1352 = vunpack.c.h.b16 %v634
          %v1353 = vunpack.c.l.b16 %v635
          %v1354 = vunpack.c.h.b16 %v635
          %v1355 = vunpack.c.l.b16 %v636
          %v1356 = vunpack.c.h.b16 %v636
          %v1357 = vunpack.c.l.b16 %v637
          %v1358 = vunpack.c.h.b16 %v637
          %v1359 = vunpack.c.l.b16 %v638
          %v1360 = vunpack.c.h.b16 %v638
          %v1361 = vunpack.c.l.b16 %v639
          %v1362 = vunpack.c.h.b16 %v639
          %v1363 = vunpack.c.l.b16 %v640
          %v1364 = vunpack.c.h.b16 %v640
          %v1365 = vunpack.c.l.b16 %v641
          %v1366 = vunpack.c.h.b16 %v641
          %v1367 = vunpack.c.l.b16 %v642
          %v1368 = vunpack.c.h.b16 %v642
          %v1369 = vunpack.c.l.b16 %v643
          %v1370 = vunpack.c.h.b16 %v643
          %v1371 = vunpack.c.l.b16 %v644
          %v1372 = vunpack.c.h.b16 %v644
          %v1373 = vunpack.c.l.b16 %v645
          %v1374 = vunpack.c.h.b16 %v645
          %v1375 = vunpack.c.l.b16 %v646
          %v1376 = vunpack.c.h.b16 %v646
          %v1377 = vunpack.c.l.b16 %v647
          %v1378 = vunpack.c.h.b16 %v647
          %v1379 = vunpack.c.l.b16 %v648
          %v1380 = vunpack.c.h.b16 %v648
          %v1381 = vunpack.c.l.b16 %v649
          %v1382 = vunpack.c.h.b16 %v649
          %v1383 = vunpack.c.l.b16 %v650
          %v1384 = vunpack.c.h.b16 %v650
          %v1385 = vunpack.c.l.b16 %v651
          %v1386 = vunpack.c.h.b16 %v651
          %v1387 = vunpack.c.l.b16 %v652
          %v1388 = vunpack.c.h.b16 %v652
          %v1389 = vunpack.c.l.b16 %v653
          %v1390 = vunpack.c.h.b16 %v653
          %v1391 = vunpack.c.l.b16 %v654
          %v1392 = vunpack.c.h.b16 %v654
          %v1393 = vunpack.c.l.b16 %v655
          %v1394 = vunpack.c.h.b16 %v655
          %v1395 = vunpack.c.l.b16 %v656
          %v1396 = vunpack.c.h.b16 %v656
          %v1397 = vunpack.c.l.b16 %v657
          %v1398 = vunpack.c.h.b16 %v657
          %v1399 = vunpack.c.l.b16 %v658
          %v1400 = vunpack.c.h.b16 %v658
          %v1401 = vunpack.c.l.b16 %v659
          %v1402 = vunpack.c.h.b16 %v659
          %v1403 = vunpack.c.l.b16 %v660
          %v1404 = vunpack.c.h.b16 %v660
          %v1405 = vunpack.c.l.b16 %v661
          %v1406 = vunpack.c.h.b16 %v661
          %v1407 = vunpack.c.l.b16 %v662
          %v1408 = vunpack.c.h.b16 %v662
          %v1409 = vunpack.c.l.b16 %v663
          %v1410 = vunpack.c.h.b16 %v663
          %v1411 = vunpack.c.l.b16 %v664
          %v1412 = vunpack.c.h.b16 %v664
          %v1413 = vunpack.c.l.b16 %v665
          %v1414 = vunpack.c.h.b16 %v665
          %v1415 = vunpack.c.l.b16 %v666
          %v1416 = vunpack.c.h.b16 %v666
          %v1417 = vunpack.c.l.b16 %v667
          %v1418 = vunpack.c.h.b16 %v667
          %v1419 = vunpack.c.l.b16 %v668
          %v1420 = vunpack.c.h.b16 %v668
          %v1421 = vunpack.c.l.b16 %v669
          %v1422 = vunpack.c.h.b16 %v669
          %v1423 = vunpack.c.l.b16 %v670
          %v1424 = vunpack.c.h.b16 %v670
          %v1425 = vunpack.c.l.b16 %v671
          %v1426 = vunpack.c.h.b16 %v671
          %v1427 = vunpack.c.l.b16 %v672
          %v1428 = vunpack.c.h.b16 %v672
          %v1429 = vunpack.c.l.b16 %v673
          %v1430 = vunpack.c.h.b16 %v673
          %v1431 = vunpack.c.l.b16 %v674
          %v1432 = vunpack.c.h.b16 %v674
          %v1433 = vunpack.c.l.b16 %v675
          %v1434 = vunpack.c.h.b16 %v675
          %v1435 = vunpack.c.l.b16 %v676
          %v1436 = vunpack.c.h.b16 %v676
          %v1437 = vunpack.c.l.b16 %v677
          %v1438 = vunpack.c.h.b16 %v677
          %v1439 = vunpack.c.l.b16 %v678
          %v1440 = vunpack.c.h.b16 %v678
          %v1441 = vunpack.c.l.b16 %v679
          %v1442 = vunpack.c.h.b16 %v679
          %v1443 = vunpack.c.l.b16 %v680
          %v1444 = vunpack.c.h.b16 %v680
          %v1445 = vunpack.c.l.b16 %v681
          %v1446 = vunpack.c.h.b16 %v681
          %v1447 = vunpack.c.l.b16 %v682
          %v1448 = vunpack.c.h.b16 %v682
          %v1449 = vunpack.c.l.b16 %v683
          %v1450 = vunpack.c.h.b16 %v683
          %v1451 = vunpack.c.l.b16 %v684
          %v1452 = vunpack.c.h.b16 %v684
          %v1453 = vunpack.c.l.b16 %v685
          %v1454 = vunpack.c.h.b16 %v685
          %v1455 = vunpack.c.l.b16 %v686
          %v1456 = vunpack.c.h.b16 %v686
          %v1457 = vunpack.c.l.b16 %v687
          %v1458 = vunpack.c.h.b16 %v687
          %v1459 = vunpack.c.l.b16 %v688
          %v1460 = vunpack.c.h.b16 %v688
          %v1461 = vunpack.c.l.b16 %v689
          %v1462 = vunpack.c.h.b16 %v689
          %v1463 = vunpack.c.l.b16 %v690
          %v1464 = vunpack.c.h.b16 %v690
          %v1465 = vunpack.c.l.b16 %v691
          %v1466 = vunpack.c.h.b16 %v691
          %v1467 = vunpack.c.l.b16 %v692
          %v1468 = vunpack.c.h.b16 %v692
          %v1469 = vunpack.c.l.b16 %v693
          %v1470 = vunpack.c.h.b16 %v693
          %v1471 = vunpack.c.l.b16 %v694
          %v1472 = vunpack.c.h.b16 %v694
          %v1473 = vunpack.c.l.b16 %v695
          %v1474 = vunpack.c.h.b16 %v695
          %v1475 = vunpack.c.l.b16 %v696
          %v1476 = vunpack.c.h.b16 %v696
          %v1477 = vunpack.c.l.b16 %v697
          %v1478 = vunpack.c.h.b16 %v697
          %v1479 = vunpack.c.l.b16 %v698
          %v1480 = vunpack.c.h.b16 %v698
          %v1481 = vunpack.c.l.b16 %v699
          %v1482 = vunpack.c.h.b16 %v699
          %v1483 = vunpack.c.l.b16 %v700
          %v1484 = vunpack.c.h.b16 %v700
          %v1485 = vunpack.c.l.b16 %v701
          %v1486 = vunpack.c.h.b16 %v701
          %v1487 = vunpack.c.l.b16 %v702
          %v1488 = vunpack.c.h.b16 %v702
          %v1489 = vunpack.c.l.b16 %v703
          %v1490 = vunpack.c.h.b16 %v703
          %v1491 = vunpack.c.l.b16 %v704
          %v1492 = vunpack.c.h.b16 %v704
          %v1493 = vunpack.c.l.b16 %v705
          %v1494 = vunpack.c.h.b16 %v705
          %v1495 = vunpack.c.l.b16 %v706
          %v1496 = vunpack.c.h.b16 %v706
          %v1497 = vunpack.c.l.b16 %v707
          %v1498 = vunpack.c.h.b16 %v707
          %v1499 = vunpack.c.l.b16 %v708
          %v1500 = vunpack.c.h.b16 %v708
          %v1501 = vunpack.c.l.b16 %v709
          %v1502 = vunpack.c.h.b16 %v709
          %v1503 = vunpack.c.l.b16 %v710
          %v1504 = vunpack.c.h.b16 %v710
          %v1505 = vunpack.c.l.b16 %v711
          %v1506 = vunpack.c.h.b16 %v711
          %v1507 = vunpack.c.l.b16 %v712
          %v1508 = vunpack.c.h.b16 %v712
          %v1509 = vunpack.c.l.b16 %v713
          %v1510 = vunpack.c.h.b16 %v713
          %v1511 = vunpack.c.l.b16 %v714
          %v1512 = vunpack.c.h.b16 %v714
          %v1513 = vunpack.c.l.b16 %v715
          %v1514 = vunpack.c.h.b16 %v715
          %v1515 = vunpack.c.l.b16 %v716
          %v1516 = vunpack.c.h.b16 %v716
          %v1517 = vunpack.c.l.b16 %v717
          %v1518 = vunpack.c.h.b16 %v717
          %v1519 = vunpack.c.l.b16 %v718
          %v1520 = vunpack.c.h.b16 %v718
          %v1521 = vunpack.c.l.b16 %v719
          %v1522 = vunpack.c.h.b16 %v719
          %v1523 = vunpack.c.l.b16 %v720
          %v1524 = vunpack.c.h.b16 %v720
          %v1525 = vunpack.c.l.b16 %v721
          %v1526 = vunpack.c.h.b16 %v721
          %v1527 = vunpack.c.l.b16 %v722
          %v1528 = vunpack.c.h.b16 %v722
          %v1529 = vunpack.c.l.b16 %v723
          %v1530 = vunpack.c.h.b16 %v723
          %v1531 = vunpack.c.l.b16 %v724
          %v1532 = vunpack.c.h.b16 %v724
          %v1533 = vunpack.c.l.b16 %v725
          %v1534 = vunpack.c.h.b16 %v725
          %v1535 = vunpack.c.l.b16 %v726
          %v1536 = vunpack.c.h.b16 %v726
          %v1537 = vunpack.c.l.b16 %v727
          %v1538 = vunpack.c.h.b16 %v727
          %v1539 = vunpack.c.l.b16 %v728
          %v1540 = vunpack.c.h.b16 %v728
          %v1541 = vunpack.c.l.b16 %v729
          %v1542 = vunpack.c.h.b16 %v729
          %v1543 = vunpack.c.l.b16 %v730
          %v1544 = vunpack.c.h.b16 %v730
          %v1545 = vunpack.c.l.b16 %v731
          %v1546 = vunpack.c.h.b16 %v731
          %v1547 = vunpack.c.l.b16 %v732
          %v1548 = vunpack.c.h.b16 %v732
          %v1549 = vunpack.c.l.b16 %v733
          %v1550 = vunpack.c.h.b16 %v733
          %v1551 = vunpack.c.l.b16 %v734
          %v1552 = vunpack.c.h.b16 %v734
          %v1553 = vunpack.c.l.b16 %v735
          %v1554 = vunpack.c.h.b16 %v735
          %v1555 = vunpack.c.l.b16 %v736
          %v1556 = vunpack.c.h.b16 %v736
          %v1557 = vunpack.c.l.b16 %v737
          %v1558 = vunpack.c.h.b16 %v737
          %v1559 = vunpack.c.l.b16 %v738
          %v1560 = vunpack.c.h.b16 %v738
          %v1561 = vunpack.c.l.b16 %v739
          %v1562 = vunpack.c.h.b16 %v739
          %v1563 = vunpack.c.l.b16 %v740
          %v1564 = vunpack.c.h.b16 %v740
          %v1565 = vunpack.c.l.b16 %v741
          %v1566 = vunpack.c.h.b16 %v741
          %v1567 = vunpack.c.l.b16 %v742
          %v1568 = vunpack.c.h.b16 %v742
          %v1569 = vunpack.c.l.b16 %v743
          %v1570 = vunpack.c.h.b16 %v743
          %v1571 = vunpack.c.l.b16 %v744
          %v1572 = vunpack.c.h.b16 %v744
          %v1573 = vunpack.c.l.b16 %v745
          %v1574 = vunpack.c.h.b16 %v745
          %v1575 = vunpack.c.l.b16 %v746
          %v1576 = vunpack.c.h.b16 %v746
          %v1577 = vunpack.c.l.b16 %v747
          %v1578 = vunpack.c.h.b16 %v747
          %v1579 = vunpack.c.l.b16 %v748
          %v1580 = vunpack.c.h.b16 %v748
          %v1581 = vunpack.c.l.b16 %v749
          %v1582 = vunpack.c.h.b16 %v749
          %v1583 = vunpack.c.l.b16 %v750
          %v1584 = vunpack.c.h.b16 %v750
          %v1585 = vunpack.c.l.b16 %v751
          %v1586 = vunpack.c.h.b16 %v751
          %v1587 = vunpack.c.l.b16 %v752
          %v1588 = vunpack.c.h.b16 %v752
          %v1589 = vunpack.c.l.b16 %v753
          %v1590 = vunpack.c.h.b16 %v753
          %v1591 = vunpack.c.l.b16 %v754
          %v1592 = vunpack.c.h.b16 %v754
          %v1593 = vunpack.c.l.b16 %v755
          %v1594 = vunpack.c.h.b16 %v755
          %v1595 = vunpack.c.l.b16 %v756
          %v1596 = vunpack.c.h.b16 %v756
          %v1597 = vunpack.c.l.b16 %v757
          %v1598 = vunpack.c.h.b16 %v757
          %v1599 = vunpack.c.l.b16 %v758
          %v1600 = vunpack.c.h.b16 %v758
          %v1601 = vunpack.c.l.b16 %v759
          %v1602 = vunpack.c.h.b16 %v759
          %v1603 = vunpack.c.l.b16 %v760
          %v1604 = vunpack.c.h.b16 %v760
          %v1605 = vunpack.c.l.b16 %v761
          %v1606 = vunpack.c.h.b16 %v761
          %v1607 = vunpack.c.l.b16 %v762
          %v1608 = vunpack.c.h.b16 %v762
          %v1609 = vunpack.c.l.b16 %v763
          %v1610 = vunpack.c.h.b16 %v763
          %v1611 = vunpack.c.l.b16 %v764
          %v1612 = vunpack.c.h.b16 %v764
          %v1613 = vunpack.c.l.b16 %v765
          %v1614 = vunpack.c.h.b16 %v765
          %v1615 = vunpack.c.l.b16 %v766
          %v1616 = vunpack.c.h.b16 %v766
          %v1617 = vunpack.c.l.b16 %v767
          %v1618 = vunpack.c.h.b16 %v767
          %v1619 = vunpack.c.l.b16 %v768
          %v1620 = vunpack.c.h.b16 %v768
          %v1621 = vunpack.c.l.b16 %v769
          %v1622 = vunpack.c.h.b16 %v769
          %v1623 = vunpack.c.l.b16 %v770
          %v1624 = vunpack.c.h.b16 %v770
          %v1625 = vunpack.c.l.b16 %v771
          %v1626 = vunpack.c.h.b16 %v771
          %v1627 = vunpack.c.l.b16 %v772
          %v1628 = vunpack.c.h.b16 %v772
          %v1629 = vunpack.c.l.b16 %v773
          %v1630 = vunpack.c.h.b16 %v773
          %v1631 = vunpack.c.l.b16 %v774
          %v1632 = vunpack.c.h.b16 %v774
          %v1633 = vunpack.c.l.b16 %v775
          %v1634 = vunpack.c.h.b16 %v775
          %v1635 = vunpack.c.l.b16 %v776
          %v1636 = vunpack.c.h.b16 %v776
          %v1637 = vunpack.c.l.b16 %v777
          %v1638 = vunpack.c.h.b16 %v777
          %v1639 = vunpack.c.l.b16 %v778
          %v1640 = vunpack.c.h.b16 %v778
          %v1641 = vunpack.c.l.b16 %v779
          %v1642 = vunpack.c.h.b16 %v779
          %v1643 = vunpack.c.l.b16 %v780
          %v1644 = vunpack.c.h.b16 %v780
          %v1645 = vunpack.c.l.b16 %v781
          %v1646 = vunpack.c.h.b16 %v781
          %v1647 = vunpack.c.l.b16 %v782
          %v1648 = vunpack.c.h.b16 %v782
          %v1649 = vunpack.c.l.b16 %v783
          %v1650 = vunpack.c.h.b16 %v783
          %v1651 = vunpack.c.l.b16 %v784
          %v1652 = vunpack.c.h.b16 %v784
          %v1653 = vunpack.c.l.b16 %v785
          %v1654 = vunpack.c.h.b16 %v785
          %v1655 = vunpack.c.l.b16 %v786
          %v1656 = vunpack.c.h.b16 %v786
          %v1657 = vunpack.c.l.b16 %v787
          %v1658 = vunpack.c.h.b16 %v787
          %v1659 = vunpack.c.l.b16 %v788
          %v1660 = vunpack.c.h.b16 %v788
          %v1661 = vunpack.c.l.b16 %v789
          %v1662 = vunpack.c.h.b16 %v789
          %v1663 = vunpack.c.l.b16 %v790
          %v1664 = vunpack.c.h.b16 %v790
          %v1665 = vunpack.c.l.b16 %v791
          %v1666 = vunpack.c.h.b16 %v791
          %v1667 = vunpack.c.l.b16 %v792
          %v1668 = vunpack.c.h.b16 %v792
          %v1669 = vunpack.c.l.b16 %v793
          %v1670 = vunpack.c.h.b16 %v793
          %v1671 = vunpack.c.l.b16 %v794
          %v1672 = vunpack.c.h.b16 %v794
          %v1673 = vunpack.c.l.b16 %v795
          %v1674 = vunpack.c.h.b16 %v795
          %v1675 = vunpack.c.l.b16 %v796
          %v1676 = vunpack.c.h.b16 %v796
          %v1677 = vunpack.c.l.b16 %v797
          %v1678 = vunpack.c.h.b16 %v797
          %v1679 = vunpack.c.l.b16 %v798
          %v1680 = vunpack.c.h.b16 %v798
          %v1681 = vunpack.c.l.b16 %v799
          %v1682 = vunpack.c.h.b16 %v799
          %v1683 = vunpack.c.l.b16 %v800
          %v1684 = vunpack.c.h.b16 %v800
          %v1685 = vunpack.c.l.b16 %v801
          %v1686 = vunpack.c.h.b16 %v801
          %v1687 = vunpack.c.l.b16 %v802
          %v1688 = vunpack.c.h.b16 %v802
          %v1689 = vunpack.c.l.b16 %v803
          %v1690 = vunpack.c.h.b16 %v803
          %v1691 = vunpack.c.l.b16 %v804
          %v1692 = vunpack.c.h.b16 %v804
          %v1693 = vunpack.c.l.b16 %v805
          %v1694 = vunpack.c.h.b16 %v805
          %v1695 = vunpack.c.l.b16 %v806
          %v1696 = vunpack.c.h.b16 %v806
          %v1697 = vunpack.c.l.b16 %v807
          %v1698 = vunpack.c.h.b16 %v807
          %v1699 = vunpack.c.l.b16 %v808
          %v1700 = vunpack.c.h.b16 %v808
          %v1701 = vunpack.c.l.b16 %v809
          %v1702 = vunpack.c.h.b16 %v809
          %v1703 = vunpack.c.l.b16 %v810
          %v1704 = vunpack.c.h.b16 %v810
          %v1705 = vunpack.c.l.b16 %v811
          %v1706 = vunpack.c.h.b16 %v811
          %v1707 = vunpack.c.l.b16 %v812
          %v1708 = vunpack.c.h.b16 %v812
          %v1709 = vunpack.c.l.b16 %v813
          %v1710 = vunpack.c.h.b16 %v813
          %v1711 = vunpack.c.l.b16 %v814
          %v1712 = vunpack.c.h.b16 %v814
          %v1713 = vunpack.c.l.b16 %v815
          %v1714 = vunpack.c.h.b16 %v815
          %v1715 = vunpack.c.l.b16 %v816
          %v1716 = vunpack.c.h.b16 %v816
          %v1717 = vunpack.c.l.b16 %v817
          %v1718 = vunpack.c.h.b16 %v817
          %v1719 = vunpack.c.l.b16 %v818
          %v1720 = vunpack.c.h.b16 %v818
          %v1721 = vunpack.c.l.b16 %v819
          %v1722 = vunpack.c.h.b16 %v819
          %v1723 = vunpack.c.l.b16 %v820
          %v1724 = vunpack.c.h.b16 %v820
          %v1725 = vunpack.c.l.b16 %v821
          %v1726 = vunpack.c.h.b16 %v821
          %v1727 = vunpack.c.l.b16 %v822
          %v1728 = vunpack.c.h.b16 %v822
          %v1729 = vunpack.c.l.b16 %v823
          %v1730 = vunpack.c.h.b16 %v823
          %v1731 = vunpack.c.l.b16 %v824
          %v1732 = vunpack.c.h.b16 %v824
          %v1733 = vunpack.c.l.b16 %v825
          %v1734 = vunpack.c.h.b16 %v825
          %v1735 = vunpack.c.l.b16 %v826
          %v1736 = vunpack.c.h.b16 %v826
          %v1737 = vunpack.c.l.b16 %v827
          %v1738 = vunpack.c.h.b16 %v827
          %v1739 = vunpack.c.l.b16 %v828
          %v1740 = vunpack.c.h.b16 %v828
          %v1741 = vunpack.c.l.b16 %v829
          %v1742 = vunpack.c.h.b16 %v829
          %v1743 = vunpack.c.l.b16 %v830
          %v1744 = vunpack.c.h.b16 %v830
          %v1745 = vunpack.c.l.b16 %v831
          %v1746 = vunpack.c.h.b16 %v831
          %v1747 = vunpack.c.l.b16 %v832
          %v1748 = vunpack.c.h.b16 %v832
          %v1749 = vunpack.c.l.b16 %v833
          %v1750 = vunpack.c.h.b16 %v833
          %v1751 = vunpack.c.l.b16 %v834
          %v1752 = vunpack.c.h.b16 %v834
          %v1753 = vunpack.c.l.b16 %v835
          %v1754 = vunpack.c.h.b16 %v835
          %v1755 = vunpack.c.l.b16 %v836
          %v1756 = vunpack.c.h.b16 %v836
          %v1757 = vunpack.c.l.b16 %v837
          %v1758 = vunpack.c.h.b16 %v837
          %v1759 = vunpack.c.l.b16 %v838
          %v1760 = vunpack.c.h.b16 %v838
          %v1761 = vunpack.c.l.b16 %v839
          %v1762 = vunpack.c.h.b16 %v839
          %v1763 = vunpack.c.l.b16 %v840
          %v1764 = vunpack.c.h.b16 %v840
          %v1765 = vunpack.c.l.b16 %v841
          %v1766 = vunpack.c.h.b16 %v841
          %v1767 = vunpack.c.l.b16 %v842
          %v1768 = vunpack.c.h.b16 %v842
          %v1769 = vpack.c.b16 %v1199, %v1193
          %v1770 = vpack.c.b16 %v1200, %v1194
          %v1771 = vpack.c.b16 %v1201, %v1195
          %v1772 = vpack.c.b16 %v1202, %v1196
          %v1773 = vpack.c.b16 %v1203, %v1197
          %v1774 = vpack.c.b16 %v1204, %v1198
          %v1775 = vpack.c.b16 %v1211, %v1205
          %v1776 = vpack.c.b16 %v1212, %v1206
          %v1777 = vpack.c.b16 %v1213, %v1207
          %v1778 = vpack.c.b16 %v1214, %v1208
          %v1779 = vpack.c.b16 %v1215, %v1209
          %v1780 = vpack.c.b16 %v1216, %v1210
          %v1781 = vpack.c.b16 %v1223, %v1217
          %v1782 = vpack.c.b16 %v1224, %v1218
          %v1783 = vpack.c.b16 %v1225, %v1219
          %v1784 = vpack.c.b16 %v1226, %v1220
          %v1785 = vpack.c.b16 %v1227, %v1221
          %v1786 = vpack.c.b16 %v1228, %v1222
          %v1787 = vpack.c.b16 %v1235, %v1229
          %v1788 = vpack.c.b16 %v1236, %v1230
          %v1789 = vpack.c.b16 %v1237, %v1231
          %v1790 = vpack.c.b16 %v1238, %v1232
          %v1791 = vpack.c.b16 %v1239, %v1233
          %v1792 = vpack.c.b16 %v1240, %v1234
          %v1793 = vpack.c.b16 %v1247, %v1241
          %v1794 = vpack.c.b16 %v1248, %v1242
          %v1795 = vpack.c.b16 %v1249, %v1243
          %v1796 = vpack.c.b16 %v1250, %v1244
          %v1797 = vpack.c.b16 %v1251, %v1245
          %v1798 = vpack.c.b16 %v1252, %v1246
          %v1799 = vpack.c.b16 %v1259, %v1253
          %v1800 = vpack.c.b16 %v1260, %v1254
          %v1801 = vpack.c.b16 %v1261, %v1255
          %v1802 = vpack.c.b16 %v1262, %v1256
          %v1803 = vpack.c.b16 %v1263, %v1257
          %v1804 = vpack.c.b16 %v1264, %v1258
          %v1805 = vpack.c.b16 %v1271, %v1265
          %v1806 = vpack.c.b16 %v1272, %v1266
          %v1807 = vpack.c.b16 %v1273, %v1267
          %v1808 = vpack.c.b16 %v1274, %v1268
          %v1809 = vpack.c.b16 %v1275, %v1269
          %v1810 = vpack.c.b16 %v1276, %v1270
          %v1811 = vpack.c.b16 %v1283, %v1277
          %v1812 = vpack.c.b16 %v1284, %v1278
          %v1813 = vpack.c.b16 %v1285, %v1279
          %v1814 = vpack.c.b16 %v1286, %v1280
          %v1815 = vpack.c.b16 %v1287, %v1281
          %v1816 = vpack.c.b16 %v1288, %v1282
          %v1817 = vpack.c.b16 %v1295, %v1289
          %v1818 = vpack.c.b16 %v1296, %v1290
          %v1819 = vpack.c.b16 %v1297, %v1291
          %v1820 = vpack.c.b16 %v1298, %v1292
          %v1821 = vpack.c.b16 %v1299, %v1293
          %v1822 = vpack.c.b16 %v1300, %v1294
          %v1823 = vpack.c.b16 %v1307, %v1301
          %v1824 = vpack.c.b16 %v1308, %v1302
          %v1825 = vpack.c.b16 %v1309, %v1303
          %v1826 = vpack.c.b16 %v1310, %v1304
          %v1827 = vpack.c.b16 %v1311, %v1305
          %v1828 = vpack.c.b16 %v1312, %v1306
          %v1829 = vpack.c.b16 %v1319, %v1313
          %v1830 = vpack.c.b16 %v1320, %v1314
          %v1831 = vpack.c.b16 %v1321, %v1315
          %v1832 = vpack.c.b16 %v1322, %v1316
          %v1833 = vpack.c.b16 %v1323, %v1317
          %v1834 = vpack.c.b16 %v1324, %v1318
          %v1835 = vpack.c.b16 %v1331, %v1325
          %v1836 = vpack.c.b16 %v1332, %v1326
          %v1837 = vpack.c.b16 %v1333, %v1327
          %v1838 = vpack.c.b16 %v1334, %v1328
          %v1839 = vpack.c.b16 %v1335, %v1329
          %v1840 = vpack.c.b16 %v1336, %v1330
          %v1841 = vpack.c.b16 %v1343, %v1337
          %v1842 = vpack.c.b16 %v1344, %v1338
          %v1843 = vpack.c.b16 %v1345, %v1339
          %v1844 = vpack.c.b16 %v1346, %v1340
          %v1845 = vpack.c.b16 %v1347, %v1341
          %v1846 = vpack.c.b16 %v1348, %v1342
          %v1847 = vpack.c.b16 %v1355, %v1349
          %v1848 = vpack.c.b16 %v1356, %v1350
          %v1849 = vpack.c.b16 %v1357, %v1351
          %v1850 = vpack.c.b16 %v1358, %v1352
          %v1851 = vpack.c.b16 %v1359, %v1353
          %v1852 = vpack.c.b16 %v1360, %v1354
          %v1853 = vpack.c.b16 %v1367, %v1361
          %v1854 = vpack.c.b16 %v1368, %v1362
          %v1855 = vpack.c.b16 %v1369, %v1363
          %v1856 = vpack.c.b16 %v1370, %v1364
          %v1857 = vpack.c.b16 %v1371, %v1365
          %v1858 = vpack.c.b16 %v1372, %v1366
          %v1859 = vpack.c.b16 %v1379, %v1373
          %v1860 = vpack.c.b16 %v1380, %v1374
          %v1861 = vpack.c.b16 %v1381, %v1375
          %v1862 = vpack.c.b16 %v1382, %v1376
          %v1863 = vpack.c.b16 %v1383, %v1377
          %v1864 = vpack.c.b16 %v1384, %v1378
          %v1865 = vpack.c.b16 %v1391, %v1385
          %v1866 = vpack.c.b16 %v1392, %v1386
          %v1867 = vpack.c.b16 %v1393, %v1387
          %v1868 = vpack.c.b16 %v1394, %v1388
          %v1869 = vpack.c.b16 %v1395, %v1389
          %v1870 = vpack.c.b16 %v1396, %v1390
          %v1871 = vpack.c.b16 %v1403, %v1397
          %v1872 = vpack.c.b16 %v1404, %v1398
          %v1873 = vpack.c.b16 %v1405, %v1399
          %v1874 = vpack.c.b16 %v1406, %v1400
          %v1875 = vpack.c.b16 %v1407, %v1401
          %v1876 = vpack.c.b16 %v1408, %v1402
          %v1877 = vpack.c.b16 %v1415, %v1409
          %v1878 = vpack.c.b16 %v1416, %v1410
          %v1879 = vpack.c.b16 %v1417, %v1411
          %v1880 = vpack.c.b16 %v1418, %v1412
          %v1881 = vpack.c.b16 %v1419, %v1413
          %v1882 = vpack.c.b16 %v1420, %v1414
          %v1883 = vpack.c.b16 %v1427, %v1421
          %v1884 = vpack.c.b16 %v1428, %v1422
          %v1885 = vpack.c.b16 %v1429, %v1423
          %v1886 = vpack.c.b16 %v1430, %v1424
          %v1887 = vpack.c.b16 %v1431, %v1425
          %v1888 = vpack.c.b16 %v1432, %v1426
          %v1889 = vpack.c.b16 %v1439, %v1433
          %v1890 = vpack.c.b16 %v1440, %v1434
          %v1891 = vpack.c.b16 %v1441, %v1435
          %v1892 = vpack.c.b16 %v1442, %v1436
          %v1893 = vpack.c.b16 %v1443, %v1437
          %v1894 = vpack.c.b16 %v1444, %v1438
          %v1895 = vpack.c.b16 %v1451, %v1445
          %v1896 = vpack.c.b16 %v1452, %v1446
          %v1897 = vpack.c.b16 %v1453, %v1447
          %v1898 = vpack.c.b16 %v1454, %v1448
          %v1899 = vpack.c.b16 %v1455, %v1449
          %v1900 = vpack.c.b16 %v1456, %v1450
          %v1901 = vpack.c.b16 %v1463, %v1457
          %v1902 = vpack.c.b16 %v1464, %v1458
          %v1903 = vpack.c.b16 %v1465, %v1459
          %v1904 = vpack.c.b16 %v1466, %v1460
          %v1905 = vpack.c.b16 %v1467, %v1461
          %v1906 = vpack.c.b16 %v1468, %v1462
          %v1907 = vpack.c.b16 %v1475, %v1469
          %v1908 = vpack.c.b16 %v1476, %v1470
          %v1909 = vpack.c.b16 %v1477, %v1471
          %v1910 = vpack.c.b16 %v1478, %v1472
          %v1911 = vpack.c.b16 %v1479, %v1473
          %v1912 = vpack.c.b16 %v1480, %v1474
          %v1913 = vpack.c.b16 %v1487, %v1481
          %v1914 = vpack.c.b16 %v1488, %v1482
          %v1915 = vpack.c.b16 %v1489, %v1483
          %v1916 = vpack.c.b16 %v1490, %v1484
          %v1917 = vpack.c.b16 %v1491, %v1485
          %v1918 = vpack.c.b16 %v1492, %v1486
          %v1919 = vpack.c.b16 %v1499, %v1493
          %v1920 = vpack.c.b16 %v1500, %v1494
          %v1921 = vpack.c.b16 %v1501, %v1495
          %v1922 = vpack.c.b16 %v1502, %v1496
          %v1923 = vpack.c.b16 %v1503, %v1497
          %v1924 = vpack.c.b16 %v1504, %v1498
          %v1925 = vpack.c.b16 %v1511, %v1505
          %v1926 = vpack.c.b16 %v1512, %v1506
          %v1927 = vpack.c.b16 %v1513, %v1507
          %v1928 = vpack.c.b16 %v1514, %v1508
          %v1929 = vpack.c.b16 %v1515, %v1509
          %v1930 = vpack.c.b16 %v1516, %v1510
          %v1931 = vpack.c.b16 %v1523, %v1517
          %v1932 = vpack.c.b16 %v1524, %v1518
          %v1933 = vpack.c.b16 %v1525, %v1519
          %v1934 = vpack.c.b16 %v1526, %v1520
          %v1935 = vpack.c.b16 %v1527, %v1521
          %v1936 = vpack.c.b16 %v1528, %v1522
          %v1937 = vpack.c.b16 %v1535, %v1529
          %v1938 = vpack.c.b16 %v1536, %v1530
          %v1939 = vpack.c.b16 %v1537, %v1531
          %v1940 = vpack.c.b16 %v1538, %v1532
          %v1941 = vpack.c.b16 %v1539, %v1533
          %v1942 = vpack.c.b16 %v1540, %v1534
          %v1943 = vpack.c.b16 %v1547, %v1541
          %v1944 = vpack.c.b16 %v1548, %v1542
          %v1945 = vpack.c.b16 %v1549, %v1543
          %v1946 = vpack.c.b16 %v1550, %v1544
          %v1947 = vpack.c.b16 %v1551, %v1545
          %v1948 = vpack.c.b16 %v1552, %v1546
          %v1949 = vpack.c.b16 %v1559, %v1553
          %v1950 = vpack.c.b16 %v1560, %v1554
          %v1951 = vpack.c.b16 %v1561, %v1555
          %v1952 = vpack.c.b16 %v1562, %v1556
          %v1953 = vpack.c.b16 %v1563, %v1557
          %v1954 = vpack.c.b16 %v1564, %v1558
          %v1955 = vpack.c.b16 %v1571, %v1565
          %v1956 = vpack.c.b16 %v1572, %v1566
          %v1957 = vpack.c.b16 %v1573, %v1567
          %v1958 = vpack.c.b16 %v1574, %v1568
          %v1959 = vpack.c.b16 %v1575, %v1569
          %v1960 = vpack.c.b16 %v1576, %v1570
          %v1961 = vpack.c.b16 %v1583, %v1577
          %v1962 = vpack.c.b16 %v1584, %v1578
          %v1963 = vpack.c.b16 %v1585, %v1579
          %v1964 = vpack.c.b16 %v1586, %v1580
          %v1965 = vpack.c.b16 %v1587, %v1581
          %v1966 = vpack.c.b16 %v1588, %v1582
          %v1967 = vpack.c.b16 %v1595, %v1589
          %v1968 = vpack.c.b16 %v1596, %v1590
          %v1969 = vpack.c.b16 %v1597, %v1591
          %v1970 = vpack.c.b16 %v1598, %v1592
          %v1971 = vpack.c.b16 %v1599, %v1593
          %v1972 = vpack.c.b16 %v1600, %v1594
          %v1973 = vpack.c.b16 %v1607, %v1601
          %v1974 = vpack.c.b16 %v1608, %v1602
          %v1975 = vpack.c.b16 %v1609, %v1603
          %v1976 = vpack.c.b16 %v1610, %v1604
          %v1977 = vpack.c.b16 %v1611, %v1605
          %v1978 = vpack.c.b16 %v1612, %v1606
          %v1979 = vpack.c.b16 %v1619, %v1613
          %v1980 = vpack.c.b16 %v1620, %v1614
          %v1981 = vpack.c.b16 %v1621, %v1615
          %v1982 = vpack.c.b16 %v1622, %v1616
          %v1983 = vpack.c.b16 %v1623, %v1617
          %v1984 = vpack.c.b16 %v1624, %v1618
          %v1985 = vpack.c.b16 %v1631, %v1625
          %v1986 = vpack.c.b16 %v1632, %v1626
          %v1987 = vpack.c.b16 %v1633, %v1627
          %v1988 = vpack.c.b16 %v1634, %v1628
          %v1989 = vpack.c.b16 %v1635, %v1629
          %v1990 = vpack.c.b16 %v1636, %v1630
          %v1991 = vpack.c.b16 %v1643, %v1637
          %v1992 = vpack.c.b16 %v1644, %v1638
          %v1993 = vpack.c.b16 %v1645, %v1639
          %v1994 = vpack.c.b16 %v1646, %v1640
          %v1995 = vpack.c.b16 %v1647, %v1641
          %v1996 = vpack.c.b16 %v1648, %v1642
          %v1997 = vpack.c.b16 %v1655, %v1649
          %v1998 = vpack.c.b16 %v1656, %v1650
          %v1999 = vpack.c.b16 %v1657, %v1651
          %v2000 = vpack.c.b16 %v1658, %v1652
          %v2001 = vpack.c.b16 %v1659, %v1653
          %v2002 = vpack.c.b16 %v1660, %v1654
          %v2003 = vpack.c.b16 %v1667, %v1661
          %v2004 = vpack.c.b16 %v1668, %v1662
          %v2005 = vpack.c.b16 %v1669, %v1663
          %v2006 = vpack.c.b16 %v1670, %v1664
          %v2007 = vpack.c.b16 %v1671, %v1665
          %v2008 = vpack.c.b16 %v1672, %v1666
          %v2009 = vpack.c.b16 %v1679, %v1673
          %v2010 = vpack.c.b16 %v1680, %v1674
          %v2011 = vpack.c.b16 %v1681, %v1675
          %v2012 = vpack.c.b16 %v1682, %v1676
          %v2013 = vpack.c.b16 %v1683, %v1677
          %v2014 = vpack.c.b16 %v1684, %v1678
          %v2015 = vpack.c.b16 %v1691, %v1685
          %v2016 = vpack.c.b16 %v1692, %v1686
          %v2017 = vpack.c.b16 %v1693, %v1687
          %v2018 = vpack.c.b16 %v1694, %v1688
          %v2019 = vpack.c.b16 %v1695, %v1689
          %v2020 = vpack.c.b16 %v1696, %v1690
          %v2021 = vpack.c.b16 %v1703, %v1697
          %v2022 = vpack.c.b16 %v1704, %v1698
          %v2023 = vpack.c.b16 %v1705, %v1699
          %v2024 = vpack.c.b16 %v1706, %v1700
          %v2025 = vpack.c.b16 %v1707, %v1701
          %v2026 = vpack.c.b16 %v1708, %v1702
          %v2027 = vpack.c.b16 %v1715, %v1709
          %v2028 = vpack.c.b16 %v1716, %v1710
          %v2029 = vpack.c.b16 %v1717, %v1711
          %v2030 = vpack.c.b16 %v1718, %v1712
          %v2031 = vpack.c.b16 %v1719, %v1713
          %v2032 = vpack.c.b16 %v1720, %v1714
          %v2033 = vpack.c.b16 %v1727, %v1721
          %v2034 = vpack.c.b16 %v1728, %v1722
          %v2035 = vpack.c.b16 %v1729, %v1723
          %v2036 = vpack.c.b16 %v1730, %v1724
          %v2037 = vpack.c.b16 %v1731, %v1725
          %v2038 = vpack.c.b16 %v1732, %v1726
          %v2039 = vpack.c.b16 %v1739, %v1733
          %v2040 = vpack.c.b16 %v1740, %v1734
          %v2041 = vpack.c.b16 %v1741, %v1735
          %v2042 = vpack.c.b16 %v1742, %v1736
          %v2043 = vpack.c.b16 %v1743, %v1737
          %v2044 = vpack.c.b16 %v1744, %v1738
          %v2045 = vpack.c.b16 %v1751, %v1745
          %v2046 = vpack.c.b16 %v1752, %v1746
          %v2047 = vpack.c.b16 %v1753, %v1747
          %v2048 = vpack.c.b16 %v1754, %v1748
          %v2049 = vpack.c.b16 %v1755, %v1749
          %v2050 = vpack.c.b16 %v1756, %v1750
          %v2051 = vpack.c.b16 %v1763, %v1757
          %v2052 = vpack.c.b16 %v1764, %v1758
          %v2053 = vpack.c.b16 %v1765, %v1759
          %v2054 = vpack.c.b16 %v1766, %v1760
          %v2055 = vpack.c.b16 %v1767, %v1761
          %v2056 = vpack.c.b16 %v1768, %v1762
          %2345 = vmatprep.subr.bf16.mxu0 %v1770
          %2346 = vmatpush1.bf16.msra.mxu0 %v1769
          %2347 = vmatprep.subr.bf16.mxu0 %v1776
          %2348 = vmatpush1.bf16.msra.mxu0 %v1775
          %2349 = vmatprep.subr.bf16.mxu0 %v1782
          %2350 = vmatpush1.bf16.msra.mxu0 %v1781
          %2351 = vmatprep.subr.bf16.mxu0 %v1788
          %2352 = vmatpush1.bf16.msra.mxu0 %v1787
          %2353 = vmatprep.subr.bf16.mxu0 %v1794
          %2354 = vmatpush1.bf16.msra.mxu0 %v1793
          %2355 = vmatprep.subr.bf16.mxu0 %v1800
          %2356 = vmatpush1.bf16.msra.mxu0 %v1799
          %2357 = vmatprep.subr.bf16.mxu0 %v1806
          %2358 = vmatpush1.bf16.msra.mxu0 %v1805
          %2359 = vmatprep.subr.bf16.mxu0 %v1812
          %2360 = vmatpush1.bf16.msra.mxu0 %v1811
          %2361 = vmatprep.subr.bf16.mxu0 %v1818
          %2362 = vmatpush1.bf16.msra.mxu0 %v1817
          %2363 = vmatprep.subr.bf16.mxu0 %v1824
          %2364 = vmatpush1.bf16.msra.mxu0 %v1823
          %2365 = vmatprep.subr.bf16.mxu0 %v1830
          %2366 = vmatpush1.bf16.msra.mxu0 %v1829
          %2367 = vmatprep.subr.bf16.mxu0 %v1836
          %2368 = vmatpush1.bf16.msra.mxu0 %v1835
          %2369 = vmatprep.subr.bf16.mxu0 %v1842
          %2370 = vmatpush1.bf16.msra.mxu0 %v1841
          %2371 = vmatprep.subr.bf16.mxu0 %v1848
          %2372 = vmatpush1.bf16.msra.mxu0 %v1847
          %2373 = vmatprep.subr.bf16.mxu0 %v1854
          %2374 = vmatpush1.bf16.msra.mxu0 %v1853
          %2375 = vmatprep.subr.bf16.mxu0 %v1860
          %2376 = vmatpush1.bf16.msra.mxu0 %v1859
          %2377 = vmatprep.mubr.bf16.mxu0 %v894
          %2378 = vmatmul.mubr.bf16.gmra.mrb[0].mxu0 %v893
          %v2379 = vpop.f32.mrb[0].mxu0
          %v2380 = vadd.f32 %v848, %v2379
          %v2381 = vpop.f32.mrb[0].mxu0
          %v2382 = vadd.f32 %v852, %v2381
          %v2383 = vpop.f32.mrb[0].mxu0
          %v2384 = vadd.f32 %v848, %v2383
          %v2385 = vpop.f32.mrb[0].mxu0
          %v2386 = vadd.f32 %v852, %v2385
          %2387 = vdwg.mxu0
          %2388 = vmatprep.subr.bf16.mxu0 %v1866
          %2389 = vmatpush1.bf16.msra.mxu0 %v1865
          %2390 = vmatprep.subr.bf16.mxu0 %v1872
          %2391 = vmatpush1.bf16.msra.mxu0 %v1871
          %2392 = vmatprep.subr.bf16.mxu0 %v1878
          %2393 = vmatpush1.bf16.msra.mxu0 %v1877
          %2394 = vmatprep.subr.bf16.mxu0 %v1884
          %2395 = vmatpush1.bf16.msra.mxu0 %v1883
          %2396 = vmatprep.subr.bf16.mxu0 %v1890
          %2397 = vmatpush1.bf16.msra.mxu0 %v1889
          %2398 = vmatprep.subr.bf16.mxu0 %v1896
          %2399 = vmatpush1.bf16.msra.mxu0 %v1895
          %2400 = vmatprep.subr.bf16.mxu0 %v1902
          %2401 = vmatpush1.bf16.msra.mxu0 %v1901
          %2402 = vmatprep.subr.bf16.mxu0 %v1908
          %2403 = vmatpush1.bf16.msra.mxu0 %v1907
          %2404 = vmatprep.subr.bf16.mxu0 %v1914
          %2405 = vmatpush1.bf16.msra.mxu0 %v1913
          %2406 = vmatprep.subr.bf16.mxu0 %v1920
          %2407 = vmatpush1.bf16.msra.mxu0 %v1919
          %2408 = vmatprep.subr.bf16.mxu0 %v1926
          %2409 = vmatpush1.bf16.msra.mxu0 %v1925
          %2410 = vmatprep.subr.bf16.mxu0 %v1932
          %2411 = vmatpush1.bf16.msra.mxu0 %v1931
          %2412 = vmatprep.subr.bf16.mxu0 %v1938
          %2413 = vmatpush1.bf16.msra.mxu0 %v1937
          %2414 = vmatprep.subr.bf16.mxu0 %v1944
          %2415 = vmatpush1.bf16.msra.mxu0 %v1943
          %2416 = vmatprep.subr.bf16.mxu0 %v1950
          %2417 = vmatpush1.bf16.msra.mxu0 %v1949
          %2418 = vmatprep.subr.bf16.mxu0 %v1956
          %2419 = vmatpush1.bf16.msra.mxu0 %v1955
          %2420 = vmatprep.mubr.bf16.mxu0 %v896
          %2421 = vmatmul.mubr.bf16.gmra.mrb[0].mxu0 %v895
          %v2422 = vpop.f32.mrb[0].mxu0
          %v2423 = vadd.f32 %v2380, %v2422
          %v2424 = vpop.f32.mrb[0].mxu0
          %v2425 = vadd.f32 %v2382, %v2424
          %v2426 = vpop.f32.mrb[0].mxu0
          %v2427 = vadd.f32 %v2384, %v2426
          %v2428 = vpop.f32.mrb[0].mxu0
          %v2429 = vadd.f32 %v2386, %v2428
          %2430 = vdwg.mxu0
          %2431 = vmatprep.subr.bf16.mxu0 %v1962
          %2432 = vmatpush1.bf16.msra.mxu0 %v1961
          %2433 = vmatprep.subr.bf16.mxu0 %v1968
          %2434 = vmatpush1.bf16.msra.mxu0 %v1967
          %2435 = vmatprep.subr.bf16.mxu0 %v1974
          %2436 = vmatpush1.bf16.msra.mxu0 %v1973
          %2437 = vmatprep.subr.bf16.mxu0 %v1980
          %2438 = vmatpush1.bf16.msra.mxu0 %v1979
          %2439 = vmatprep.subr.bf16.mxu0 %v1986
          %2440 = vmatpush1.bf16.msra.mxu0 %v1985
          %2441 = vmatprep.subr.bf16.mxu0 %v1992
          %2442 = vmatpush1.bf16.msra.mxu0 %v1991
          %2443 = vmatprep.subr.bf16.mxu0 %v1998
          %2444 = vmatpush1.bf16.msra.mxu0 %v1997
          %2445 = vmatprep.subr.bf16.mxu0 %v2004
          %2446 = vmatpush1.bf16.msra.mxu0 %v2003
          %2447 = vmatprep.subr.bf16.mxu0 %v2010
          %2448 = vmatpush1.bf16.msra.mxu0 %v2009
          %2449 = vmatprep.subr.bf16.mxu0 %v2016
          %2450 = vmatpush1.bf16.msra.mxu0 %v2015
          %2451 = vmatprep.subr.bf16.mxu0 %v2022
          %2452 = vmatpush1.bf16.msra.mxu0 %v2021
          %2453 = vmatprep.subr.bf16.mxu0 %v2028
          %2454 = vmatpush1.bf16.msra.mxu0 %v2027
          %2455 = vmatprep.subr.bf16.mxu0 %v2034
          %2456 = vmatpush1.bf16.msra.mxu0 %v2033
          %2457 = vmatprep.subr.bf16.mxu0 %v2040
          %2458 = vmatpush1.bf16.msra.mxu0 %v2039
          %2459 = vmatprep.subr.bf16.mxu0 %v2046
          %2460 = vmatpush1.bf16.msra.mxu0 %v2045
          %2461 = vmatprep.subr.bf16.mxu0 %v2052
          %2462 = vmatpush1.bf16.msra.mxu0 %v2051
          %2463 = vmatprep.mubr.bf16.mxu0 %v898
          %2464 = vmatmul.mubr.bf16.gmra.mrb[0].mxu0 %v897
          %v2465 = vpop.f32.mrb[0].mxu0
          %v2466 = vadd.f32 %v2423, %v2465
          %v2467 = vpop.f32.mrb[0].mxu0
          %v2468 = vadd.f32 %v2425, %v2467
          %v2469 = vpop.f32.mrb[0].mxu0
          %v2470 = vadd.f32 %v2427, %v2469
          %v2471 = vpop.f32.mrb[0].mxu0
          %v2472 = vadd.f32 %v2429, %v2471
          %2473 = vdwg.mxu0
          %2474 = vmatprep.subr.bf16.mxu0 %v1772
          %2475 = vmatpush1.bf16.msra.mxu0 %v1771
          %2476 = vmatprep.subr.bf16.mxu0 %v1778
          %2477 = vmatpush1.bf16.msra.mxu0 %v1777
          %2478 = vmatprep.subr.bf16.mxu0 %v1784
          %2479 = vmatpush1.bf16.msra.mxu0 %v1783
          %2480 = vmatprep.subr.bf16.mxu0 %v1790
          %2481 = vmatpush1.bf16.msra.mxu0 %v1789
          %2482 = vmatprep.subr.bf16.mxu0 %v1796
          %2483 = vmatpush1.bf16.msra.mxu0 %v1795
          %2484 = vmatprep.subr.bf16.mxu0 %v1802
          %2485 = vmatpush1.bf16.msra.mxu0 %v1801
          %2486 = vmatprep.subr.bf16.mxu0 %v1808
          %2487 = vmatpush1.bf16.msra.mxu0 %v1807
          %2488 = vmatprep.subr.bf16.mxu0 %v1814
          %2489 = vmatpush1.bf16.msra.mxu0 %v1813
          %2490 = vmatprep.subr.bf16.mxu0 %v1820
          %2491 = vmatpush1.bf16.msra.mxu0 %v1819
          %2492 = vmatprep.subr.bf16.mxu0 %v1826
          %2493 = vmatpush1.bf16.msra.mxu0 %v1825
          %2494 = vmatprep.subr.bf16.mxu0 %v1832
          %2495 = vmatpush1.bf16.msra.mxu0 %v1831
          %2496 = vmatprep.subr.bf16.mxu0 %v1838
          %2497 = vmatpush1.bf16.msra.mxu0 %v1837
          %2498 = vmatprep.subr.bf16.mxu0 %v1844
          %2499 = vmatpush1.bf16.msra.mxu0 %v1843
          %2500 = vmatprep.subr.bf16.mxu0 %v1850
          %2501 = vmatpush1.bf16.msra.mxu0 %v1849
          %2502 = vmatprep.subr.bf16.mxu0 %v1856
          %2503 = vmatpush1.bf16.msra.mxu0 %v1855
          %2504 = vmatprep.subr.bf16.mxu0 %v1862
          %2505 = vmatpush1.bf16.msra.mxu0 %v1861
          %2506 = vmatprep.mubr.bf16.mxu0 %v894
          %2507 = vmatmul.mubr.bf16.gmra.mrb[0].mxu0 %v893
          %v2508 = vpop.f32.mrb[0].mxu0
          %v2509 = vadd.f32 %v856, %v2508
          %v2510 = vpop.f32.mrb[0].mxu0
          %v2511 = vadd.f32 %v860, %v2510
          %v2512 = vpop.f32.mrb[0].mxu0
          %v2513 = vadd.f32 %v856, %v2512
          %v2514 = vpop.f32.mrb[0].mxu0
          %v2515 = vadd.f32 %v860, %v2514
          %2516 = vdwg.mxu0
          %2517 = vmatprep.subr.bf16.mxu0 %v1868
          %2518 = vmatpush1.bf16.msra.mxu0 %v1867
          %2519 = vmatprep.subr.bf16.mxu0 %v1874
          %2520 = vmatpush1.bf16.msra.mxu0 %v1873
          %2521 = vmatprep.subr.bf16.mxu0 %v1880
          %2522 = vmatpush1.bf16.msra.mxu0 %v1879
          %2523 = vmatprep.subr.bf16.mxu0 %v1886
          %2524 = vmatpush1.bf16.msra.mxu0 %v1885
          %2525 = vmatprep.subr.bf16.mxu0 %v1892
          %2526 = vmatpush1.bf16.msra.mxu0 %v1891
          %2527 = vmatprep.subr.bf16.mxu0 %v1898
          %2528 = vmatpush1.bf16.msra.mxu0 %v1897
          %2529 = vmatprep.subr.bf16.mxu0 %v1904
          %2530 = vmatpush1.bf16.msra.mxu0 %v1903
          %2531 = vmatprep.subr.bf16.mxu0 %v1910
          %2532 = vmatpush1.bf16.msra.mxu0 %v1909
          %2533 = vmatprep.subr.bf16.mxu0 %v1916
          %2534 = vmatpush1.bf16.msra.mxu0 %v1915
          %2535 = vmatprep.subr.bf16.mxu0 %v1922
          %2536 = vmatpush1.bf16.msra.mxu0 %v1921
          %2537 = vmatprep.subr.bf16.mxu0 %v1928
          %2538 = vmatpush1.bf16.msra.mxu0 %v1927
          %2539 = vmatprep.subr.bf16.mxu0 %v1934
          %2540 = vmatpush1.bf16.msra.mxu0 %v1933
          %2541 = vmatprep.subr.bf16.mxu0 %v1940
          %2542 = vmatpush1.bf16.msra.mxu0 %v1939
          %2543 = vmatprep.subr.bf16.mxu0 %v1946
          %2544 = vmatpush1.bf16.msra.mxu0 %v1945
          %2545 = vmatprep.subr.bf16.mxu0 %v1952
          %2546 = vmatpush1.bf16.msra.mxu0 %v1951
          %2547 = vmatprep.subr.bf16.mxu0 %v1958
          %2548 = vmatpush1.bf16.msra.mxu0 %v1957
          %2549 = vmatprep.mubr.bf16.mxu0 %v896
          %2550 = vmatmul.mubr.bf16.gmra.mrb[0].mxu0 %v895
          %v2551 = vpop.f32.mrb[0].mxu0
          %v2552 = vadd.f32 %v2509, %v2551
          %v2553 = vpop.f32.mrb[0].mxu0
          %v2554 = vadd.f32 %v2511, %v2553
          %v2555 = vpop.f32.mrb[0].mxu0
          %v2556 = vadd.f32 %v2513, %v2555
          %v2557 = vpop.f32.mrb[0].mxu0
          %v2558 = vadd.f32 %v2515, %v2557
          %2559 = vdwg.mxu0
          %2560 = vmatprep.subr.bf16.mxu0 %v1964
          %2561 = vmatpush1.bf16.msra.mxu0 %v1963
          %2562 = vmatprep.subr.bf16.mxu0 %v1970
          %2563 = vmatpush1.bf16.msra.mxu0 %v1969
          %2564 = vmatprep.subr.bf16.mxu0 %v1976
          %2565 = vmatpush1.bf16.msra.mxu0 %v1975
          %2566 = vmatprep.subr.bf16.mxu0 %v1982
          %2567 = vmatpush1.bf16.msra.mxu0 %v1981
          %2568 = vmatprep.subr.bf16.mxu0 %v1988
          %2569 = vmatpush1.bf16.msra.mxu0 %v1987
          %2570 = vmatprep.subr.bf16.mxu0 %v1994
          %2571 = vmatpush1.bf16.msra.mxu0 %v1993
          %2572 = vmatprep.subr.bf16.mxu0 %v2000
          %2573 = vmatpush1.bf16.msra.mxu0 %v1999
          %2574 = vmatprep.subr.bf16.mxu0 %v2006
          %2575 = vmatpush1.bf16.msra.mxu0 %v2005
          %2576 = vmatprep.subr.bf16.mxu0 %v2012
          %2577 = vmatpush1.bf16.msra.mxu0 %v2011
          %2578 = vmatprep.subr.bf16.mxu0 %v2018
          %2579 = vmatpush1.bf16.msra.mxu0 %v2017
          %2580 = vmatprep.subr.bf16.mxu0 %v2024
          %2581 = vmatpush1.bf16.msra.mxu0 %v2023
          %2582 = vmatprep.subr.bf16.mxu0 %v2030
          %2583 = vmatpush1.bf16.msra.mxu0 %v2029
          %2584 = vmatprep.subr.bf16.mxu0 %v2036
          %2585 = vmatpush1.bf16.msra.mxu0 %v2035
          %2586 = vmatprep.subr.bf16.mxu0 %v2042
          %2587 = vmatpush1.bf16.msra.mxu0 %v2041
          %2588 = vmatprep.subr.bf16.mxu0 %v2048
          %2589 = vmatpush1.bf16.msra.mxu0 %v2047
          %2590 = vmatprep.subr.bf16.mxu0 %v2054
          %2591 = vmatpush1.bf16.msra.mxu0 %v2053
          %2592 = vmatprep.mubr.bf16.mxu0 %v898
          %2593 = vmatmul.mubr.bf16.gmra.mrb[0].mxu0 %v897
          %v2594 = vpop.f32.mrb[0].mxu0
          %v2595 = vadd.f32 %v2552, %v2594
          %v2596 = vpop.f32.mrb[0].mxu0
          %v2597 = vadd.f32 %v2554, %v2596
          %v2598 = vpop.f32.mrb[0].mxu0
          %v2599 = vadd.f32 %v2556, %v2598
          %v2600 = vpop.f32.mrb[0].mxu0
          %v2601 = vadd.f32 %v2558, %v2600
          %2602 = vdwg.mxu0
          %2603 = vmatprep.subr.bf16.mxu0 %v1774
          %2604 = vmatpush1.bf16.msra.mxu0 %v1773
          %2605 = vmatprep.subr.bf16.mxu0 %v1780
          %2606 = vmatpush1.bf16.msra.mxu0 %v1779
          %2607 = vmatprep.subr.bf16.mxu0 %v1786
          %2608 = vmatpush1.bf16.msra.mxu0 %v1785
          %2609 = vmatprep.subr.bf16.mxu0 %v1792
          %2610 = vmatpush1.bf16.msra.mxu0 %v1791
          %2611 = vmatprep.subr.bf16.mxu0 %v1798
          %2612 = vmatpush1.bf16.msra.mxu0 %v1797
          %2613 = vmatprep.subr.bf16.mxu0 %v1804
          %2614 = vmatpush1.bf16.msra.mxu0 %v1803
          %2615 = vmatprep.subr.bf16.mxu0 %v1810
          %2616 = vmatpush1.bf16.msra.mxu0 %v1809
          %2617 = vmatprep.subr.bf16.mxu0 %v1816
          %2618 = vmatpush1.bf16.msra.mxu0 %v1815
          %2619 = vmatprep.subr.bf16.mxu0 %v1822
          %2620 = vmatpush1.bf16.msra.mxu0 %v1821
          %2621 = vmatprep.subr.bf16.mxu0 %v1828
          %2622 = vmatpush1.bf16.msra.mxu0 %v1827
          %2623 = vmatprep.subr.bf16.mxu0 %v1834
          %2624 = vmatpush1.bf16.msra.mxu0 %v1833
          %2625 = vmatprep.subr.bf16.mxu0 %v1840
          %2626 = vmatpush1.bf16.msra.mxu0 %v1839
          %2627 = vmatprep.subr.bf16.mxu0 %v1846
          %2628 = vmatpush1.bf16.msra.mxu0 %v1845
          %2629 = vmatprep.subr.bf16.mxu0 %v1852
          %2630 = vmatpush1.bf16.msra.mxu0 %v1851
          %2631 = vmatprep.subr.bf16.mxu0 %v1858
          %2632 = vmatpush1.bf16.msra.mxu0 %v1857
          %2633 = vmatprep.subr.bf16.mxu0 %v1864
          %2634 = vmatpush1.bf16.msra.mxu0 %v1863
          %2635 = vmatprep.mubr.bf16.mxu0 %v894
          %2636 = vmatmul.mubr.bf16.gmra.mrb[0].mxu0 %v893
          %v2637 = vpop.f32.mrb[0].mxu0
          %v2638 = vadd.f32 %v864, %v2637
          %v2639 = vpop.f32.mrb[0].mxu0
          %v2640 = vadd.f32 %v868, %v2639
          %v2641 = vpop.f32.mrb[0].mxu0
          %v2642 = vadd.f32 %v864, %v2641
          %v2643 = vpop.f32.mrb[0].mxu0
          %v2644 = vadd.f32 %v868, %v2643
          %2645 = vdwg.mxu0
          %2646 = vmatprep.subr.bf16.mxu0 %v1870
          %2647 = vmatpush1.bf16.msra.mxu0 %v1869
          %2648 = vmatprep.subr.bf16.mxu0 %v1876
          %2649 = vmatpush1.bf16.msra.mxu0 %v1875
          %2650 = vmatprep.subr.bf16.mxu0 %v1882
          %2651 = vmatpush1.bf16.msra.mxu0 %v1881
          %2652 = vmatprep.subr.bf16.mxu0 %v1888
          %2653 = vmatpush1.bf16.msra.mxu0 %v1887
          %2654 = vmatprep.subr.bf16.mxu0 %v1894
          %2655 = vmatpush1.bf16.msra.mxu0 %v1893
          %2656 = vmatprep.subr.bf16.mxu0 %v1900
          %2657 = vmatpush1.bf16.msra.mxu0 %v1899
          %2658 = vmatprep.subr.bf16.mxu0 %v1906
          %2659 = vmatpush1.bf16.msra.mxu0 %v1905
          %2660 = vmatprep.subr.bf16.mxu0 %v1912
          %2661 = vmatpush1.bf16.msra.mxu0 %v1911
          %2662 = vmatprep.subr.bf16.mxu0 %v1918
          %2663 = vmatpush1.bf16.msra.mxu0 %v1917
          %2664 = vmatprep.subr.bf16.mxu0 %v1924
          %2665 = vmatpush1.bf16.msra.mxu0 %v1923
          %2666 = vmatprep.subr.bf16.mxu0 %v1930
          %2667 = vmatpush1.bf16.msra.mxu0 %v1929
          %2668 = vmatprep.subr.bf16.mxu0 %v1936
          %2669 = vmatpush1.bf16.msra.mxu0 %v1935
          %2670 = vmatprep.subr.bf16.mxu0 %v1942
          %2671 = vmatpush1.bf16.msra.mxu0 %v1941
          %2672 = vmatprep.subr.bf16.mxu0 %v1948
          %2673 = vmatpush1.bf16.msra.mxu0 %v1947
          %2674 = vmatprep.subr.bf16.mxu0 %v1954
          %2675 = vmatpush1.bf16.msra.mxu0 %v1953
          %2676 = vmatprep.subr.bf16.mxu0 %v1960
          %2677 = vmatpush1.bf16.msra.mxu0 %v1959
          %2678 = vmatprep.mubr.bf16.mxu0 %v896
          %2679 = vmatmul.mubr.bf16.gmra.mrb[0].mxu0 %v895
          %v2680 = vpop.f32.mrb[0].mxu0
          %v2681 = vadd.f32 %v2638, %v2680
          %v2682 = vpop.f32.mrb[0].mxu0
          %v2683 = vadd.f32 %v2640, %v2682
          %v2684 = vpop.f32.mrb[0].mxu0
          %v2685 = vadd.f32 %v2642, %v2684
          %v2686 = vpop.f32.mrb[0].mxu0
          %v2687 = vadd.f32 %v2644, %v2686
          %2688 = vdwg.mxu0
          %2689 = vmatprep.subr.bf16.mxu0 %v1966
          %2690 = vmatpush1.bf16.msra.mxu0 %v1965
          %2691 = vmatprep.subr.bf16.mxu0 %v1972
          %2692 = vmatpush1.bf16.msra.mxu0 %v1971
          %2693 = vmatprep.subr.bf16.mxu0 %v1978
          %2694 = vmatpush1.bf16.msra.mxu0 %v1977
          %2695 = vmatprep.subr.bf16.mxu0 %v1984
          %2696 = vmatpush1.bf16.msra.mxu0 %v1983
          %2697 = vmatprep.subr.bf16.mxu0 %v1990
          %2698 = vmatpush1.bf16.msra.mxu0 %v1989
          %2699 = vmatprep.subr.bf16.mxu0 %v1996
          %2700 = vmatpush1.bf16.msra.mxu0 %v1995
          %2701 = vmatprep.subr.bf16.mxu0 %v2002
          %2702 = vmatpush1.bf16.msra.mxu0 %v2001
          %2703 = vmatprep.subr.bf16.mxu0 %v2008
          %2704 = vmatpush1.bf16.msra.mxu0 %v2007
          %2705 = vmatprep.subr.bf16.mxu0 %v2014
          %2706 = vmatpush1.bf16.msra.mxu0 %v2013
          %2707 = vmatprep.subr.bf16.mxu0 %v2020
          %2708 = vmatpush1.bf16.msra.mxu0 %v2019
          %2709 = vmatprep.subr.bf16.mxu0 %v2026
          %2710 = vmatpush1.bf16.msra.mxu0 %v2025
          %2711 = vmatprep.subr.bf16.mxu0 %v2032
          %2712 = vmatpush1.bf16.msra.mxu0 %v2031
          %2713 = vmatprep.subr.bf16.mxu0 %v2038
          %2714 = vmatpush1.bf16.msra.mxu0 %v2037
          %2715 = vmatprep.subr.bf16.mxu0 %v2044
          %2716 = vmatpush1.bf16.msra.mxu0 %v2043
          %2717 = vmatprep.subr.bf16.mxu0 %v2050
          %2718 = vmatpush1.bf16.msra.mxu0 %v2049
          %2719 = vmatprep.subr.bf16.mxu0 %v2056
          %2720 = vmatpush1.bf16.msra.mxu0 %v2055
          %2721 = vmatprep.mubr.bf16.mxu0 %v898
          %2722 = vmatmul.mubr.bf16.gmra.mrb[0].mxu0 %v897
          %v2723 = vpop.f32.mrb[0].mxu0
          %v2724 = vadd.f32 %v2681, %v2723
          %v2725 = vpop.f32.mrb[0].mxu0
          %v2726 = vadd.f32 %v2683, %v2725
          %v2727 = vpop.f32.mrb[0].mxu0
          %v2728 = vadd.f32 %v2685, %v2727
          %v2729 = vpop.f32.mrb[0].mxu0
          %v2730 = vadd.f32 %v2687, %v2729
          %2731 = vdwg.mxu0
          %v2732 = vxor.u32 %v2466, 2147483648
          %v2733 = vxor.u32 %v2468, 2147483648
          %v2734 = vxor.u32 %v2595, 2147483648
          %v2735 = vxor.u32 %v2597, 2147483648
          %v2736 = vxor.u32 %v2724, 2147483648
          %v2737 = vxor.u32 %v2726, 2147483648
          %v2738 = vxor.u32 %v2470, 2147483648
          %v2739 = vxor.u32 %v2472, 2147483648
          %v2740 = vxor.u32 %v2599, 2147483648
          %v2741 = vxor.u32 %v2601, 2147483648
          %v2742 = vxor.u32 %v2728, 2147483648
          %v2743 = vxor.u32 %v2730, 2147483648
          %v2744 = vmul.f32 %v2732, 1.442695
          %v2745 = vpow.pop %v2744
          %v2746 = vmul.f32 %v2733, 1.442695
          %v2747 = vpow.pop %v2746
          %v2748 = vmul.f32 %v2734, 1.442695
          %v2749 = vpow.pop %v2748
          %v2750 = vmul.f32 %v2735, 1.442695
          %v2751 = vpow.pop %v2750
          %v2752 = vmul.f32 %v2736, 1.442695
          %v2753 = vpow.pop %v2752
          %v2754 = vmul.f32 %v2737, 1.442695
          %v2755 = vpow.pop %v2754
          %v2756 = vmul.f32 %v2738, 1.442695
          %v2757 = vpow.pop %v2756
          %v2758 = vmul.f32 %v2739, 1.442695
          %v2759 = vpow.pop %v2758
          %v2760 = vmul.f32 %v2740, 1.442695
          %v2761 = vpow.pop %v2760
          %v2762 = vmul.f32 %v2741, 1.442695
          %v2763 = vpow.pop %v2762
          %v2764 = vmul.f32 %v2742, 1.442695
          %v2765 = vpow.pop %v2764
          %v2766 = vmul.f32 %v2743, 1.442695
          %v2767 = vpow.pop %v2766
          %v2768 = vadd.f32 %v2745, 1.0
          %v2769 = vadd.f32 %v2747, 1.0
          %v2770 = vadd.f32 %v2749, 1.0
          %v2771 = vadd.f32 %v2751, 1.0
          %v2772 = vadd.f32 %v2753, 1.0
          %v2773 = vadd.f32 %v2755, 1.0
          %v2774 = vadd.f32 %v2757, 1.0
          %v2775 = vadd.f32 %v2759, 1.0
          %v2776 = vadd.f32 %v2761, 1.0
          %v2777 = vadd.f32 %v2763, 1.0
          %v2778 = vadd.f32 %v2765, 1.0
          %v2779 = vadd.f32 %v2767, 1.0
          %v2780 = vrcp.pop %v2768
          %v2781 = vmul.f32 1.0, %v2780
          %v2782 = vrcp.pop %v2769
          %v2783 = vmul.f32 1.0, %v2782
          %v2784 = vrcp.pop %v2770
          %v2785 = vmul.f32 1.0, %v2784
          %v2786 = vrcp.pop %v2771
          %v2787 = vmul.f32 1.0, %v2786
          %v2788 = vrcp.pop %v2772
          %v2789 = vmul.f32 1.0, %v2788
          %v2790 = vrcp.pop %v2773
          %v2791 = vmul.f32 1.0, %v2790
          %v2792 = vrcp.pop %v2774
          %v2793 = vmul.f32 1.0, %v2792
          %v2794 = vrcp.pop %v2775
          %v2795 = vmul.f32 1.0, %v2794
          %v2796 = vrcp.pop %v2776
          %v2797 = vmul.f32 1.0, %v2796
          %v2798 = vrcp.pop %v2777
          %v2799 = vmul.f32 1.0, %v2798
          %v2800 = vrcp.pop %v2778
          %v2801 = vmul.f32 1.0, %v2800
          %v2802 = vrcp.pop %v2779
          %v2803 = vmul.f32 1.0, %v2802
          %v2804 = vmul.f32 %v2466, %v2781
          %v2805 = vmul.f32 %v2468, %v2783
          %v2806 = vmul.f32 %v2595, %v2785
          %v2807 = vmul.f32 %v2597, %v2787
          %v2808 = vmul.f32 %v2724, %v2789
          %v2809 = vmul.f32 %v2726, %v2791
          %v2810 = vmul.f32 %v2470, %v2793
          %v2811 = vmul.f32 %v2472, %v2795
          %v2812 = vmul.f32 %v2599, %v2797
          %v2813 = vmul.f32 %v2601, %v2799
          %v2814 = vmul.f32 %v2728, %v2801
          %v2815 = vmul.f32 %v2730, %v2803
          %v2816 = vpack.c.bf16 %v2810, %v2804
          %v2817 = vpack.c.bf16 %v2811, %v2805
          %v2818 = vpack.c.bf16 %v2812, %v2806
          %v2819 = vpack.c.bf16 %v2813, %v2807
          %v2820 = vpack.c.bf16 %v2814, %v2808
          %v2821 = vpack.c.bf16 %v2815, %v2809
          %2822 = vst [vmem:[#allocation2] sm:$0xff] %v2816
          %2823 = vst [vmem:[#allocation2 + $0x8] sm:$0xff] %v2817
          %2824 = vst [vmem:[#allocation2 + $0x10] sm:$0xff] %v2818
          %2825 = vst [vmem:[#allocation2 + $0x18] sm:$0xff] %v2819
          %2826 = vst [vmem:[#allocation2 + $0x20] sm:$0xff] %v2820
          %2827 = vst [vmem:[#allocation2 + $0x28] sm:$0xff] %v2821
          %vm2828 = vcmask 7168
          %2829 = vst.msk [vmem:[#allocation3] sm:$0xff] %vm2828, -inf
          %2830 = vst.msk [vmem:[#allocation3 + $0x8] sm:$0xff] %vm2828, -inf
          %2831 = vst.msk [vmem:[#allocation4] sm:$0xff] %vm2828, 0.0
          %2832 = vst.msk [vmem:[#allocation4 + $0x8] sm:$0xff] %vm2828, 0.0
        $region88: #{tpu_custom_call.1} parent=51 // pred_fallthru
          _
        %v2833 = vld [vmem:[#allocation2] sm:$0xff]
        %v2834 = vld [vmem:[#allocation2 + $0x8] sm:$0xff]
        %v2835 = vld [vmem:[#allocation2 + $0x10] sm:$0xff]
        %v2836 = vld [vmem:[#allocation2 + $0x18] sm:$0xff]
        %v2837 = vld [vmem:[#allocation2 + $0x20] sm:$0xff]
        %v2838 = vld [vmem:[#allocation2 + $0x28] sm:$0xff]
        %v2839 = vld [vmem:[%s452] sm:$0xff]
        %v2840 = vld [vmem:[%s452 + $0x8] sm:$0xff]
        %v2841 = vld [vmem:[%s452 + $0x10] sm:$0xff]
        %v2842 = vld [vmem:[%s452 + $0x18] sm:$0xff]
        %v2843 = vld [vmem:[%s452 + $0x20] sm:$0xff]
        %v2844 = vld [vmem:[%s452 + $0x28] sm:$0xff]
        %v2845 = vld [vmem:[%s452 + $0x30] sm:$0xff]
        %v2846 = vld [vmem:[%s452 + $0x38] sm:$0xff]
        %v2847 = vld [vmem:[%s452 + $0x40] sm:$0xff]
        %v2848 = vld [vmem:[%s452 + $0x48] sm:$0xff]
        %v2849 = vld [vmem:[%s452 + $0x50] sm:$0xff]
        %v2850 = vld [vmem:[%s452 + $0x58] sm:$0xff]
        %v2851 = vld [vmem:[%s452 + $0x60] sm:$0xff]
        %v2852 = vld [vmem:[%s452 + $0x68] sm:$0xff]
        %v2853 = vld [vmem:[%s452 + $0x70] sm:$0xff]
        %v2854 = vld [vmem:[%s452 + $0x78] sm:$0xff]
        %v2855 = vld [vmem:[%s452 + $0x80] sm:$0xff]
        %v2856 = vld [vmem:[%s452 + $0x88] sm:$0xff]
        %v2857 = vld [vmem:[%s452 + $0x90] sm:$0xff]
        %v2858 = vld [vmem:[%s452 + $0x98] sm:$0xff]
        %v2859 = vld [vmem:[%s452 + $0xa0] sm:$0xff]
        %v2860 = vld [vmem:[%s452 + $0xa8] sm:$0xff]
        %v2861 = vld [vmem:[%s452 + $0xb0] sm:$0xff]
        %v2862 = vld [vmem:[%s452 + $0xb8] sm:$0xff]
        %v2863 = vld [vmem:[%s452 + $0xc0] sm:$0xff]
        %v2864 = vld [vmem:[%s452 + $0xc8] sm:$0xff]
        %v2865 = vld [vmem:[%s452 + $0xd0] sm:$0xff]
        %v2866 = vld [vmem:[%s452 + $0xd8] sm:$0xff]
        %v2867 = vld [vmem:[%s452 + $0xe0] sm:$0xff]
        %v2868 = vld [vmem:[%s452 + $0xe8] sm:$0xff]
        %v2869 = vld [vmem:[%s452 + $0xf0] sm:$0xff]
        %v2870 = vld [vmem:[%s452 + $0xf8] sm:$0xff]
        %v2871 = vld [vmem:[%s452 + $0x100] sm:$0xff]
        %v2872 = vld [vmem:[%s452 + $0x108] sm:$0xff]
        %v2873 = vld [vmem:[%s452 + $0x110] sm:$0xff]
        %v2874 = vld [vmem:[%s452 + $0x118] sm:$0xff]
        %v2875 = vld [vmem:[%s452 + $0x120] sm:$0xff]
        %v2876 = vld [vmem:[%s452 + $0x128] sm:$0xff]
        %v2877 = vld [vmem:[%s452 + $0x130] sm:$0xff]
        %v2878 = vld [vmem:[%s452 + $0x138] sm:$0xff]
        %v2879 = vld [vmem:[%s452 + $0x140] sm:$0xff]
        %v2880 = vld [vmem:[%s452 + $0x148] sm:$0xff]
        %v2881 = vld [vmem:[%s452 + $0x150] sm:$0xff]
        %v2882 = vld [vmem:[%s452 + $0x158] sm:$0xff]
        %v2883 = vld [vmem:[%s452 + $0x160] sm:$0xff]
        %v2884 = vld [vmem:[%s452 + $0x168] sm:$0xff]
        %v2885 = vld [vmem:[%s452 + $0x170] sm:$0xff]
        %v2886 = vld [vmem:[%s452 + $0x178] sm:$0xff]
        %v2887 = vld [vmem:[%s452 + $0x180] sm:$0xff]
        %v2888 = vld [vmem:[%s452 + $0x188] sm:$0xff]
        %v2889 = vld [vmem:[%s452 + $0x190] sm:$0xff]
        %v2890 = vld [vmem:[%s452 + $0x198] sm:$0xff]
        %v2891 = vld [vmem:[%s452 + $0x1a0] sm:$0xff]
        %v2892 = vld [vmem:[%s452 + $0x1a8] sm:$0xff]
        %v2893 = vld [vmem:[%s452 + $0x1b0] sm:$0xff]
        %v2894 = vld [vmem:[%s452 + $0x1b8] sm:$0xff]
        %v2895 = vld [vmem:[%s452 + $0x1c0] sm:$0xff]
        %v2896 = vld [vmem:[%s452 + $0x1c8] sm:$0xff]
        %v2897 = vld [vmem:[%s452 + $0x1d0] sm:$0xff]
        %v2898 = vld [vmem:[%s452 + $0x1d8] sm:$0xff]
        %v2899 = vld [vmem:[%s452 + $0x1e0] sm:$0xff]
        %v2900 = vld [vmem:[%s452 + $0x1e8] sm:$0xff]
        %v2901 = vld [vmem:[%s452 + $0x1f0] sm:$0xff]
        %v2902 = vld [vmem:[%s452 + $0x1f8] sm:$0xff]
        %v2903 = vld [vmem:[%s452 + $0x200] sm:$0xff]
        %v2904 = vld [vmem:[%s452 + $0x208] sm:$0xff]
        %v2905 = vld [vmem:[%s452 + $0x210] sm:$0xff]
        %v2906 = vld [vmem:[%s452 + $0x218] sm:$0xff]
        %v2907 = vld [vmem:[%s452 + $0x220] sm:$0xff]
        %v2908 = vld [vmem:[%s452 + $0x228] sm:$0xff]
        %v2909 = vld [vmem:[%s452 + $0x230] sm:$0xff]
        %v2910 = vld [vmem:[%s452 + $0x238] sm:$0xff]
        %v2911 = vld [vmem:[%s452 + $0x240] sm:$0xff]
        %v2912 = vld [vmem:[%s452 + $0x248] sm:$0xff]
        %v2913 = vld [vmem:[%s452 + $0x250] sm:$0xff]
        %v2914 = vld [vmem:[%s452 + $0x258] sm:$0xff]
        %v2915 = vld [vmem:[%s452 + $0x260] sm:$0xff]
        %v2916 = vld [vmem:[%s452 + $0x268] sm:$0xff]
        %v2917 = vld [vmem:[%s452 + $0x270] sm:$0xff]
        %v2918 = vld [vmem:[%s452 + $0x278] sm:$0xff]
        %v2919 = vld [vmem:[%s452 + $0x280] sm:$0xff]
        %v2920 = vld [vmem:[%s452 + $0x288] sm:$0xff]
        %v2921 = vld [vmem:[%s452 + $0x290] sm:$0xff]
        %v2922 = vld [vmem:[%s452 + $0x298] sm:$0xff]
        %v2923 = vld [vmem:[%s452 + $0x2a0] sm:$0xff]
        %v2924 = vld [vmem:[%s452 + $0x2a8] sm:$0xff]
        %v2925 = vld [vmem:[%s452 + $0x2b0] sm:$0xff]
        %v2926 = vld [vmem:[%s452 + $0x2b8] sm:$0xff]
        %v2927 = vld [vmem:[%s452 + $0x2c0] sm:$0xff]
        %v2928 = vld [vmem:[%s452 + $0x2c8] sm:$0xff]
        %v2929 = vld [vmem:[%s452 + $0x2d0] sm:$0xff]
        %v2930 = vld [vmem:[%s452 + $0x2d8] sm:$0xff]
        %v2931 = vld [vmem:[%s452 + $0x2e0] sm:$0xff]
        %v2932 = vld [vmem:[%s452 + $0x2e8] sm:$0xff]
        %v2933 = vld [vmem:[%s452 + $0x2f0] sm:$0xff]
        %v2934 = vld [vmem:[%s452 + $0x2f8] sm:$0xff]
        %v2935 = vld [vmem:[%s461] sm:$0x3]
        %v2937 = vlaneseq
        %v2938 = vshrl.u32 %v2937, 7
        %v2939 = vsub.s32 0, %v2938
        %v2940 = vrot.slane %v2935, %v2939
        %v2941 = vlaneseq
        %v2942 = vshrl.u32 %v2941, 7
        %v2943 = vsub.s32 1, %v2942
        %v2944 = vrot.slane %v2935, %v2943
        %v3043 = vunpack.c.l.b16 %v2839
        %v3044 = vunpack.c.h.b16 %v2839
        %v3045 = vunpack.c.l.b16 %v2840
        %v3046 = vunpack.c.h.b16 %v2840
        %v3047 = vunpack.c.l.b16 %v2841
        %v3048 = vunpack.c.h.b16 %v2841
        %v3049 = vunpack.c.l.b16 %v2842
        %v3050 = vunpack.c.h.b16 %v2842
        %v3051 = vunpack.c.l.b16 %v2843
        %v3052 = vunpack.c.h.b16 %v2843
        %v3053 = vunpack.c.l.b16 %v2844
        %v3054 = vunpack.c.h.b16 %v2844
        %v3055 = vunpack.c.l.b16 %v2845
        %v3056 = vunpack.c.h.b16 %v2845
        %v3057 = vunpack.c.l.b16 %v2846
        %v3058 = vunpack.c.h.b16 %v2846
        %v3059 = vunpack.c.l.b16 %v2847
        %v3060 = vunpack.c.h.b16 %v2847
        %v3061 = vunpack.c.l.b16 %v2848
        %v3062 = vunpack.c.h.b16 %v2848
        %v3063 = vunpack.c.l.b16 %v2849
        %v3064 = vunpack.c.h.b16 %v2849
        %v3065 = vunpack.c.l.b16 %v2850
        %v3066 = vunpack.c.h.b16 %v2850
        %v3067 = vunpack.c.l.b16 %v2851
        %v3068 = vunpack.c.h.b16 %v2851
        %v3069 = vunpack.c.l.b16 %v2852
        %v3070 = vunpack.c.h.b16 %v2852
        %v3071 = vunpack.c.l.b16 %v2853
        %v3072 = vunpack.c.h.b16 %v2853
        %v3073 = vunpack.c.l.b16 %v2854
        %v3074 = vunpack.c.h.b16 %v2854
        %v3075 = vunpack.c.l.b16 %v2855
        %v3076 = vunpack.c.h.b16 %v2855
        %v3077 = vunpack.c.l.b16 %v2856
        %v3078 = vunpack.c.h.b16 %v2856
        %v3079 = vunpack.c.l.b16 %v2857
        %v3080 = vunpack.c.h.b16 %v2857
        %v3081 = vunpack.c.l.b16 %v2858
        %v3082 = vunpack.c.h.b16 %v2858
        %v3083 = vunpack.c.l.b16 %v2859
        %v3084 = vunpack.c.h.b16 %v2859
        %v3085 = vunpack.c.l.b16 %v2860
        %v3086 = vunpack.c.h.b16 %v2860
        %v3087 = vunpack.c.l.b16 %v2861
        %v3088 = vunpack.c.h.b16 %v2861
        %v3089 = vunpack.c.l.b16 %v2862
        %v3090 = vunpack.c.h.b16 %v2862
        %v3091 = vunpack.c.l.b16 %v2863
        %v3092 = vunpack.c.h.b16 %v2863
        %v3093 = vunpack.c.l.b16 %v2864
        %v3094 = vunpack.c.h.b16 %v2864
        %v3095 = vunpack.c.l.b16 %v2865
        %v3096 = vunpack.c.h.b16 %v2865
        %v3097 = vunpack.c.l.b16 %v2866
        %v3098 = vunpack.c.h.b16 %v2866
        %v3099 = vunpack.c.l.b16 %v2867
        %v3100 = vunpack.c.h.b16 %v2867
        %v3101 = vunpack.c.l.b16 %v2868
        %v3102 = vunpack.c.h.b16 %v2868
        %v3103 = vunpack.c.l.b16 %v2869
        %v3104 = vunpack.c.h.b16 %v2869
        %v3105 = vunpack.c.l.b16 %v2870
        %v3106 = vunpack.c.h.b16 %v2870
        %v3107 = vunpack.c.l.b16 %v2871
        %v3108 = vunpack.c.h.b16 %v2871
        %v3109 = vunpack.c.l.b16 %v2872
        %v3110 = vunpack.c.h.b16 %v2872
        %v3111 = vunpack.c.l.b16 %v2873
        %v3112 = vunpack.c.h.b16 %v2873
        %v3113 = vunpack.c.l.b16 %v2874
        %v3114 = vunpack.c.h.b16 %v2874
        %v3115 = vunpack.c.l.b16 %v2875
        %v3116 = vunpack.c.h.b16 %v2875
        %v3117 = vunpack.c.l.b16 %v2876
        %v3118 = vunpack.c.h.b16 %v2876
        %v3119 = vunpack.c.l.b16 %v2877
        %v3120 = vunpack.c.h.b16 %v2877
        %v3121 = vunpack.c.l.b16 %v2878
        %v3122 = vunpack.c.h.b16 %v2878
        %v3123 = vunpack.c.l.b16 %v2879
        %v3124 = vunpack.c.h.b16 %v2879
        %v3125 = vunpack.c.l.b16 %v2880
        %v3126 = vunpack.c.h.b16 %v2880
        %v3127 = vunpack.c.l.b16 %v2881
        %v3128 = vunpack.c.h.b16 %v2881
        %v3129 = vunpack.c.l.b16 %v2882
        %v3130 = vunpack.c.h.b16 %v2882
        %v3131 = vunpack.c.l.b16 %v2883
        %v3132 = vunpack.c.h.b16 %v2883
        %v3133 = vunpack.c.l.b16 %v2884
        %v3134 = vunpack.c.h.b16 %v2884
        %v3135 = vunpack.c.l.b16 %v2885
        %v3136 = vunpack.c.h.b16 %v2885
        %v3137 = vunpack.c.l.b16 %v2886
        %v3138 = vunpack.c.h.b16 %v2886
        %v3139 = vunpack.c.l.b16 %v2887
        %v3140 = vunpack.c.h.b16 %v2887
        %v3141 = vunpack.c.l.b16 %v2888
        %v3142 = vunpack.c.h.b16 %v2888
        %v3143 = vunpack.c.l.b16 %v2889
        %v3144 = vunpack.c.h.b16 %v2889
        %v3145 = vunpack.c.l.b16 %v2890
        %v3146 = vunpack.c.h.b16 %v2890
        %v3147 = vunpack.c.l.b16 %v2891
        %v3148 = vunpack.c.h.b16 %v2891
        %v3149 = vunpack.c.l.b16 %v2892
        %v3150 = vunpack.c.h.b16 %v2892
        %v3151 = vunpack.c.l.b16 %v2893
        %v3152 = vunpack.c.h.b16 %v2893
        %v3153 = vunpack.c.l.b16 %v2894
        %v3154 = vunpack.c.h.b16 %v2894
        %v3155 = vunpack.c.l.b16 %v2895
        %v3156 = vunpack.c.h.b16 %v2895
        %v3157 = vunpack.c.l.b16 %v2896
        %v3158 = vunpack.c.h.b16 %v2896
        %v3159 = vunpack.c.l.b16 %v2897
        %v3160 = vunpack.c.h.b16 %v2897
        %v3161 = vunpack.c.l.b16 %v2898
        %v3162 = vunpack.c.h.b16 %v2898
        %v3163 = vunpack.c.l.b16 %v2899
        %v3164 = vunpack.c.h.b16 %v2899
        %v3165 = vunpack.c.l.b16 %v2900
        %v3166 = vunpack.c.h.b16 %v2900
        %v3167 = vunpack.c.l.b16 %v2901
        %v3168 = vunpack.c.h.b16 %v2901
        %v3169 = vunpack.c.l.b16 %v2902
        %v3170 = vunpack.c.h.b16 %v2902
        %v3171 = vunpack.c.l.b16 %v2903
        %v3172 = vunpack.c.h.b16 %v2903
        %v3173 = vunpack.c.l.b16 %v2904
        %v3174 = vunpack.c.h.b16 %v2904
        %v3175 = vunpack.c.l.b16 %v2905
        %v3176 = vunpack.c.h.b16 %v2905
        %v3177 = vunpack.c.l.b16 %v2906
        %v3178 = vunpack.c.h.b16 %v2906
        %v3179 = vunpack.c.l.b16 %v2907
        %v3180 = vunpack.c.h.b16 %v2907
        %v3181 = vunpack.c.l.b16 %v2908
        %v3182 = vunpack.c.h.b16 %v2908
        %v3183 = vunpack.c.l.b16 %v2909
        %v3184 = vunpack.c.h.b16 %v2909
        %v3185 = vunpack.c.l.b16 %v2910
        %v3186 = vunpack.c.h.b16 %v2910
        %v3187 = vunpack.c.l.b16 %v2911
        %v3188 = vunpack.c.h.b16 %v2911
        %v3189 = vunpack.c.l.b16 %v2912
        %v3190 = vunpack.c.h.b16 %v2912
        %v3191 = vunpack.c.l.b16 %v2913
        %v3192 = vunpack.c.h.b16 %v2913
        %v3193 = vunpack.c.l.b16 %v2914
        %v3194 = vunpack.c.h.b16 %v2914
        %v3195 = vunpack.c.l.b16 %v2915
        %v3196 = vunpack.c.h.b16 %v2915
        %v3197 = vunpack.c.l.b16 %v2916
        %v3198 = vunpack.c.h.b16 %v2916
        %v3199 = vunpack.c.l.b16 %v2917
        %v3200 = vunpack.c.h.b16 %v2917
        %v3201 = vunpack.c.l.b16 %v2918
        %v3202 = vunpack.c.h.b16 %v2918
        %v3203 = vunpack.c.l.b16 %v2919
        %v3204 = vunpack.c.h.b16 %v2919
        %v3205 = vunpack.c.l.b16 %v2920
        %v3206 = vunpack.c.h.b16 %v2920
        %v3207 = vunpack.c.l.b16 %v2921
        %v3208 = vunpack.c.h.b16 %v2921
        %v3209 = vunpack.c.l.b16 %v2922
        %v3210 = vunpack.c.h.b16 %v2922
        %v3211 = vunpack.c.l.b16 %v2923
        %v3212 = vunpack.c.h.b16 %v2923
        %v3213 = vunpack.c.l.b16 %v2924
        %v3214 = vunpack.c.h.b16 %v2924
        %v3215 = vunpack.c.l.b16 %v2925
        %v3216 = vunpack.c.h.b16 %v2925
        %v3217 = vunpack.c.l.b16 %v2926
        %v3218 = vunpack.c.h.b16 %v2926
        %v3219 = vunpack.c.l.b16 %v2927
        %v3220 = vunpack.c.h.b16 %v2927
        %v3221 = vunpack.c.l.b16 %v2928
        %v3222 = vunpack.c.h.b16 %v2928
        %v3223 = vunpack.c.l.b16 %v2929
        %v3224 = vunpack.c.h.b16 %v2929
        %v3225 = vunpack.c.l.b16 %v2930
        %v3226 = vunpack.c.h.b16 %v2930
        %v3227 = vunpack.c.l.b16 %v2931
        %v3228 = vunpack.c.h.b16 %v2931
        %v3229 = vunpack.c.l.b16 %v2932
        %v3230 = vunpack.c.h.b16 %v2932
        %v3231 = vunpack.c.l.b16 %v2933
        %v3232 = vunpack.c.h.b16 %v2933
        %v3233 = vunpack.c.l.b16 %v2934
        %v3234 = vunpack.c.h.b16 %v2934
        %v3235 = vpack.c.b16 %v3045, %v3043
        %v3236 = vpack.c.b16 %v3046, %v3044
        %v3237 = vpack.c.b16 %v3049, %v3047
        %v3238 = vpack.c.b16 %v3050, %v3048
        %v3239 = vpack.c.b16 %v3053, %v3051
        %v3240 = vpack.c.b16 %v3054, %v3052
        %v3241 = vpack.c.b16 %v3057, %v3055
        %v3242 = vpack.c.b16 %v3058, %v3056
        %v3243 = vpack.c.b16 %v3061, %v3059
        %v3244 = vpack.c.b16 %v3062, %v3060
        %v3245 = vpack.c.b16 %v3065, %v3063
        %v3246 = vpack.c.b16 %v3066, %v3064
        %v3247 = vpack.c.b16 %v3069, %v3067
        %v3248 = vpack.c.b16 %v3070, %v3068
        %v3249 = vpack.c.b16 %v3073, %v3071
        %v3250 = vpack.c.b16 %v3074, %v3072
        %v3251 = vpack.c.b16 %v3077, %v3075
        %v3252 = vpack.c.b16 %v3078, %v3076
        %v3253 = vpack.c.b16 %v3081, %v3079
        %v3254 = vpack.c.b16 %v3082, %v3080
        %v3255 = vpack.c.b16 %v3085, %v3083
        %v3256 = vpack.c.b16 %v3086, %v3084
        %v3257 = vpack.c.b16 %v3089, %v3087
        %v3258 = vpack.c.b16 %v3090, %v3088
        %v3259 = vpack.c.b16 %v3093, %v3091
        %v3260 = vpack.c.b16 %v3094, %v3092
        %v3261 = vpack.c.b16 %v3097, %v3095
        %v3262 = vpack.c.b16 %v3098, %v3096
        %v3263 = vpack.c.b16 %v3101, %v3099
        %v3264 = vpack.c.b16 %v3102, %v3100
        %v3265 = vpack.c.b16 %v3105, %v3103
        %v3266 = vpack.c.b16 %v3106, %v3104
        %v3267 = vpack.c.b16 %v3109, %v3107
        %v3268 = vpack.c.b16 %v3110, %v3108
        %v3269 = vpack.c.b16 %v3113, %v3111
        %v3270 = vpack.c.b16 %v3114, %v3112
        %v3271 = vpack.c.b16 %v3117, %v3115
        %v3272 = vpack.c.b16 %v3118, %v3116
        %v3273 = vpack.c.b16 %v3121, %v3119
        %v3274 = vpack.c.b16 %v3122, %v3120
        %v3275 = vpack.c.b16 %v3125, %v3123
        %v3276 = vpack.c.b16 %v3126, %v3124
        %v3277 = vpack.c.b16 %v3129, %v3127
        %v3278 = vpack.c.b16 %v3130, %v3128
        %v3279 = vpack.c.b16 %v3133, %v3131
        %v3280 = vpack.c.b16 %v3134, %v3132
        %v3281 = vpack.c.b16 %v3137, %v3135
        %v3282 = vpack.c.b16 %v3138, %v3136
        %v3283 = vpack.c.b16 %v3141, %v3139
        %v3284 = vpack.c.b16 %v3142, %v3140
        %v3285 = vpack.c.b16 %v3145, %v3143
        %v3286 = vpack.c.b16 %v3146, %v3144
        %v3287 = vpack.c.b16 %v3149, %v3147
        %v3288 = vpack.c.b16 %v3150, %v3148
        %v3289 = vpack.c.b16 %v3153, %v3151
        %v3290 = vpack.c.b16 %v3154, %v3152
        %v3291 = vpack.c.b16 %v3157, %v3155
        %v3292 = vpack.c.b16 %v3158, %v3156
        %v3293 = vpack.c.b16 %v3161, %v3159
        %v3294 = vpack.c.b16 %v3162, %v3160
        %v3295 = vpack.c.b16 %v3165, %v3163
        %v3296 = vpack.c.b16 %v3166, %v3164
        %v3297 = vpack.c.b16 %v3169, %v3167
        %v3298 = vpack.c.b16 %v3170, %v3168
        %v3299 = vpack.c.b16 %v3173, %v3171
        %v3300 = vpack.c.b16 %v3174, %v3172
        %v3301 = vpack.c.b16 %v3177, %v3175
        %v3302 = vpack.c.b16 %v3178, %v3176
        %v3303 = vpack.c.b16 %v3181, %v3179
        %v3304 = vpack.c.b16 %v3182, %v3180
        %v3305 = vpack.c.b16 %v3185, %v3183
        %v3306 = vpack.c.b16 %v3186, %v3184
        %v3307 = vpack.c.b16 %v3189, %v3187
        %v3308 = vpack.c.b16 %v3190, %v3188
        %v3309 = vpack.c.b16 %v3193, %v3191
        %v3310 = vpack.c.b16 %v3194, %v3192
        %v3311 = vpack.c.b16 %v3197, %v3195
        %v3312 = vpack.c.b16 %v3198, %v3196
        %v3313 = vpack.c.b16 %v3201, %v3199
        %v3314 = vpack.c.b16 %v3202, %v3200
        %v3315 = vpack.c.b16 %v3205, %v3203
        %v3316 = vpack.c.b16 %v3206, %v3204
        %v3317 = vpack.c.b16 %v3209, %v3207
        %v3318 = vpack.c.b16 %v3210, %v3208
        %v3319 = vpack.c.b16 %v3213, %v3211
        %v3320 = vpack.c.b16 %v3214, %v3212
        %v3321 = vpack.c.b16 %v3217, %v3215
        %v3322 = vpack.c.b16 %v3218, %v3216
        %v3323 = vpack.c.b16 %v3221, %v3219
        %v3324 = vpack.c.b16 %v3222, %v3220
        %v3325 = vpack.c.b16 %v3225, %v3223
        %v3326 = vpack.c.b16 %v3226, %v3224
        %v3327 = vpack.c.b16 %v3229, %v3227
        %v3328 = vpack.c.b16 %v3230, %v3228
        %v3329 = vpack.c.b16 %v3233, %v3231
        %v3330 = vpack.c.b16 %v3234, %v3232
        %3427 = vmatprep.subr.bf16.mxu0 %v3236
        %3428 = vmatpush1.bf16.msra.mxu0 %v3235
        %3429 = vmatprep.subr.bf16.mxu0 %v3238
        %3430 = vmatpush1.bf16.msra.mxu0 %v3237
        %3431 = vmatprep.subr.bf16.mxu0 %v3240
        %3432 = vmatpush1.bf16.msra.mxu0 %v3239
        %3433 = vmatprep.subr.bf16.mxu0 %v3242
        %3434 = vmatpush1.bf16.msra.mxu0 %v3241
        %3435 = vmatprep.subr.bf16.mxu0 %v3244
        %3436 = vmatpush1.bf16.msra.mxu0 %v3243
        %3437 = vmatprep.subr.bf16.mxu0 %v3246
        %3438 = vmatpush1.bf16.msra.mxu0 %v3245
        %3439 = vmatprep.subr.bf16.mxu0 %v3248
        %3440 = vmatpush1.bf16.msra.mxu0 %v3247
        %3441 = vmatprep.subr.bf16.mxu0 %v3250
        %3442 = vmatpush1.bf16.msra.mxu0 %v3249
        %3443 = vmatprep.subr.bf16.mxu0 %v3252
        %3444 = vmatpush1.bf16.msra.mxu0 %v3251
        %3445 = vmatprep.subr.bf16.mxu0 %v3254
        %3446 = vmatpush1.bf16.msra.mxu0 %v3253
        %3447 = vmatprep.subr.bf16.mxu0 %v3256
        %3448 = vmatpush1.bf16.msra.mxu0 %v3255
        %3449 = vmatprep.subr.bf16.mxu0 %v3258
        %3450 = vmatpush1.bf16.msra.mxu0 %v3257
        %3451 = vmatprep.subr.bf16.mxu0 %v3260
        %3452 = vmatpush1.bf16.msra.mxu0 %v3259
        %3453 = vmatprep.subr.bf16.mxu0 %v3262
        %3454 = vmatpush1.bf16.msra.mxu0 %v3261
        %3455 = vmatprep.subr.bf16.mxu0 %v3264
        %3456 = vmatpush1.bf16.msra.mxu0 %v3263
        %3457 = vmatprep.subr.bf16.mxu0 %v3266
        %3458 = vmatpush1.bf16.msra.mxu0 %v3265
        %3459 = vmatprep.mubr.bf16.mxu0 %v2834
        %3460 = vmatmul.mubr.bf16.gmra.mrb[0].mxu0 %v2833
        %v3461 = vpop.f32.mrb[0].mxu0
        %v3462 = vadd.f32 %v2940, %v3461
        %v3463 = vpop.f32.mrb[0].mxu0
        %v3464 = vadd.f32 %v2944, %v3463
        %v3465 = vpop.f32.mrb[0].mxu0
        %v3466 = vadd.f32 %v2940, %v3465
        %v3467 = vpop.f32.mrb[0].mxu0
        %v3468 = vadd.f32 %v2944, %v3467
        %3469 = vdwg.mxu0
        %3470 = vmatprep.subr.bf16.mxu0 %v3268
        %3471 = vmatpush1.bf16.msra.mxu0 %v3267
        %3472 = vmatprep.subr.bf16.mxu0 %v3270
        %3473 = vmatpush1.bf16.msra.mxu0 %v3269
        %3474 = vmatprep.subr.bf16.mxu0 %v3272
        %3475 = vmatpush1.bf16.msra.mxu0 %v3271
        %3476 = vmatprep.subr.bf16.mxu0 %v3274
        %3477 = vmatpush1.bf16.msra.mxu0 %v3273
        %3478 = vmatprep.subr.bf16.mxu0 %v3276
        %3479 = vmatpush1.bf16.msra.mxu0 %v3275
        %3480 = vmatprep.subr.bf16.mxu0 %v3278
        %3481 = vmatpush1.bf16.msra.mxu0 %v3277
        %3482 = vmatprep.subr.bf16.mxu0 %v3280
        %3483 = vmatpush1.bf16.msra.mxu0 %v3279
        %3484 = vmatprep.subr.bf16.mxu0 %v3282
        %3485 = vmatpush1.bf16.msra.mxu0 %v3281
        %3486 = vmatprep.subr.bf16.mxu0 %v3284
        %3487 = vmatpush1.bf16.msra.mxu0 %v3283
        %3488 = vmatprep.subr.bf16.mxu0 %v3286
        %3489 = vmatpush1.bf16.msra.mxu0 %v3285
        %3490 = vmatprep.subr.bf16.mxu0 %v3288
        %3491 = vmatpush1.bf16.msra.mxu0 %v3287
        %3492 = vmatprep.subr.bf16.mxu0 %v3290
        %3493 = vmatpush1.bf16.msra.mxu0 %v3289
        %3494 = vmatprep.subr.bf16.mxu0 %v3292
        %3495 = vmatpush1.bf16.msra.mxu0 %v3291
        %3496 = vmatprep.subr.bf16.mxu0 %v3294
        %3497 = vmatpush1.bf16.msra.mxu0 %v3293
        %3498 = vmatprep.subr.bf16.mxu0 %v3296
        %3499 = vmatpush1.bf16.msra.mxu0 %v3295
        %3500 = vmatprep.subr.bf16.mxu0 %v3298
        %3501 = vmatpush1.bf16.msra.mxu0 %v3297
        %3502 = vmatprep.mubr.bf16.mxu0 %v2836
        %3503 = vmatmul.mubr.bf16.gmra.mrb[0].mxu0 %v2835
        %v3504 = vpop.f32.mrb[0].mxu0
        %v3505 = vadd.f32 %v3462, %v3504
        %v3506 = vpop.f32.mrb[0].mxu0
        %v3507 = vadd.f32 %v3464, %v3506
        %v3508 = vpop.f32.mrb[0].mxu0
        %v3509 = vadd.f32 %v3466, %v3508
        %v3510 = vpop.f32.mrb[0].mxu0
        %v3511 = vadd.f32 %v3468, %v3510
        %3512 = vdwg.mxu0
        %3513 = vmatprep.subr.bf16.mxu0 %v3300
        %3514 = vmatpush1.bf16.msra.mxu0 %v3299
        %3515 = vmatprep.subr.bf16.mxu0 %v3302
        %3516 = vmatpush1.bf16.msra.mxu0 %v3301
        %3517 = vmatprep.subr.bf16.mxu0 %v3304
        %3518 = vmatpush1.bf16.msra.mxu0 %v3303
        %3519 = vmatprep.subr.bf16.mxu0 %v3306
        %3520 = vmatpush1.bf16.msra.mxu0 %v3305
        %3521 = vmatprep.subr.bf16.mxu0 %v3308
        %3522 = vmatpush1.bf16.msra.mxu0 %v3307
        %3523 = vmatprep.subr.bf16.mxu0 %v3310
        %3524 = vmatpush1.bf16.msra.mxu0 %v3309
        %3525 = vmatprep.subr.bf16.mxu0 %v3312
        %3526 = vmatpush1.bf16.msra.mxu0 %v3311
        %3527 = vmatprep.subr.bf16.mxu0 %v3314
        %3528 = vmatpush1.bf16.msra.mxu0 %v3313
        %3529 = vmatprep.subr.bf16.mxu0 %v3316
        %3530 = vmatpush1.bf16.msra.mxu0 %v3315
        %3531 = vmatprep.subr.bf16.mxu0 %v3318
        %3532 = vmatpush1.bf16.msra.mxu0 %v3317
        %3533 = vmatprep.subr.bf16.mxu0 %v3320
        %3534 = vmatpush1.bf16.msra.mxu0 %v3319
        %3535 = vmatprep.subr.bf16.mxu0 %v3322
        %3536 = vmatpush1.bf16.msra.mxu0 %v3321
        %3537 = vmatprep.subr.bf16.mxu0 %v3324
        %3538 = vmatpush1.bf16.msra.mxu0 %v3323
        %3539 = vmatprep.subr.bf16.mxu0 %v3326
        %3540 = vmatpush1.bf16.msra.mxu0 %v3325
        %3541 = vmatprep.subr.bf16.mxu0 %v3328
        %3542 = vmatpush1.bf16.msra.mxu0 %v3327
        %3543 = vmatprep.subr.bf16.mxu0 %v3330
        %3544 = vmatpush1.bf16.msra.mxu0 %v3329
        %3545 = vmatprep.mubr.bf16.mxu0 %v2838
        %3546 = vmatmul.mubr.bf16.gmra.mrb[0].mxu0 %v2837
        %v3547 = vpop.f32.mrb[0].mxu0
        %v3548 = vadd.f32 %v3505, %v3547
        %v3549 = vpop.f32.mrb[0].mxu0
        %v3550 = vadd.f32 %v3507, %v3549
        %v3551 = vpop.f32.mrb[0].mxu0
        %v3552 = vadd.f32 %v3509, %v3551
        %v3553 = vpop.f32.mrb[0].mxu0
        %v3554 = vadd.f32 %v3511, %v3553
        %3555 = vdwg.mxu0
        // Predicated region
        $region89: #{tpu_custom_call.1} parent=51 // pred_check
          %p3556 = pneg %p507
        $region90: #{tpu_custom_call.1} parent=51 // pred_check_branch
          %3558 = sbr.rel (%p3556) target = $region92
        $region91: #{tpu_custom_call.1} parent=51 // pred_region
          %v3559 = vld [vmem:[#allocation3] sm:$0xff]
          %v3560 = vld [vmem:[#allocation3 + $0x8] sm:$0xff]
          %v3561 = vmax.f32 %v3548, %v3550
          %3562 = vmax.xlane.f32.xlu0 %v3561
          %v3563 = vpop.xlane.xlu0 %3562
          %v3564 = vmax.f32 %v3552, %v3554
          %3565 = vmax.xlane.f32.xlu0 %v3564
          %v3566 = vpop.xlane.xlu0 %3565
          %v3567 = vmax.f32 %v3559, %v3563
          %v3568 = vmax.f32 %v3560, %v3566
          %v3569 = vld [vmem:[#allocation4] sm:$0xff]
          %v3570 = vld [vmem:[#allocation4 + $0x8] sm:$0xff]
          %v3571 = vsub.f32 %v3559, %v3567
          %v3572 = vsub.f32 %v3560, %v3568
          %v3573 = vmul.f32 %v3571, 1.442695
          %v3574 = vpow.pop %v3573
          %v3575 = vmul.f32 %v3572, 1.442695
          %v3576 = vpow.pop %v3575
          %v3577 = vmul.f32 %v3569, %v3574
          %v3578 = vmul.f32 %v3570, %v3576
          %3580 = vset.pattern.permute.xlu0 0
          %3581 = vperm.xlu0 %3580, %v3567
          %v3582 = vpop.permute.xlu0 %3581
          %3585 = vset.pattern.permute.xlu0 0
          %3586 = vperm.xlu0 %3585, %v3568
          %v3587 = vpop.permute.xlu0 %3586
          %v3589 = vsub.f32 %v3548, %v3582
          %v3590 = vsub.f32 %v3550, %v3582
          %v3591 = vsub.f32 %v3552, %v3587
          %v3592 = vsub.f32 %v3554, %v3587
          %v3593 = vmul.f32 %v3589, 1.442695
          %v3594 = vpow.pop %v3593
          %v3595 = vmul.f32 %v3590, 1.442695
          %v3596 = vpow.pop %v3595
          %v3597 = vmul.f32 %v3591, 1.442695
          %v3598 = vpow.pop %v3597
          %v3599 = vmul.f32 %v3592, 1.442695
          %v3600 = vpow.pop %v3599
          %v3601 = vadd.f32 %v3594, %v3596
          %3602 = vadd.xlane.f32.xlu0 %v3601
          %v3603 = vpop.xlane.xlu0 %3602
          %v3604 = vadd.f32 %v3598, %v3600
          %3605 = vadd.xlane.f32.xlu0 %v3604
          %v3606 = vpop.xlane.xlu0 %3605
          %v3607 = vadd.f32 %v3577, %v3603
          %v3608 = vadd.f32 %v3578, %v3606
          %vm3609 = vcmask 7168
          %3610 = vst.msk [vmem:[#allocation4] sm:$0xff] %vm3609, %v3607
          %3611 = vst.msk [vmem:[#allocation4 + $0x8] sm:$0xff] %vm3609, %v3608
          %3612 = vst.msk [vmem:[#allocation3] sm:$0xff] %vm3609, %v3567
          %3613 = vst.msk [vmem:[#allocation3 + $0x8] sm:$0xff] %vm3609, %v3568
        $region92: #{tpu_custom_call.1} parent=51 // pred_fallthru
          _
        %p3614 = scmp.eq.s32.totalorder %s32, 1
        // Predicated region
        $region93: #{tpu_custom_call.1} parent=51 // pred_check
          %p3615 = pneg %p3614
        $region94: #{tpu_custom_call.1} parent=51 // pred_check_branch
          %3617 = sbr.rel (%p3615) target = $region96
        $region95: #{tpu_custom_call.1} parent=51 // pred_region
          %v3618 = vld [vmem:[#allocation3] sm:$0xff]
          %v3619 = vld [vmem:[#allocation3 + $0x8] sm:$0xff]
          %3621 = vset.pattern.permute.xlu0 0
          %3622 = vperm.xlu0 %3621, %v3618
          %v3623 = vpop.permute.xlu0 %3622
          %3626 = vset.pattern.permute.xlu0 0
          %3627 = vperm.xlu0 %3626, %v3619
          %v3628 = vpop.permute.xlu0 %3627
          %v3630 = vsub.f32 %v3548, %v3623
          %v3631 = vsub.f32 %v3550, %v3623
          %v3632 = vsub.f32 %v3552, %v3628
          %v3633 = vsub.f32 %v3554, %v3628
          %v3634 = vmul.f32 %v3630, 1.442695
          %v3635 = vpow.pop %v3634
          %v3636 = vmul.f32 %v3631, 1.442695
          %v3637 = vpow.pop %v3636
          %v3638 = vmul.f32 %v3632, 1.442695
          %v3639 = vpow.pop %v3638
          %v3640 = vmul.f32 %v3633, 1.442695
          %v3641 = vpow.pop %v3640
          %v3642 = vld [vmem:[#allocation4] sm:$0xff]
          %v3643 = vld [vmem:[#allocation4 + $0x8] sm:$0xff]
          %v3644 = vrcp.pop %v3642
          %v3645 = vmul.f32 1.0, %v3644
          %v3646 = vrcp.pop %v3643
          %v3647 = vmul.f32 1.0, %v3646
          %3649 = vset.pattern.permute.xlu0 0
          %3650 = vperm.xlu0 %3649, %v3645
          %v3651 = vpop.permute.xlu0 %3650
          %3654 = vset.pattern.permute.xlu0 0
          %3655 = vperm.xlu0 %3654, %v3647
          %v3656 = vpop.permute.xlu0 %3655
          %v3658 = vmul.f32 %v3635, %v3651
          %v3659 = vmul.f32 %v3637, %v3651
          %v3660 = vmul.f32 %v3639, %v3656
          %v3661 = vmul.f32 %v3641, %v3656
          %v3662 = vpack.c.bf16 %v3660, %v3658
          %v3663 = vpack.c.bf16 %v3661, %v3659
          %v3666 = vunpack.c.l.b16 %v3662
          %v3667 = vunpack.c.l.b16 %v3663
          %v3668 = vunpack.c.h.b16 %v3662
          %v3669 = vunpack.c.h.b16 %v3663
          %v3670 = vpack.c.b16 %v3667, %v3666
          %v3671 = vpack.c.b16 %v3669, %v3668
          %3674 = vst [vmem:[%s498] sm:$0xff] %v3670
          %3675 = vst [vmem:[%s498 + $0x8] sm:$0xff] %v3671
        $region96: #{tpu_custom_call.1} parent=51 // pred_fallthru
          _
        %s3676 = sand.u32 %s253, 1
        %s3677 = scalar_lea.sflag [#allocation7], %s3676
        %s3678 = sand.u32 %s253, 1
        %s3679 = smul.addr %s3678, 16
        %s3680 = scalar_lea.vmem [#allocation18], %s3679
        // Predicated region
        $region97: #{tpu_custom_call.1} parent=51 // pred_check
          %p3681 = pneg %p263
        $region98: #{tpu_custom_call.1} parent=51 // pred_check_branch
          %3683 = sbr.rel (%p3681) target = $region100
        $region99: #{tpu_custom_call.1} parent=51 // pred_region
          %s3684 = smul.u32 2, %s31
          %s3685 = smul.u32 2, %s33
          %s3687 = ssub.s32 256, 256
          %3688 = vsyncadd %s3677, %s3687
          %s3689 = smul.addr %s3684, 4
          %s3690 = sadd.s32 %s3685, %s3689
          %s3691 = smul.addr %s3690, 64
          %s3692 = scalar_lea.hbm %s8, %s3691
          %s3693 = sshll.u32 %s3680, 4
          %s3694 = int_to_ptr.vmem [resolvable:$true] %s3693
          %3699 = dma.vmem_to_hbm [thread:$0]  %s3694, 256, %s3692, %s3677, 128, 256, 8
        $region100: #{tpu_custom_call.1} parent=51 // pred_fallthru
          _
      $region52: #{tpu_custom_call.1} parent=5 // pred_fallthru
        _
      %p3700 = scmp.le.s32.totalorder 2, %s21
      // Predicated region
      $region101: #{tpu_custom_call.1} parent=5 // pred_check
        %p3701 = pneg %p3700
      $region102: #{tpu_custom_call.1} parent=5 // pred_check_branch
        %3703 = sbr.rel (%p3701) target = $region104
      $region103: #{tpu_custom_call.1} parent=5 // pred_region
        %s3704 = ssub.s32 %s21, 2
        // Predicated region
        $region105: #{tpu_custom_call.1} parent=103 // pred_check
          %p3705 = pneg %p269
        $region106: #{tpu_custom_call.1} parent=103 // pred_check_branch
          %3707 = sbr.rel (%p3705) target = $region108
        $region107: #{tpu_custom_call.1} parent=103 // pred_region
          %s3708 = sand.u32 %s254, 1
          %s3709 = scalar_lea.sflag [#allocation7], %s3708
          %s3710 = sand.u32 %s254, 1
          %s3711 = smul.addr %s3710, 16
          %s3712 = scalar_lea.vmem [#allocation18], %s3711
          %3713 = dma.done %s3709, 256
        $region108: #{tpu_custom_call.1} parent=103 // pred_fallthru
          _
      $region104: #{tpu_custom_call.1} parent=5 // pred_fallthru
        _
    $region6: #{tpu_custom_call.1} parent=1 // loop_footer
      %s25 = sadd.s32 1, %s21
    $region7: #{tpu_custom_call.1} parent=1 // loop_footer_branch
      %20 = sbr.rel target = $region3
    $region8: #{tpu_custom_call.1} parent=1 // loop_exit
      _
    %3714 = vsyncpa [#allocation6], 1
    %s3715 = scalar_lea.sflag [#allocation6], 1
    %3716 = vsyncpa %s3715, 1
    %3717 = vsyncpa [#allocation9], 1
    %3718 = vsyncpa [#allocation12], 1
    %3719 = vsyncpa [#allocation15], 1
    %3720 = vsyncpa [#allocation7], 1
    %s3721 = scalar_lea.sflag [#allocation7], 1
    %3722 = vsyncpa %s3721, 1

</llo_original>
